<compile_context>
chip_gen: v5e
topology: v5e:2x2
jax: 0.10.0
libtpu: 0.0.40
codegen_flags: <defaults>
</compile_context>

<pallas_src>
import jax
import jax.numpy as jnp
from jax import lax
from jax.experimental import pallas as pl
from jax.experimental.pallas import tpu as pltpu

EPS = 1e-5


# ----------------------------- kernel helpers -----------------------------
def _fold_lanes(v, blocks, c):
    """v: [1, blocks*c] -> per-channel sum [1, c] over the `blocks` lane groups."""
    out = v[:, 0:c]
    for k in range(1, blocks):
        out = out + v[:, k * c:(k + 1) * c]
    return out


def _tile_lanes(v, blocks):
    """v: [1, c] -> [1, blocks*c] (repeat along lanes)."""
    return jnp.concatenate([v] * blocks, axis=1)


def _pool2x2(y, n, h, w, c):
    """2x2 max-pool of y [h*n, w*c] with rows = hh*n + nn, lanes = ww*c + cc."""
    even_w = jnp.concatenate([y[:, (2 * k) * c:(2 * k + 1) * c] for k in range(w // 2)], axis=1)
    odd_w = jnp.concatenate([y[:, (2 * k + 1) * c:(2 * k + 2) * c] for k in range(w // 2)], axis=1)
    pw = jnp.maximum(even_w, odd_w)                                   # [h*n, (w//2)*c]
    even_h = jnp.concatenate([pw[(2 * k) * n:(2 * k + 1) * n, :] for k in range(h // 2)], axis=0)
    odd_h = jnp.concatenate([pw[(2 * k + 1) * n:(2 * k + 2) * n, :] for k in range(h // 2)], axis=0)
    return jnp.maximum(even_h, odd_h)                                 # [(h//2)*n, (w//2)*c]


def _bn_packed(r, gamma, beta, w_blocks, c, count):
    """Per-channel training-mode BN of r [rows, w_blocks*c]; one-pass stats."""
    s = _fold_lanes(jnp.sum(r, axis=0, keepdims=True), w_blocks, c)
    sq = _fold_lanes(jnp.sum(r * r, axis=0, keepdims=True), w_blocks, c)
    mean = s * (1.0 / count)
    var = sq * (1.0 / count) - mean * mean
    scale = gamma * lax.rsqrt(var + EPS)
    shift = beta - mean * scale
    return r * _tile_lanes(scale, w_blocks) + _tile_lanes(shift, w_blocks)


# --------------------------------- kernel ---------------------------------
def cnn_base_kernel(x_ref, w1_ref, b1_ref, g1_ref, be1_ref,
                    w2_ref, b2_ref, g2_ref, be2_ref,
                    wfc1_ref, bfc1_ref, g3_ref, be3_ref,
                    wfc2_ref, bfc2_ref, o_ref):
    f32 = jnp.float32
    n = o_ref.shape[0]

    # ---- conv1 (2->16, k5, pad3) as ONE im2col matmul ---------------------
    # x_ref: [20*n, 40]  rows = h_pad*n + nn, lanes = w_pad*2 + ci
    x = x_ref[...]
    patches1 = jnp.concatenate(
        [x[kh * n:(kh + 16) * n, :] for kh in range(5)], axis=1)      # [16n, 200]
    y1 = jnp.dot(patches1, w1_ref[...],
                 preferred_element_type=f32) + b1_ref[...]            # [16n, 256] lanes = w*16+co

    # maxpool2 -> relu -> BatchNorm2d(16) (batch stats)
    p1 = _pool2x2(y1, n, 16, 16, 16)                                  # [8n, 128]
    r1 = jnp.maximum(p1, 0.0)
    a1 = _bn_packed(r1, g1_ref[...], be1_ref[...], 8, 16, n * 8 * 8)  # [8n, 128]

    # ---- conv2 (16->32, k3, pad2) as ONE im2col matmul --------------------
    # zero-pad in-value (no VMEM scratch round trip)
    zw = jnp.zeros((8 * n, 32), f32)
    aw = jnp.concatenate([zw, a1, zw], axis=1)                        # [8n, 192]
    zh = jnp.zeros((2 * n, 192), f32)
    ap = jnp.concatenate([zh, aw, zh], axis=0)                        # [12n, 192]
    patches2 = jnp.concatenate(
        [ap[kh * n:(kh + 10) * n, :] for kh in range(3)], axis=1)     # [10n, 576]
    y2 = jnp.dot(patches2, w2_ref[...],
                 preferred_element_type=f32) + b2_ref[...]            # [10n, 320] lanes = w*32+co

    p2 = _pool2x2(y2, n, 10, 10, 32)                                  # [5n, 160]
    r2 = jnp.maximum(p2, 0.0)
    a2 = _bn_packed(r2, g2_ref[...], be2_ref[...], 5, 32, n * 5 * 5)  # [5n, 160]

    # ---- fc1 (800 -> 200) as ONE matmul; relu; BN1d(200) -------------------
    z = jnp.concatenate([a2[h * n:(h + 1) * n, :] for h in range(5)], axis=1)    # [n, 800]
    f1 = jnp.dot(z, wfc1_ref[...], preferred_element_type=f32) + bfc1_ref[...]   # [n, 200]
    r3 = jnp.maximum(f1, 0.0)
    m3 = jnp.sum(r3, axis=0, keepdims=True) * (1.0 / n)
    v3 = jnp.sum(r3 * r3, axis=0, keepdims=True) * (1.0 / n) - m3 * m3
    a3 = (r3 - m3) * (g3_ref[...] * lax.rsqrt(v3 + EPS)) + be3_ref[...]

    # ---- fc2 (200 -> 2), computed lane-dense (zero-padded to 128 cols) ------
    out = jnp.dot(a3, wfc2_ref[...], preferred_element_type=f32) + bfc2_ref[...]  # [n, 128]
    o_ref[...] = out.astype(o_ref.dtype)


# --------------------------- wrapper / packing -----------------------------
def _toeplitz_conv_weight(w, w_in, w_out):
    """Pack an OIHW conv weight into a block-Toeplitz matmul operand.

    Returns B [KH*w_in*Cin, w_out*Cout] with
      B[kh*(w_in*Cin) + i*Cin + ci, j*Cout + co] = w[co, ci, kh, i - j]  (0<=i-j<KW, else 0)
    so that (im2col-over-KH patches) @ B gives the conv output with lanes = w_out*Cout + co.
    """
    co, ci, khs, kws = w.shape
    i_idx = jnp.arange(w_in)[None, :, None]
    j_idx = jnp.arange(w_out)[None, None, :]
    k_idx = jnp.arange(kws)[:, None, None]
    taps = (i_idx == j_idx + k_idx).astype(jnp.float32)                 # [KW, Win, Wout]
    b = jnp.einsum("kij,ochk->hicjo", taps, w.astype(jnp.float32))      # [KH, Win, Cin, Wout, Cout]
    return b.reshape(khs * w_in * ci, w_out * co)


def cnn_base_forward(x, params):
    """x: [N, 2, 14, 14] float32 (NCHW, like PyTorch). Returns (logits [N,2], None).

    N is preferably a multiple of 8 (sublane aligned); the kernel is correct
    for other N but pays extra relayout cost.
    """
    n = x.shape[0]
    f32 = jnp.float32
    row = lambda v: v.reshape(1, -1).astype(f32)

    # input: NCHW -> pad(3) -> [H_pad, N, W_pad, C] -> [20*N, 40]
    xp = jnp.pad(x.astype(f32), ((0, 0), (0, 0), (3, 3), (3, 3)))        # [N,2,20,20]
    xk = jnp.transpose(xp, (2, 0, 3, 1)).reshape(20 * n, 40)             # rows h*N+n, lanes w*2+ci

    # conv weights -> block-Toeplitz matmul operands (static wrapper glue)
    w1k = _toeplitz_conv_weight(params["w_conv1"], 20, 16)               # [200, 256]
    w2k = _toeplitz_conv_weight(params["w_conv2"], 12, 10)               # [576, 320]
    b1k = row(jnp.tile(params["b_conv1"], 16))                           # [1, 256]  (lanes w*16+co)
    b2k = row(jnp.tile(params["b_conv2"], 10))                           # [1, 320]

    # fc1 weight repacked to the kernel's (h, w, c) flatten order -> [800, 200]
    wfc1k = jnp.transpose(params["w_fc1"].reshape(200, 32, 5, 5),
                          (2, 3, 1, 0)).reshape(800, 200).astype(f32)
    # fc2 zero-padded to a lane-dense 128-wide output
    wfc2k = jnp.pad(params["w_fc2"].T.astype(f32), ((0, 0), (0, 126)))   # [200, 128]
    bfc2k = row(jnp.pad(params["b_fc2"].astype(f32), (0, 126)))          # [1, 128]

    inputs = [
        xk, w1k, b1k, row(params["g_bn1"]), row(params["b_bn1"]),
        w2k, b2k, row(params["g_bn2"]), row(params["b_bn2"]),
        wfc1k, row(params["b_fc1"]), row(params["g_bn3"]), row(params["b_bn3"]),
        wfc2k, bfc2k,
    ]

    # Single grid point: weights + activations total only a few MiB of VMEM here.
    # For very large N, add a batch grid axis ("parallel") with a two-pass BN
    # (partial sum/sumsq accumulators finalized on the last step) to use both
    # v7x TensorCores and stay inside its 64 MiB VMEM.
    out = pl.pallas_call(
        cnn_base_kernel,
        out_shape=jax.ShapeDtypeStruct((n, 128), f32),
        in_specs=[pl.BlockSpec(memory_space=pltpu.MemorySpace.VMEM)] * len(inputs),
        out_specs=pl.BlockSpec(memory_space=pltpu.MemorySpace.VMEM),
        compiler_params=pltpu.CompilerParams(vmem_limit_bytes=32 * 1024 * 1024),
    )(*inputs)
    return out[:, :2], None


# ------------------------------ test scaffold ------------------------------
def init_params(key):
    """Deterministic params matching PyTorch default init shapes/scales."""
    ks = jax.random.split(key, 8)

    def u(k, shape, fan_in):
        b = 1.0 / (fan_in ** 0.5)
        return jax.random.uniform(k, shape, jnp.float32, -b, b)

    p = {}
    p["w_conv1"] = u(ks[0], (16, 2, 5, 5), 2 * 5 * 5)
    p["b_conv1"] = u(ks[1], (16,), 2 * 5 * 5)
    p["w_conv2"] = u(ks[2], (32, 16, 3, 3), 16 * 3 * 3)
    p["b_conv2"] = u(ks[3], (32,), 16 * 3 * 3)
    p["w_fc1"] = u(ks[4], (200, 800), 800)
    p["b_fc1"] = u(ks[5], (200,), 800)
    p["w_fc2"] = u(ks[6], (2, 200), 200)
    p["b_fc2"] = u(ks[7], (2,), 200)
    p["g_bn1"] = jnp.ones((16,), jnp.float32);  p["b_bn1"] = jnp.zeros((16,), jnp.float32)
    p["g_bn2"] = jnp.ones((32,), jnp.float32);  p["b_bn2"] = jnp.zeros((32,), jnp.float32)
    p["g_bn3"] = jnp.ones((200,), jnp.float32); p["b_bn3"] = jnp.zeros((200,), jnp.float32)
    return p


def reference_forward(x, p):
    """Pure-JAX (XLA) reference mirroring the PyTorch forward (training-mode BN)."""
    hp = lax.Precision.HIGHEST

    def bn(y, g, b, axes):
        m = y.mean(axis=axes, keepdims=True)
        v = ((y - m) ** 2).mean(axis=axes, keepdims=True)
        return (y - m) / jnp.sqrt(v + EPS) * g + b

    y = lax.conv_general_dilated(x, p["w_conv1"], (1, 1), [(3, 3), (3, 3)],
                                 dimension_numbers=("NCHW", "OIHW", "NCHW"),
                                 precision=hp) + p["b_conv1"][None, :, None, None]
    y = lax.reduce_window(y, -jnp.inf, lax.max, (1, 1, 2, 2), (1, 1, 2, 2), "VALID")
    y = jnp.maximum(y, 0.0)
    y = bn(y, p["g_bn1"][None, :, None, None], p["b_bn1"][None, :, None, None], (0, 2, 3))

    y = lax.conv_general_dilated(y, p["w_conv2"], (1, 1), [(2, 2), (2, 2)],
                                 dimension_numbers=("NCHW", "OIHW", "NCHW"),
                                 precision=hp) + p["b_conv2"][None, :, None, None]
    y = lax.reduce_window(y, -jnp.inf, lax.max, (1, 1, 2, 2), (1, 1, 2, 2), "VALID")
    y = jnp.maximum(y, 0.0)
    y = bn(y, p["g_bn2"][None, :, None, None], p["b_bn2"][None, :, None, None], (0, 2, 3))

    y = y.reshape(y.shape[0], -1)                                   # [N, 800] (C,H,W order)
    y = jnp.dot(y, p["w_fc1"].T, precision=hp) + p["b_fc1"]
    y = jnp.maximum(y, 0.0)
    y = bn(y, p["g_bn3"], p["b_bn3"], (0,))
    y = jnp.dot(y, p["w_fc2"].T, precision=hp) + p["b_fc2"]
    return y


if __name__ == "__main__":
    key = jax.random.PRNGKey(0)
    pkey, xkey = jax.random.split(key)
    params = init_params(pkey)
    # Input must be [N, 2, 14, 14] for the 800-feature flatten to hold; N=8 is
    # sublane-aligned.
    x = jax.random.normal(xkey, (8, 2, 14, 14), jnp.float32)

    logits, aux = cnn_base_forward(x, params)
    logits = jax.block_until_ready(logits)
    assert logits.shape == (8, 2) and aux is None

    ref = reference_forward(x, params)
    err = float(jnp.max(jnp.abs(logits - ref)))
    assert err < 5e-2, f"kernel/reference mismatch: max|diff|={err}"
    print("KERNEL_OK")
</pallas_src>

<mosaic_0001>
module attributes {stable_mosaic.version = 11 : i64} {
  func.func @cnn_base_kernel(%arg0: memref<160x40xf32, #tpu.memory_space<vmem>>, %arg1: memref<200x256xf32, #tpu.memory_space<vmem>>, %arg2: memref<1x256xf32, #tpu.memory_space<vmem>>, %arg3: memref<1x16xf32, #tpu.memory_space<vmem>>, %arg4: memref<1x16xf32, #tpu.memory_space<vmem>>, %arg5: memref<576x320xf32, #tpu.memory_space<vmem>>, %arg6: memref<1x320xf32, #tpu.memory_space<vmem>>, %arg7: memref<1x32xf32, #tpu.memory_space<vmem>>, %arg8: memref<1x32xf32, #tpu.memory_space<vmem>>, %arg9: memref<800x200xf32, #tpu.memory_space<vmem>>, %arg10: memref<1x200xf32, #tpu.memory_space<vmem>>, %arg11: memref<1x200xf32, #tpu.memory_space<vmem>>, %arg12: memref<1x200xf32, #tpu.memory_space<vmem>>, %arg13: memref<200x128xf32, #tpu.memory_space<vmem>>, %arg14: memref<1x128xf32, #tpu.memory_space<vmem>>, %arg15: memref<8x128xf32, #tpu.memory_space<vmem>>) attributes {dimension_semantics = [], scalar_prefetch = 0 : i64, scratch_operands = 0 : i64, tpu.core_type = #tpu.core_type<tc>} {
    %c0 = arith.constant 0 : index
    %c0_0 = arith.constant 0 : index
    %0 = vector.load %arg0[%c0, %c0_0] : memref<160x40xf32, #tpu.memory_space<vmem>>, vector<160x40xf32>
    %1 = vector.extract_strided_slice %0 {offsets = [0, 0], sizes = [128, 40], strides = [1, 1]} : vector<160x40xf32> to vector<128x40xf32>
    %2 = vector.extract_strided_slice %0 {offsets = [8, 0], sizes = [128, 40], strides = [1, 1]} : vector<160x40xf32> to vector<128x40xf32>
    %3 = vector.extract_strided_slice %0 {offsets = [16, 0], sizes = [128, 40], strides = [1, 1]} : vector<160x40xf32> to vector<128x40xf32>
    %4 = vector.extract_strided_slice %0 {offsets = [24, 0], sizes = [128, 40], strides = [1, 1]} : vector<160x40xf32> to vector<128x40xf32>
    %5 = vector.extract_strided_slice %0 {offsets = [32, 0], sizes = [128, 40], strides = [1, 1]} : vector<160x40xf32> to vector<128x40xf32>
    %6 = tpu.concatenate %1, %2, %3, %4, %5 in 1 : vector<128x40xf32>, vector<128x40xf32>, vector<128x40xf32>, vector<128x40xf32>, vector<128x40xf32> -> vector<128x200xf32>
    %c0_1 = arith.constant 0 : index
    %c0_2 = arith.constant 0 : index
    %7 = vector.load %arg1[%c0_1, %c0_2] : memref<200x256xf32, #tpu.memory_space<vmem>>, vector<200x256xf32>
    %cst = arith.constant dense<0.000000e+00> : vector<128x256xf32>
    %8 = tpu.matmul %6, %7, %cst {dimension_numbers = #tpu.dot_dimension_numbers<[1], [0], [0], [1], [0, 0, 1, 1], [], []>} : vector<128x200xf32>, vector<200x256xf32>, vector<128x256xf32> -> vector<128x256xf32>
    %c0_3 = arith.constant 0 : index
    %c0_4 = arith.constant 0 : index
    %9 = vector.load %arg2[%c0_3, %c0_4] : memref<1x256xf32, #tpu.memory_space<vmem>>, vector<1x256xf32>
    %10 = vector.broadcast %9 : vector<1x256xf32> to vector<128x256xf32>
    %11 = arith.addf %8, %10 : vector<128x256xf32>
    %12 = vector.extract_strided_slice %11 {offsets = [0, 0], sizes = [128, 16], strides = [1, 1]} : vector<128x256xf32> to vector<128x16xf32>
    %13 = vector.extract_strided_slice %11 {offsets = [0, 32], sizes = [128, 16], strides = [1, 1]} : vector<128x256xf32> to vector<128x16xf32>
    %14 = vector.extract_strided_slice %11 {offsets = [0, 64], sizes = [128, 16], strides = [1, 1]} : vector<128x256xf32> to vector<128x16xf32>
    %15 = vector.extract_strided_slice %11 {offsets = [0, 96], sizes = [128, 16], strides = [1, 1]} : vector<128x256xf32> to vector<128x16xf32>
    %16 = vector.extract_strided_slice %11 {offsets = [0, 128], sizes = [128, 16], strides = [1, 1]} : vector<128x256xf32> to vector<128x16xf32>
    %17 = vector.extract_strided_slice %11 {offsets = [0, 160], sizes = [128, 16], strides = [1, 1]} : vector<128x256xf32> to vector<128x16xf32>
    %18 = vector.extract_strided_slice %11 {offsets = [0, 192], sizes = [128, 16], strides = [1, 1]} : vector<128x256xf32> to vector<128x16xf32>
    %19 = vector.extract_strided_slice %11 {offsets = [0, 224], sizes = [128, 16], strides = [1, 1]} : vector<128x256xf32> to vector<128x16xf32>
    %20 = tpu.concatenate %12, %13, %14, %15, %16, %17, %18, %19 in 1 : vector<128x16xf32>, vector<128x16xf32>, vector<128x16xf32>, vector<128x16xf32>, vector<128x16xf32>, vector<128x16xf32>, vector<128x16xf32>, vector<128x16xf32> -> vector<128x128xf32>
    %21 = vector.extract_strided_slice %11 {offsets = [0, 16], sizes = [128, 16], strides = [1, 1]} : vector<128x256xf32> to vector<128x16xf32>
    %22 = vector.extract_strided_slice %11 {offsets = [0, 48], sizes = [128, 16], strides = [1, 1]} : vector<128x256xf32> to vector<128x16xf32>
    %23 = vector.extract_strided_slice %11 {offsets = [0, 80], sizes = [128, 16], strides = [1, 1]} : vector<128x256xf32> to vector<128x16xf32>
    %24 = vector.extract_strided_slice %11 {offsets = [0, 112], sizes = [128, 16], strides = [1, 1]} : vector<128x256xf32> to vector<128x16xf32>
    %25 = vector.extract_strided_slice %11 {offsets = [0, 144], sizes = [128, 16], strides = [1, 1]} : vector<128x256xf32> to vector<128x16xf32>
    %26 = vector.extract_strided_slice %11 {offsets = [0, 176], sizes = [128, 16], strides = [1, 1]} : vector<128x256xf32> to vector<128x16xf32>
    %27 = vector.extract_strided_slice %11 {offsets = [0, 208], sizes = [128, 16], strides = [1, 1]} : vector<128x256xf32> to vector<128x16xf32>
    %28 = vector.extract_strided_slice %11 {offsets = [0, 240], sizes = [128, 16], strides = [1, 1]} : vector<128x256xf32> to vector<128x16xf32>
    %29 = tpu.concatenate %21, %22, %23, %24, %25, %26, %27, %28 in 1 : vector<128x16xf32>, vector<128x16xf32>, vector<128x16xf32>, vector<128x16xf32>, vector<128x16xf32>, vector<128x16xf32>, vector<128x16xf32>, vector<128x16xf32> -> vector<128x128xf32>
    %30 = arith.maximumf %20, %29 : vector<128x128xf32>
    %31 = vector.extract_strided_slice %30 {offsets = [0, 0], sizes = [8, 128], strides = [1, 1]} : vector<128x128xf32> to vector<8x128xf32>
    %32 = vector.extract_strided_slice %30 {offsets = [16, 0], sizes = [8, 128], strides = [1, 1]} : vector<128x128xf32> to vector<8x128xf32>
    %33 = vector.extract_strided_slice %30 {offsets = [32, 0], sizes = [8, 128], strides = [1, 1]} : vector<128x128xf32> to vector<8x128xf32>
    %34 = vector.extract_strided_slice %30 {offsets = [48, 0], sizes = [8, 128], strides = [1, 1]} : vector<128x128xf32> to vector<8x128xf32>
    %35 = vector.extract_strided_slice %30 {offsets = [64, 0], sizes = [8, 128], strides = [1, 1]} : vector<128x128xf32> to vector<8x128xf32>
    %36 = vector.extract_strided_slice %30 {offsets = [80, 0], sizes = [8, 128], strides = [1, 1]} : vector<128x128xf32> to vector<8x128xf32>
    %37 = vector.extract_strided_slice %30 {offsets = [96, 0], sizes = [8, 128], strides = [1, 1]} : vector<128x128xf32> to vector<8x128xf32>
    %38 = vector.extract_strided_slice %30 {offsets = [112, 0], sizes = [8, 128], strides = [1, 1]} : vector<128x128xf32> to vector<8x128xf32>
    %39 = tpu.concatenate %31, %32, %33, %34, %35, %36, %37, %38 in 0 : vector<8x128xf32>, vector<8x128xf32>, vector<8x128xf32>, vector<8x128xf32>, vector<8x128xf32>, vector<8x128xf32>, vector<8x128xf32>, vector<8x128xf32> -> vector<64x128xf32>
    %40 = vector.extract_strided_slice %30 {offsets = [8, 0], sizes = [8, 128], strides = [1, 1]} : vector<128x128xf32> to vector<8x128xf32>
    %41 = vector.extract_strided_slice %30 {offsets = [24, 0], sizes = [8, 128], strides = [1, 1]} : vector<128x128xf32> to vector<8x128xf32>
    %42 = vector.extract_strided_slice %30 {offsets = [40, 0], sizes = [8, 128], strides = [1, 1]} : vector<128x128xf32> to vector<8x128xf32>
    %43 = vector.extract_strided_slice %30 {offsets = [56, 0], sizes = [8, 128], strides = [1, 1]} : vector<128x128xf32> to vector<8x128xf32>
    %44 = vector.extract_strided_slice %30 {offsets = [72, 0], sizes = [8, 128], strides = [1, 1]} : vector<128x128xf32> to vector<8x128xf32>
    %45 = vector.extract_strided_slice %30 {offsets = [88, 0], sizes = [8, 128], strides = [1, 1]} : vector<128x128xf32> to vector<8x128xf32>
    %46 = vector.extract_strided_slice %30 {offsets = [104, 0], sizes = [8, 128], strides = [1, 1]} : vector<128x128xf32> to vector<8x128xf32>
    %47 = vector.extract_strided_slice %30 {offsets = [120, 0], sizes = [8, 128], strides = [1, 1]} : vector<128x128xf32> to vector<8x128xf32>
    %48 = tpu.concatenate %40, %41, %42, %43, %44, %45, %46, %47 in 0 : vector<8x128xf32>, vector<8x128xf32>, vector<8x128xf32>, vector<8x128xf32>, vector<8x128xf32>, vector<8x128xf32>, vector<8x128xf32>, vector<8x128xf32> -> vector<64x128xf32>
    %49 = arith.maximumf %39, %48 : vector<64x128xf32>
    %cst_5 = arith.constant 0.000000e+00 : f32
    %50 = vector.broadcast %cst_5 : f32 to vector<64x128xf32>
    %51 = arith.maximumf %49, %50 : vector<64x128xf32>
    %c0_6 = arith.constant 0 : index
    %c0_7 = arith.constant 0 : index
    %52 = vector.load %arg3[%c0_6, %c0_7] : memref<1x16xf32, #tpu.memory_space<vmem>>, vector<1x16xf32>
    %c0_8 = arith.constant 0 : index
    %c0_9 = arith.constant 0 : index
    %53 = vector.load %arg4[%c0_8, %c0_9] : memref<1x16xf32, #tpu.memory_space<vmem>>, vector<1x16xf32>
    %cst_10 = arith.constant dense<0.000000e+00> : vector<128xf32>
    %54 = vector.multi_reduction <add>, %51, %cst_10 [0] : vector<64x128xf32> to vector<128xf32>
    %55 = vector.shape_cast %54 : vector<128xf32> to vector<1x128xf32>
    %56 = vector.extract_strided_slice %55 {offsets = [0, 0], sizes = [1, 16], strides = [1, 1]} : vector<1x128xf32> to vector<1x16xf32>
    %57 = vector.extract_strided_slice %55 {offsets = [0, 16], sizes = [1, 16], strides = [1, 1]} : vector<1x128xf32> to vector<1x16xf32>
    %58 = arith.addf %56, %57 : vector<1x16xf32>
    %59 = vector.extract_strided_slice %55 {offsets = [0, 32], sizes = [1, 16], strides = [1, 1]} : vector<1x128xf32> to vector<1x16xf32>
    %60 = arith.addf %58, %59 : vector<1x16xf32>
    %61 = vector.extract_strided_slice %55 {offsets = [0, 48], sizes = [1, 16], strides = [1, 1]} : vector<1x128xf32> to vector<1x16xf32>
    %62 = arith.addf %60, %61 : vector<1x16xf32>
    %63 = vector.extract_strided_slice %55 {offsets = [0, 64], sizes = [1, 16], strides = [1, 1]} : vector<1x128xf32> to vector<1x16xf32>
    %64 = arith.addf %62, %63 : vector<1x16xf32>
    %65 = vector.extract_strided_slice %55 {offsets = [0, 80], sizes = [1, 16], strides = [1, 1]} : vector<1x128xf32> to vector<1x16xf32>
    %66 = arith.addf %64, %65 : vector<1x16xf32>
    %67 = vector.extract_strided_slice %55 {offsets = [0, 96], sizes = [1, 16], strides = [1, 1]} : vector<1x128xf32> to vector<1x16xf32>
    %68 = arith.addf %66, %67 : vector<1x16xf32>
    %69 = vector.extract_strided_slice %55 {offsets = [0, 112], sizes = [1, 16], strides = [1, 1]} : vector<1x128xf32> to vector<1x16xf32>
    %70 = arith.addf %68, %69 : vector<1x16xf32>
    %71 = arith.mulf %51, %51 : vector<64x128xf32>
    %cst_11 = arith.constant dense<0.000000e+00> : vector<128xf32>
    %72 = vector.multi_reduction <add>, %71, %cst_11 [0] : vector<64x128xf32> to vector<128xf32>
    %73 = vector.shape_cast %72 : vector<128xf32> to vector<1x128xf32>
    %74 = vector.extract_strided_slice %73 {offsets = [0, 0], sizes = [1, 16], strides = [1, 1]} : vector<1x128xf32> to vector<1x16xf32>
    %75 = vector.extract_strided_slice %73 {offsets = [0, 16], sizes = [1, 16], strides = [1, 1]} : vector<1x128xf32> to vector<1x16xf32>
    %76 = arith.addf %74, %75 : vector<1x16xf32>
    %77 = vector.extract_strided_slice %73 {offsets = [0, 32], sizes = [1, 16], strides = [1, 1]} : vector<1x128xf32> to vector<1x16xf32>
    %78 = arith.addf %76, %77 : vector<1x16xf32>
    %79 = vector.extract_strided_slice %73 {offsets = [0, 48], sizes = [1, 16], strides = [1, 1]} : vector<1x128xf32> to vector<1x16xf32>
    %80 = arith.addf %78, %79 : vector<1x16xf32>
    %81 = vector.extract_strided_slice %73 {offsets = [0, 64], sizes = [1, 16], strides = [1, 1]} : vector<1x128xf32> to vector<1x16xf32>
    %82 = arith.addf %80, %81 : vector<1x16xf32>
    %83 = vector.extract_strided_slice %73 {offsets = [0, 80], sizes = [1, 16], strides = [1, 1]} : vector<1x128xf32> to vector<1x16xf32>
    %84 = arith.addf %82, %83 : vector<1x16xf32>
    %85 = vector.extract_strided_slice %73 {offsets = [0, 96], sizes = [1, 16], strides = [1, 1]} : vector<1x128xf32> to vector<1x16xf32>
    %86 = arith.addf %84, %85 : vector<1x16xf32>
    %87 = vector.extract_strided_slice %73 {offsets = [0, 112], sizes = [1, 16], strides = [1, 1]} : vector<1x128xf32> to vector<1x16xf32>
    %88 = arith.addf %86, %87 : vector<1x16xf32>
    %cst_12 = arith.constant 0.001953125 : f32
    %89 = vector.broadcast %cst_12 : f32 to vector<1x16xf32>
    %90 = arith.mulf %70, %89 : vector<1x16xf32>
    %cst_13 = arith.constant 0.001953125 : f32
    %91 = vector.broadcast %cst_13 : f32 to vector<1x16xf32>
    %92 = arith.mulf %88, %91 : vector<1x16xf32>
    %93 = arith.mulf %90, %90 : vector<1x16xf32>
    %94 = arith.subf %92, %93 : vector<1x16xf32>
    %cst_14 = arith.constant 9.99999974E-6 : f32
    %95 = vector.broadcast %cst_14 : f32 to vector<1x16xf32>
    %96 = arith.addf %94, %95 : vector<1x16xf32>
    %97 = math.rsqrt %96 : vector<1x16xf32>
    %98 = arith.mulf %52, %97 : vector<1x16xf32>
    %99 = arith.mulf %90, %98 : vector<1x16xf32>
    %100 = arith.subf %53, %99 : vector<1x16xf32>
    %101 = tpu.concatenate %98, %98, %98, %98, %98, %98, %98, %98 in 1 : vector<1x16xf32>, vector<1x16xf32>, vector<1x16xf32>, vector<1x16xf32>, vector<1x16xf32>, vector<1x16xf32>, vector<1x16xf32>, vector<1x16xf32> -> vector<1x128xf32>
    %102 = vector.broadcast %101 : vector<1x128xf32> to vector<64x128xf32>
    %103 = arith.mulf %51, %102 : vector<64x128xf32>
    %104 = tpu.concatenate %100, %100, %100, %100, %100, %100, %100, %100 in 1 : vector<1x16xf32>, vector<1x16xf32>, vector<1x16xf32>, vector<1x16xf32>, vector<1x16xf32>, vector<1x16xf32>, vector<1x16xf32>, vector<1x16xf32> -> vector<1x128xf32>
    %105 = vector.broadcast %104 : vector<1x128xf32> to vector<64x128xf32>
    %106 = arith.addf %103, %105 : vector<64x128xf32>
    %cst_15 = arith.constant 0.000000e+00 : f32
    %107 = vector.broadcast %cst_15 : f32 to vector<64x32xf32>
    %108 = tpu.concatenate %107, %106, %107 in 1 : vector<64x32xf32>, vector<64x128xf32>, vector<64x32xf32> -> vector<64x192xf32>
    %cst_16 = arith.constant 0.000000e+00 : f32
    %109 = vector.broadcast %cst_16 : f32 to vector<16x192xf32>
    %110 = tpu.concatenate %109, %108, %109 in 0 : vector<16x192xf32>, vector<64x192xf32>, vector<16x192xf32> -> vector<96x192xf32>
    %111 = vector.extract_strided_slice %110 {offsets = [0, 0], sizes = [80, 192], strides = [1, 1]} : vector<96x192xf32> to vector<80x192xf32>
    %112 = vector.extract_strided_slice %110 {offsets = [8, 0], sizes = [80, 192], strides = [1, 1]} : vector<96x192xf32> to vector<80x192xf32>
    %113 = vector.extract_strided_slice %110 {offsets = [16, 0], sizes = [80, 192], strides = [1, 1]} : vector<96x192xf32> to vector<80x192xf32>
    %114 = tpu.concatenate %111, %112, %113 in 1 : vector<80x192xf32>, vector<80x192xf32>, vector<80x192xf32> -> vector<80x576xf32>
    %c0_17 = arith.constant 0 : index
    %c0_18 = arith.constant 0 : index
    %115 = vector.load %arg5[%c0_17, %c0_18] : memref<576x320xf32, #tpu.memory_space<vmem>>, vector<576x320xf32>
    %cst_19 = arith.constant dense<0.000000e+00> : vector<80x320xf32>
    %116 = tpu.matmul %114, %115, %cst_19 {dimension_numbers = #tpu.dot_dimension_numbers<[1], [0], [0], [1], [0, 0, 1, 1], [], []>} : vector<80x576xf32>, vector<576x320xf32>, vector<80x320xf32> -> vector<80x320xf32>
    %c0_20 = arith.constant 0 : index
    %c0_21 = arith.constant 0 : index
    %117 = vector.load %arg6[%c0_20, %c0_21] : memref<1x320xf32, #tpu.memory_space<vmem>>, vector<1x320xf32>
    %118 = vector.broadcast %117 : vector<1x320xf32> to vector<80x320xf32>
    %119 = arith.addf %116, %118 : vector<80x320xf32>
    %120 = vector.extract_strided_slice %119 {offsets = [0, 0], sizes = [80, 32], strides = [1, 1]} : vector<80x320xf32> to vector<80x32xf32>
    %121 = vector.extract_strided_slice %119 {offsets = [0, 64], sizes = [80, 32], strides = [1, 1]} : vector<80x320xf32> to vector<80x32xf32>
    %122 = vector.extract_strided_slice %119 {offsets = [0, 128], sizes = [80, 32], strides = [1, 1]} : vector<80x320xf32> to vector<80x32xf32>
    %123 = vector.extract_strided_slice %119 {offsets = [0, 192], sizes = [80, 32], strides = [1, 1]} : vector<80x320xf32> to vector<80x32xf32>
    %124 = vector.extract_strided_slice %119 {offsets = [0, 256], sizes = [80, 32], strides = [1, 1]} : vector<80x320xf32> to vector<80x32xf32>
    %125 = tpu.concatenate %120, %121, %122, %123, %124 in 1 : vector<80x32xf32>, vector<80x32xf32>, vector<80x32xf32>, vector<80x32xf32>, vector<80x32xf32> -> vector<80x160xf32>
    %126 = vector.extract_strided_slice %119 {offsets = [0, 32], sizes = [80, 32], strides = [1, 1]} : vector<80x320xf32> to vector<80x32xf32>
    %127 = vector.extract_strided_slice %119 {offsets = [0, 96], sizes = [80, 32], strides = [1, 1]} : vector<80x320xf32> to vector<80x32xf32>
    %128 = vector.extract_strided_slice %119 {offsets = [0, 160], sizes = [80, 32], strides = [1, 1]} : vector<80x320xf32> to vector<80x32xf32>
    %129 = vector.extract_strided_slice %119 {offsets = [0, 224], sizes = [80, 32], strides = [1, 1]} : vector<80x320xf32> to vector<80x32xf32>
    %130 = vector.extract_strided_slice %119 {offsets = [0, 288], sizes = [80, 32], strides = [1, 1]} : vector<80x320xf32> to vector<80x32xf32>
    %131 = tpu.concatenate %126, %127, %128, %129, %130 in 1 : vector<80x32xf32>, vector<80x32xf32>, vector<80x32xf32>, vector<80x32xf32>, vector<80x32xf32> -> vector<80x160xf32>
    %132 = arith.maximumf %125, %131 : vector<80x160xf32>
    %133 = vector.extract_strided_slice %132 {offsets = [0, 0], sizes = [8, 160], strides = [1, 1]} : vector<80x160xf32> to vector<8x160xf32>
    %134 = vector.extract_strided_slice %132 {offsets = [16, 0], sizes = [8, 160], strides = [1, 1]} : vector<80x160xf32> to vector<8x160xf32>
    %135 = vector.extract_strided_slice %132 {offsets = [32, 0], sizes = [8, 160], strides = [1, 1]} : vector<80x160xf32> to vector<8x160xf32>
    %136 = vector.extract_strided_slice %132 {offsets = [48, 0], sizes = [8, 160], strides = [1, 1]} : vector<80x160xf32> to vector<8x160xf32>
    %137 = vector.extract_strided_slice %132 {offsets = [64, 0], sizes = [8, 160], strides = [1, 1]} : vector<80x160xf32> to vector<8x160xf32>
    %138 = tpu.concatenate %133, %134, %135, %136, %137 in 0 : vector<8x160xf32>, vector<8x160xf32>, vector<8x160xf32>, vector<8x160xf32>, vector<8x160xf32> -> vector<40x160xf32>
    %139 = vector.extract_strided_slice %132 {offsets = [8, 0], sizes = [8, 160], strides = [1, 1]} : vector<80x160xf32> to vector<8x160xf32>
    %140 = vector.extract_strided_slice %132 {offsets = [24, 0], sizes = [8, 160], strides = [1, 1]} : vector<80x160xf32> to vector<8x160xf32>
    %141 = vector.extract_strided_slice %132 {offsets = [40, 0], sizes = [8, 160], strides = [1, 1]} : vector<80x160xf32> to vector<8x160xf32>
    %142 = vector.extract_strided_slice %132 {offsets = [56, 0], sizes = [8, 160], strides = [1, 1]} : vector<80x160xf32> to vector<8x160xf32>
    %143 = vector.extract_strided_slice %132 {offsets = [72, 0], sizes = [8, 160], strides = [1, 1]} : vector<80x160xf32> to vector<8x160xf32>
    %144 = tpu.concatenate %139, %140, %141, %142, %143 in 0 : vector<8x160xf32>, vector<8x160xf32>, vector<8x160xf32>, vector<8x160xf32>, vector<8x160xf32> -> vector<40x160xf32>
    %145 = arith.maximumf %138, %144 : vector<40x160xf32>
    %cst_22 = arith.constant 0.000000e+00 : f32
    %146 = vector.broadcast %cst_22 : f32 to vector<40x160xf32>
    %147 = arith.maximumf %145, %146 : vector<40x160xf32>
    %c0_23 = arith.constant 0 : index
    %c0_24 = arith.constant 0 : index
    %148 = vector.load %arg7[%c0_23, %c0_24] : memref<1x32xf32, #tpu.memory_space<vmem>>, vector<1x32xf32>
    %c0_25 = arith.constant 0 : index
    %c0_26 = arith.constant 0 : index
    %149 = vector.load %arg8[%c0_25, %c0_26] : memref<1x32xf32, #tpu.memory_space<vmem>>, vector<1x32xf32>
    %cst_27 = arith.constant dense<0.000000e+00> : vector<160xf32>
    %150 = vector.multi_reduction <add>, %147, %cst_27 [0] : vector<40x160xf32> to vector<160xf32>
    %151 = vector.shape_cast %150 : vector<160xf32> to vector<1x160xf32>
    %152 = vector.extract_strided_slice %151 {offsets = [0, 0], sizes = [1, 32], strides = [1, 1]} : vector<1x160xf32> to vector<1x32xf32>
    %153 = vector.extract_strided_slice %151 {offsets = [0, 32], sizes = [1, 32], strides = [1, 1]} : vector<1x160xf32> to vector<1x32xf32>
    %154 = arith.addf %152, %153 : vector<1x32xf32>
    %155 = vector.extract_strided_slice %151 {offsets = [0, 64], sizes = [1, 32], strides = [1, 1]} : vector<1x160xf32> to vector<1x32xf32>
    %156 = arith.addf %154, %155 : vector<1x32xf32>
    %157 = vector.extract_strided_slice %151 {offsets = [0, 96], sizes = [1, 32], strides = [1, 1]} : vector<1x160xf32> to vector<1x32xf32>
    %158 = arith.addf %156, %157 : vector<1x32xf32>
    %159 = vector.extract_strided_slice %151 {offsets = [0, 128], sizes = [1, 32], strides = [1, 1]} : vector<1x160xf32> to vector<1x32xf32>
    %160 = arith.addf %158, %159 : vector<1x32xf32>
    %161 = arith.mulf %147, %147 : vector<40x160xf32>
    %cst_28 = arith.constant dense<0.000000e+00> : vector<160xf32>
    %162 = vector.multi_reduction <add>, %161, %cst_28 [0] : vector<40x160xf32> to vector<160xf32>
    %163 = vector.shape_cast %162 : vector<160xf32> to vector<1x160xf32>
    %164 = vector.extract_strided_slice %163 {offsets = [0, 0], sizes = [1, 32], strides = [1, 1]} : vector<1x160xf32> to vector<1x32xf32>
    %165 = vector.extract_strided_slice %163 {offsets = [0, 32], sizes = [1, 32], strides = [1, 1]} : vector<1x160xf32> to vector<1x32xf32>
    %166 = arith.addf %164, %165 : vector<1x32xf32>
    %167 = vector.extract_strided_slice %163 {offsets = [0, 64], sizes = [1, 32], strides = [1, 1]} : vector<1x160xf32> to vector<1x32xf32>
    %168 = arith.addf %166, %167 : vector<1x32xf32>
    %169 = vector.extract_strided_slice %163 {offsets = [0, 96], sizes = [1, 32], strides = [1, 1]} : vector<1x160xf32> to vector<1x32xf32>
    %170 = arith.addf %168, %169 : vector<1x32xf32>
    %171 = vector.extract_strided_slice %163 {offsets = [0, 128], sizes = [1, 32], strides = [1, 1]} : vector<1x160xf32> to vector<1x32xf32>
    %172 = arith.addf %170, %171 : vector<1x32xf32>
    %cst_29 = arith.constant 5.000000e-03 : f32
    %173 = vector.broadcast %cst_29 : f32 to vector<1x32xf32>
    %174 = arith.mulf %160, %173 : vector<1x32xf32>
    %cst_30 = arith.constant 5.000000e-03 : f32
    %175 = vector.broadcast %cst_30 : f32 to vector<1x32xf32>
    %176 = arith.mulf %172, %175 : vector<1x32xf32>
    %177 = arith.mulf %174, %174 : vector<1x32xf32>
    %178 = arith.subf %176, %177 : vector<1x32xf32>
    %cst_31 = arith.constant 9.99999974E-6 : f32
    %179 = vector.broadcast %cst_31 : f32 to vector<1x32xf32>
    %180 = arith.addf %178, %179 : vector<1x32xf32>
    %181 = math.rsqrt %180 : vector<1x32xf32>
    %182 = arith.mulf %148, %181 : vector<1x32xf32>
    %183 = arith.mulf %174, %182 : vector<1x32xf32>
    %184 = arith.subf %149, %183 : vector<1x32xf32>
    %185 = tpu.concatenate %182, %182, %182, %182, %182 in 1 : vector<1x32xf32>, vector<1x32xf32>, vector<1x32xf32>, vector<1x32xf32>, vector<1x32xf32> -> vector<1x160xf32>
    %186 = vector.broadcast %185 : vector<1x160xf32> to vector<40x160xf32>
    %187 = arith.mulf %147, %186 : vector<40x160xf32>
    %188 = tpu.concatenate %184, %184, %184, %184, %184 in 1 : vector<1x32xf32>, vector<1x32xf32>, vector<1x32xf32>, vector<1x32xf32>, vector<1x32xf32> -> vector<1x160xf32>
    %189 = vector.broadcast %188 : vector<1x160xf32> to vector<40x160xf32>
    %190 = arith.addf %187, %189 : vector<40x160xf32>
    %191 = vector.extract_strided_slice %190 {offsets = [0, 0], sizes = [8, 160], strides = [1, 1]} : vector<40x160xf32> to vector<8x160xf32>
    %192 = vector.extract_strided_slice %190 {offsets = [8, 0], sizes = [8, 160], strides = [1, 1]} : vector<40x160xf32> to vector<8x160xf32>
    %193 = vector.extract_strided_slice %190 {offsets = [16, 0], sizes = [8, 160], strides = [1, 1]} : vector<40x160xf32> to vector<8x160xf32>
    %194 = vector.extract_strided_slice %190 {offsets = [24, 0], sizes = [8, 160], strides = [1, 1]} : vector<40x160xf32> to vector<8x160xf32>
    %195 = vector.extract_strided_slice %190 {offsets = [32, 0], sizes = [8, 160], strides = [1, 1]} : vector<40x160xf32> to vector<8x160xf32>
    %196 = tpu.concatenate %191, %192, %193, %194, %195 in 1 : vector<8x160xf32>, vector<8x160xf32>, vector<8x160xf32>, vector<8x160xf32>, vector<8x160xf32> -> vector<8x800xf32>
    %c0_32 = arith.constant 0 : index
    %c0_33 = arith.constant 0 : index
    %197 = vector.load %arg9[%c0_32, %c0_33] : memref<800x200xf32, #tpu.memory_space<vmem>>, vector<800x200xf32>
    %cst_34 = arith.constant dense<0.000000e+00> : vector<8x200xf32>
    %198 = tpu.matmul %196, %197, %cst_34 {dimension_numbers = #tpu.dot_dimension_numbers<[1], [0], [0], [1], [0, 0, 1, 1], [], []>} : vector<8x800xf32>, vector<800x200xf32>, vector<8x200xf32> -> vector<8x200xf32>
    %c0_35 = arith.constant 0 : index
    %c0_36 = arith.constant 0 : index
    %199 = vector.load %arg10[%c0_35, %c0_36] : memref<1x200xf32, #tpu.memory_space<vmem>>, vector<1x200xf32>
    %200 = vector.broadcast %199 : vector<1x200xf32> to vector<8x200xf32>
    %201 = arith.addf %198, %200 : vector<8x200xf32>
    %cst_37 = arith.constant 0.000000e+00 : f32
    %202 = vector.broadcast %cst_37 : f32 to vector<8x200xf32>
    %203 = arith.maximumf %201, %202 : vector<8x200xf32>
    %cst_38 = arith.constant dense<0.000000e+00> : vector<200xf32>
    %204 = vector.multi_reduction <add>, %203, %cst_38 [0] : vector<8x200xf32> to vector<200xf32>
    %205 = vector.shape_cast %204 : vector<200xf32> to vector<1x200xf32>
    %cst_39 = arith.constant 1.250000e-01 : f32
    %206 = vector.broadcast %cst_39 : f32 to vector<1x200xf32>
    %207 = arith.mulf %205, %206 : vector<1x200xf32>
    %208 = arith.mulf %203, %203 : vector<8x200xf32>
    %cst_40 = arith.constant dense<0.000000e+00> : vector<200xf32>
    %209 = vector.multi_reduction <add>, %208, %cst_40 [0] : vector<8x200xf32> to vector<200xf32>
    %210 = vector.shape_cast %209 : vector<200xf32> to vector<1x200xf32>
    %cst_41 = arith.constant 1.250000e-01 : f32
    %211 = vector.broadcast %cst_41 : f32 to vector<1x200xf32>
    %212 = arith.mulf %210, %211 : vector<1x200xf32>
    %213 = arith.mulf %207, %207 : vector<1x200xf32>
    %214 = arith.subf %212, %213 : vector<1x200xf32>
    %215 = vector.broadcast %207 : vector<1x200xf32> to vector<8x200xf32>
    %216 = arith.subf %203, %215 : vector<8x200xf32>
    %c0_42 = arith.constant 0 : index
    %c0_43 = arith.constant 0 : index
    %217 = vector.load %arg11[%c0_42, %c0_43] : memref<1x200xf32, #tpu.memory_space<vmem>>, vector<1x200xf32>
    %cst_44 = arith.constant 9.99999974E-6 : f32
    %218 = vector.broadcast %cst_44 : f32 to vector<1x200xf32>
    %219 = arith.addf %214, %218 : vector<1x200xf32>
    %220 = math.rsqrt %219 : vector<1x200xf32>
    %221 = arith.mulf %217, %220 : vector<1x200xf32>
    %222 = vector.broadcast %221 : vector<1x200xf32> to vector<8x200xf32>
    %223 = arith.mulf %216, %222 : vector<8x200xf32>
    %c0_45 = arith.constant 0 : index
    %c0_46 = arith.constant 0 : index
    %224 = vector.load %arg12[%c0_45, %c0_46] : memref<1x200xf32, #tpu.memory_space<vmem>>, vector<1x200xf32>
    %225 = vector.broadcast %224 : vector<1x200xf32> to vector<8x200xf32>
    %226 = arith.addf %223, %225 : vector<8x200xf32>
    %c0_47 = arith.constant 0 : index
    %c0_48 = arith.constant 0 : index
    %227 = vector.load %arg13[%c0_47, %c0_48] : memref<200x128xf32, #tpu.memory_space<vmem>>, vector<200x128xf32>
    %cst_49 = arith.constant dense<0.000000e+00> : vector<8x128xf32>
    %228 = tpu.matmul %226, %227, %cst_49 {dimension_numbers = #tpu.dot_dimension_numbers<[1], [0], [0], [1], [0, 0, 1, 1], [], []>} : vector<8x200xf32>, vector<200x128xf32>, vector<8x128xf32> -> vector<8x128xf32>
    %c0_50 = arith.constant 0 : index
    %c0_51 = arith.constant 0 : index
    %229 = vector.load %arg14[%c0_50, %c0_51] : memref<1x128xf32, #tpu.memory_space<vmem>>, vector<1x128xf32>
    %230 = vector.broadcast %229 : vector<1x128xf32> to vector<8x128xf32>
    %231 = arith.addf %228, %230 : vector<8x128xf32>
    %c0_52 = arith.constant 0 : index
    %c0_53 = arith.constant 0 : index
    %232 = vector.load %arg15[%c0_52, %c0_53] : memref<8x128xf32, #tpu.memory_space<vmem>>, vector<8x128xf32>
    tpu.vector_store %arg15[%c0_52, %c0_53], %231 {strides = array<i32>} : memref<8x128xf32, #tpu.memory_space<vmem>>, vector<8x128xf32>,
    return
  }
}

</mosaic_0001>

<llo_original>
// kernel: tpu_custom_call.1
$region0: #{tpu_custom_call.1}
  #allocation0 [shape = 'u32[]', space=smem, size = 0x4, offset = 0x4, fixed_abs, tag = 'smem constant byte address 0x4 - core index']
  #allocation1 [shape = 'u32[72,128]{1,0:T(1,128)}', space=vmem, size = 0x9000, scoped, tag = 'internal scratch']
  %s0 = inlined_call_operand.vmem [shape: f32[160,40], index: 0, kind: input, shape index: {}]
  %s1 = inlined_call_operand.vmem [shape: f32[200,256], index: 1, kind: input, shape index: {}]
  %s2 = inlined_call_operand.vmem [shape: f32[1,256], index: 2, kind: input, shape index: {}]
  %s3 = inlined_call_operand.vmem [shape: f32[1,16], index: 3, kind: input, shape index: {}]
  %s4 = inlined_call_operand.vmem [shape: f32[1,16], index: 4, kind: input, shape index: {}]
  %s5 = inlined_call_operand.vmem [shape: f32[576,320], index: 5, kind: input, shape index: {}]
  %s6 = inlined_call_operand.vmem [shape: f32[1,320], index: 6, kind: input, shape index: {}]
  %s7 = inlined_call_operand.vmem [shape: f32[1,32], index: 7, kind: input, shape index: {}]
  %s8 = inlined_call_operand.vmem [shape: f32[1,32], index: 8, kind: input, shape index: {}]
  %s9 = inlined_call_operand.vmem [shape: f32[800,200], index: 9, kind: input, shape index: {}]
  %s10 = inlined_call_operand.vmem [shape: f32[1,200], index: 10, kind: input, shape index: {}]
  %s11 = inlined_call_operand.vmem [shape: f32[1,200], index: 11, kind: input, shape index: {}]
  %s12 = inlined_call_operand.vmem [shape: f32[1,200], index: 12, kind: input, shape index: {}]
  %s13 = inlined_call_operand.vmem [shape: f32[200,128], index: 13, kind: input, shape index: {}]
  %s14 = inlined_call_operand.vmem [shape: f32[1,128], index: 14, kind: input, shape index: {}]
  %s15 = inlined_call_operand.hbm [shape: f32[8,128], index: 15, kind: output, shape index: {}]
  %s16 = sld [smem:[#allocation0]]
  $region70: #{tpu_custom_call.1} parent=0
    _
  %s18 = ssub.s32 1, %s16
  %s19 = scalar_select 0, %s18, %s16
  $region1: #{tpu_custom_call.1} parent=0
    #allocation2 [shape = 'u8[4096]{0}', space=vmem, size = 0x1000, scoped, tag = 'output window, operand 0, single buffered']
    #allocation3 [shape = 's32[1]{0}', space=sflag, size = 0x4, scoped, tag = 'scoped memory for tpu_custom_call.1']
    %20 = vsyncpa [#allocation3], 0
    // Predicated region
    $region2: #{tpu_custom_call.1} parent=1 // pred_check
      _
    $region3: #{tpu_custom_call.1} parent=1 // pred_check_branch
      %22 = sbr.rel (0) target = $region5
    $region4: #{tpu_custom_call.1} parent=1 // pred_region
      _
    $region5: #{tpu_custom_call.1} parent=1 // pred_fallthru
      _
    // Predicated region
    $region6: #{tpu_custom_call.1} parent=1 // pred_check
      _
    $region7: #{tpu_custom_call.1} parent=1 // pred_check_branch
      %24 = sbr.rel (0) target = $region9
    $region8: #{tpu_custom_call.1} parent=1 // pred_region
      _
    $region9: #{tpu_custom_call.1} parent=1 // pred_fallthru
      _
    // Predicated region
    $region10: #{tpu_custom_call.1} parent=1 // pred_check
      _
    $region11: #{tpu_custom_call.1} parent=1 // pred_check_branch
      %26 = sbr.rel (0) target = $region13
    $region12: #{tpu_custom_call.1} parent=1 // pred_region
      _
    $region13: #{tpu_custom_call.1} parent=1 // pred_fallthru
      _
    // Predicated region
    $region14: #{tpu_custom_call.1} parent=1 // pred_check
      _
    $region15: #{tpu_custom_call.1} parent=1 // pred_check_branch
      %28 = sbr.rel (0) target = $region17
    $region16: #{tpu_custom_call.1} parent=1 // pred_region
      _
    $region17: #{tpu_custom_call.1} parent=1 // pred_fallthru
      _
    // Predicated region
    $region18: #{tpu_custom_call.1} parent=1 // pred_check
      _
    $region19: #{tpu_custom_call.1} parent=1 // pred_check_branch
      %30 = sbr.rel (0) target = $region21
    $region20: #{tpu_custom_call.1} parent=1 // pred_region
      _
    $region21: #{tpu_custom_call.1} parent=1 // pred_fallthru
      _
    // Predicated region
    $region22: #{tpu_custom_call.1} parent=1 // pred_check
      _
    $region23: #{tpu_custom_call.1} parent=1 // pred_check_branch
      %32 = sbr.rel (0) target = $region25
    $region24: #{tpu_custom_call.1} parent=1 // pred_region
      _
    $region25: #{tpu_custom_call.1} parent=1 // pred_fallthru
      _
    // Predicated region
    $region26: #{tpu_custom_call.1} parent=1 // pred_check
      _
    $region27: #{tpu_custom_call.1} parent=1 // pred_check_branch
      %34 = sbr.rel (0) target = $region29
    $region28: #{tpu_custom_call.1} parent=1 // pred_region
      _
    $region29: #{tpu_custom_call.1} parent=1 // pred_fallthru
      _
    // Predicated region
    $region30: #{tpu_custom_call.1} parent=1 // pred_check
      _
    $region31: #{tpu_custom_call.1} parent=1 // pred_check_branch
      %36 = sbr.rel (0) target = $region33
    $region32: #{tpu_custom_call.1} parent=1 // pred_region
      _
    $region33: #{tpu_custom_call.1} parent=1 // pred_fallthru
      _
    // Predicated region
    $region34: #{tpu_custom_call.1} parent=1 // pred_check
      _
    $region35: #{tpu_custom_call.1} parent=1 // pred_check_branch
      %38 = sbr.rel (0) target = $region37
    $region36: #{tpu_custom_call.1} parent=1 // pred_region
      _
    $region37: #{tpu_custom_call.1} parent=1 // pred_fallthru
      _
    // Predicated region
    $region38: #{tpu_custom_call.1} parent=1 // pred_check
      _
    $region39: #{tpu_custom_call.1} parent=1 // pred_check_branch
      %40 = sbr.rel (0) target = $region41
    $region40: #{tpu_custom_call.1} parent=1 // pred_region
      _
    $region41: #{tpu_custom_call.1} parent=1 // pred_fallthru
      _
    // Predicated region
    $region42: #{tpu_custom_call.1} parent=1 // pred_check
      _
    $region43: #{tpu_custom_call.1} parent=1 // pred_check_branch
      %42 = sbr.rel (0) target = $region45
    $region44: #{tpu_custom_call.1} parent=1 // pred_region
      _
    $region45: #{tpu_custom_call.1} parent=1 // pred_fallthru
      _
    // Predicated region
    $region46: #{tpu_custom_call.1} parent=1 // pred_check
      _
    $region47: #{tpu_custom_call.1} parent=1 // pred_check_branch
      %44 = sbr.rel (0) target = $region49
    $region48: #{tpu_custom_call.1} parent=1 // pred_region
      _
    $region49: #{tpu_custom_call.1} parent=1 // pred_fallthru
      _
    // Predicated region
    $region50: #{tpu_custom_call.1} parent=1 // pred_check
      _
    $region51: #{tpu_custom_call.1} parent=1 // pred_check_branch
      %46 = sbr.rel (0) target = $region53
    $region52: #{tpu_custom_call.1} parent=1 // pred_region
      _
    $region53: #{tpu_custom_call.1} parent=1 // pred_fallthru
      _
    // Predicated region
    $region54: #{tpu_custom_call.1} parent=1 // pred_check
      _
    $region55: #{tpu_custom_call.1} parent=1 // pred_check_branch
      %48 = sbr.rel (0) target = $region57
    $region56: #{tpu_custom_call.1} parent=1 // pred_region
      _
    $region57: #{tpu_custom_call.1} parent=1 // pred_fallthru
      _
    // Predicated region
    $region58: #{tpu_custom_call.1} parent=1 // pred_check
      _
    $region59: #{tpu_custom_call.1} parent=1 // pred_check_branch
      %50 = sbr.rel (0) target = $region61
    $region60: #{tpu_custom_call.1} parent=1 // pred_region
      _
    $region61: #{tpu_custom_call.1} parent=1 // pred_fallthru
      _
    %v51 = vld [vmem:[%s0] sm:$0xff]
    %v52 = vld [vmem:[%s0 + $0x8] sm:$0xff]
    %v53 = vld [vmem:[%s0 + $0x10] sm:$0xff]
    %v54 = vld [vmem:[%s0 + $0x18] sm:$0xff]
    %v55 = vld [vmem:[%s0 + $0x20] sm:$0xff]
    %v56 = vld [vmem:[%s0 + $0x28] sm:$0xff]
    %v57 = vld [vmem:[%s0 + $0x30] sm:$0xff]
    %v58 = vld [vmem:[%s0 + $0x38] sm:$0xff]
    %v59 = vld [vmem:[%s0 + $0x40] sm:$0xff]
    %v60 = vld [vmem:[%s0 + $0x48] sm:$0xff]
    %v61 = vld [vmem:[%s0 + $0x50] sm:$0xff]
    %v62 = vld [vmem:[%s0 + $0x58] sm:$0xff]
    %v63 = vld [vmem:[%s0 + $0x60] sm:$0xff]
    %v64 = vld [vmem:[%s0 + $0x68] sm:$0xff]
    %v65 = vld [vmem:[%s0 + $0x70] sm:$0xff]
    %v66 = vld [vmem:[%s0 + $0x78] sm:$0xff]
    %v67 = vld [vmem:[%s0 + $0x80] sm:$0xff]
    %v68 = vld [vmem:[%s0 + $0x88] sm:$0xff]
    %v69 = vld [vmem:[%s0 + $0x90] sm:$0xff]
    %v70 = vld [vmem:[%s0 + $0x98] sm:$0xff]
    %87 = vrot.lane.b32.xlu0 %v52, 40
    %v88 = vpop.permute.xlu0 %87
    %89 = vrot.lane.b32.xlu0 %v53, 40
    %v90 = vpop.permute.xlu0 %89
    %91 = vrot.lane.b32.xlu0 %v54, 40
    %v92 = vpop.permute.xlu0 %91
    %93 = vrot.lane.b32.xlu0 %v55, 40
    %v94 = vpop.permute.xlu0 %93
    %95 = vrot.lane.b32.xlu0 %v56, 40
    %v96 = vpop.permute.xlu0 %95
    %97 = vrot.lane.b32.xlu0 %v57, 40
    %v98 = vpop.permute.xlu0 %97
    %99 = vrot.lane.b32.xlu0 %v58, 40
    %v100 = vpop.permute.xlu0 %99
    %101 = vrot.lane.b32.xlu0 %v59, 40
    %v102 = vpop.permute.xlu0 %101
    %103 = vrot.lane.b32.xlu0 %v60, 40
    %v104 = vpop.permute.xlu0 %103
    %105 = vrot.lane.b32.xlu0 %v61, 40
    %v106 = vpop.permute.xlu0 %105
    %107 = vrot.lane.b32.xlu0 %v62, 40
    %v108 = vpop.permute.xlu0 %107
    %109 = vrot.lane.b32.xlu0 %v63, 40
    %v110 = vpop.permute.xlu0 %109
    %111 = vrot.lane.b32.xlu0 %v64, 40
    %v112 = vpop.permute.xlu0 %111
    %113 = vrot.lane.b32.xlu0 %v65, 40
    %v114 = vpop.permute.xlu0 %113
    %115 = vrot.lane.b32.xlu0 %v66, 40
    %v116 = vpop.permute.xlu0 %115
    %117 = vrot.lane.b32.xlu0 %v67, 40
    %v118 = vpop.permute.xlu0 %117
    %136 = vrot.lane.b32.xlu0 %v53, 80
    %v137 = vpop.permute.xlu0 %136
    %138 = vrot.lane.b32.xlu0 %v54, 80
    %v139 = vpop.permute.xlu0 %138
    %140 = vrot.lane.b32.xlu0 %v55, 80
    %v141 = vpop.permute.xlu0 %140
    %142 = vrot.lane.b32.xlu0 %v56, 80
    %v143 = vpop.permute.xlu0 %142
    %144 = vrot.lane.b32.xlu0 %v57, 80
    %v145 = vpop.permute.xlu0 %144
    %146 = vrot.lane.b32.xlu0 %v58, 80
    %v147 = vpop.permute.xlu0 %146
    %148 = vrot.lane.b32.xlu0 %v59, 80
    %v149 = vpop.permute.xlu0 %148
    %150 = vrot.lane.b32.xlu0 %v60, 80
    %v151 = vpop.permute.xlu0 %150
    %152 = vrot.lane.b32.xlu0 %v61, 80
    %v153 = vpop.permute.xlu0 %152
    %154 = vrot.lane.b32.xlu0 %v62, 80
    %v155 = vpop.permute.xlu0 %154
    %156 = vrot.lane.b32.xlu0 %v63, 80
    %v157 = vpop.permute.xlu0 %156
    %158 = vrot.lane.b32.xlu0 %v64, 80
    %v159 = vpop.permute.xlu0 %158
    %160 = vrot.lane.b32.xlu0 %v65, 80
    %v161 = vpop.permute.xlu0 %160
    %162 = vrot.lane.b32.xlu0 %v66, 80
    %v163 = vpop.permute.xlu0 %162
    %164 = vrot.lane.b32.xlu0 %v67, 80
    %v165 = vpop.permute.xlu0 %164
    %166 = vrot.lane.b32.xlu0 %v68, 80
    %v167 = vpop.permute.xlu0 %166
    %185 = vrot.lane.b32.xlu0 %v54, 120
    %v186 = vpop.permute.xlu0 %185
    %187 = vrot.lane.b32.xlu0 %v55, 120
    %v188 = vpop.permute.xlu0 %187
    %189 = vrot.lane.b32.xlu0 %v56, 120
    %v190 = vpop.permute.xlu0 %189
    %191 = vrot.lane.b32.xlu0 %v57, 120
    %v192 = vpop.permute.xlu0 %191
    %193 = vrot.lane.b32.xlu0 %v58, 120
    %v194 = vpop.permute.xlu0 %193
    %195 = vrot.lane.b32.xlu0 %v59, 120
    %v196 = vpop.permute.xlu0 %195
    %197 = vrot.lane.b32.xlu0 %v60, 120
    %v198 = vpop.permute.xlu0 %197
    %199 = vrot.lane.b32.xlu0 %v61, 120
    %v200 = vpop.permute.xlu0 %199
    %201 = vrot.lane.b32.xlu0 %v62, 120
    %v202 = vpop.permute.xlu0 %201
    %203 = vrot.lane.b32.xlu0 %v63, 120
    %v204 = vpop.permute.xlu0 %203
    %205 = vrot.lane.b32.xlu0 %v64, 120
    %v206 = vpop.permute.xlu0 %205
    %207 = vrot.lane.b32.xlu0 %v65, 120
    %v208 = vpop.permute.xlu0 %207
    %209 = vrot.lane.b32.xlu0 %v66, 120
    %v210 = vpop.permute.xlu0 %209
    %211 = vrot.lane.b32.xlu0 %v67, 120
    %v212 = vpop.permute.xlu0 %211
    %213 = vrot.lane.b32.xlu0 %v68, 120
    %v214 = vpop.permute.xlu0 %213
    %215 = vrot.lane.b32.xlu0 %v69, 120
    %v216 = vpop.permute.xlu0 %215
    %234 = vrot.lane.b32.xlu0 %v55, 32
    %v235 = vpop.permute.xlu0 %234
    %236 = vrot.lane.b32.xlu0 %v56, 32
    %v237 = vpop.permute.xlu0 %236
    %238 = vrot.lane.b32.xlu0 %v57, 32
    %v239 = vpop.permute.xlu0 %238
    %240 = vrot.lane.b32.xlu0 %v58, 32
    %v241 = vpop.permute.xlu0 %240
    %242 = vrot.lane.b32.xlu0 %v59, 32
    %v243 = vpop.permute.xlu0 %242
    %244 = vrot.lane.b32.xlu0 %v60, 32
    %v245 = vpop.permute.xlu0 %244
    %246 = vrot.lane.b32.xlu0 %v61, 32
    %v247 = vpop.permute.xlu0 %246
    %248 = vrot.lane.b32.xlu0 %v62, 32
    %v249 = vpop.permute.xlu0 %248
    %250 = vrot.lane.b32.xlu0 %v63, 32
    %v251 = vpop.permute.xlu0 %250
    %252 = vrot.lane.b32.xlu0 %v64, 32
    %v253 = vpop.permute.xlu0 %252
    %254 = vrot.lane.b32.xlu0 %v65, 32
    %v255 = vpop.permute.xlu0 %254
    %256 = vrot.lane.b32.xlu0 %v66, 32
    %v257 = vpop.permute.xlu0 %256
    %258 = vrot.lane.b32.xlu0 %v67, 32
    %v259 = vpop.permute.xlu0 %258
    %260 = vrot.lane.b32.xlu0 %v68, 32
    %v261 = vpop.permute.xlu0 %260
    %262 = vrot.lane.b32.xlu0 %v69, 32
    %v263 = vpop.permute.xlu0 %262
    %264 = vrot.lane.b32.xlu0 %v70, 32
    %v265 = vpop.permute.xlu0 %264
    %vm282 = vcmask 326656
    %v283 = vsel %vm282, %v51, %v88
    %v284 = vsel %vm282, %v52, %v90
    %v285 = vsel %vm282, %v53, %v92
    %v286 = vsel %vm282, %v54, %v94
    %v287 = vsel %vm282, %v55, %v96
    %v288 = vsel %vm282, %v56, %v98
    %v289 = vsel %vm282, %v57, %v100
    %v290 = vsel %vm282, %v58, %v102
    %v291 = vsel %vm282, %v59, %v104
    %v292 = vsel %vm282, %v60, %v106
    %v293 = vsel %vm282, %v61, %v108
    %v294 = vsel %vm282, %v62, %v110
    %v295 = vsel %vm282, %v63, %v112
    %v296 = vsel %vm282, %v64, %v114
    %v297 = vsel %vm282, %v65, %v116
    %v298 = vsel %vm282, %v66, %v118
    %vm299 = vcmask 654336
    %v300 = vsel %vm299, %v283, %v137
    %v301 = vsel %vm299, %v284, %v139
    %v302 = vsel %vm299, %v285, %v141
    %v303 = vsel %vm299, %v286, %v143
    %v304 = vsel %vm299, %v287, %v145
    %v305 = vsel %vm299, %v288, %v147
    %v306 = vsel %vm299, %v289, %v149
    %v307 = vsel %vm299, %v290, %v151
    %v308 = vsel %vm299, %v291, %v153
    %v309 = vsel %vm299, %v292, %v155
    %v310 = vsel %vm299, %v293, %v157
    %v311 = vsel %vm299, %v294, %v159
    %v312 = vsel %vm299, %v295, %v161
    %v313 = vsel %vm299, %v296, %v163
    %v314 = vsel %vm299, %v297, %v165
    %v315 = vsel %vm299, %v298, %v167
    %vm316 = vcmask 982016
    %v317 = vsel %vm316, %v300, %v186
    %v318 = vsel %vm316, %v301, %v188
    %v319 = vsel %vm316, %v302, %v190
    %v320 = vsel %vm316, %v303, %v192
    %v321 = vsel %vm316, %v304, %v194
    %v322 = vsel %vm316, %v305, %v196
    %v323 = vsel %vm316, %v306, %v198
    %v324 = vsel %vm316, %v307, %v200
    %v325 = vsel %vm316, %v308, %v202
    %v326 = vsel %vm316, %v309, %v204
    %v327 = vsel %vm316, %v310, %v206
    %v328 = vsel %vm316, %v311, %v208
    %v329 = vsel %vm316, %v312, %v210
    %v330 = vsel %vm316, %v313, %v212
    %v331 = vsel %vm316, %v314, %v214
    %v332 = vsel %vm316, %v315, %v216
    %vm333 = vcmask 261120
    %v334 = vsel %vm333, %v186, %v235
    %v335 = vsel %vm333, %v188, %v237
    %v336 = vsel %vm333, %v190, %v239
    %v337 = vsel %vm333, %v192, %v241
    %v338 = vsel %vm333, %v194, %v243
    %v339 = vsel %vm333, %v196, %v245
    %v340 = vsel %vm333, %v198, %v247
    %v341 = vsel %vm333, %v200, %v249
    %v342 = vsel %vm333, %v202, %v251
    %v343 = vsel %vm333, %v204, %v253
    %v344 = vsel %vm333, %v206, %v255
    %v345 = vsel %vm333, %v208, %v257
    %v346 = vsel %vm333, %v210, %v259
    %v347 = vsel %vm333, %v212, %v261
    %v348 = vsel %vm333, %v214, %v263
    %v349 = vsel %vm333, %v216, %v265
    %v350 = vld [vmem:[%s1] sm:$0xff]
    %v351 = vld [vmem:[%s1 + $0x8] sm:$0xff]
    %v352 = vld [vmem:[%s1 + $0x10] sm:$0xff]
    %v353 = vld [vmem:[%s1 + $0x18] sm:$0xff]
    %v354 = vld [vmem:[%s1 + $0x20] sm:$0xff]
    %v355 = vld [vmem:[%s1 + $0x28] sm:$0xff]
    %v356 = vld [vmem:[%s1 + $0x30] sm:$0xff]
    %v357 = vld [vmem:[%s1 + $0x38] sm:$0xff]
    %v358 = vld [vmem:[%s1 + $0x40] sm:$0xff]
    %v359 = vld [vmem:[%s1 + $0x48] sm:$0xff]
    %v360 = vld [vmem:[%s1 + $0x50] sm:$0xff]
    %v361 = vld [vmem:[%s1 + $0x58] sm:$0xff]
    %v362 = vld [vmem:[%s1 + $0x60] sm:$0xff]
    %v363 = vld [vmem:[%s1 + $0x68] sm:$0xff]
    %v364 = vld [vmem:[%s1 + $0x70] sm:$0xff]
    %v365 = vld [vmem:[%s1 + $0x78] sm:$0xff]
    %v366 = vld [vmem:[%s1 + $0x80] sm:$0xff]
    %v367 = vld [vmem:[%s1 + $0x88] sm:$0xff]
    %v368 = vld [vmem:[%s1 + $0x90] sm:$0xff]
    %v369 = vld [vmem:[%s1 + $0x98] sm:$0xff]
    %v370 = vld [vmem:[%s1 + $0xa0] sm:$0xff]
    %v371 = vld [vmem:[%s1 + $0xa8] sm:$0xff]
    %v372 = vld [vmem:[%s1 + $0xb0] sm:$0xff]
    %v373 = vld [vmem:[%s1 + $0xb8] sm:$0xff]
    %v374 = vld [vmem:[%s1 + $0xc0] sm:$0xff]
    %v375 = vld [vmem:[%s1 + $0xc8] sm:$0xff]
    %v376 = vld [vmem:[%s1 + $0xd0] sm:$0xff]
    %v377 = vld [vmem:[%s1 + $0xd8] sm:$0xff]
    %v378 = vld [vmem:[%s1 + $0xe0] sm:$0xff]
    %v379 = vld [vmem:[%s1 + $0xe8] sm:$0xff]
    %v380 = vld [vmem:[%s1 + $0xf0] sm:$0xff]
    %v381 = vld [vmem:[%s1 + $0xf8] sm:$0xff]
    %v382 = vld [vmem:[%s1 + $0x100] sm:$0xff]
    %v383 = vld [vmem:[%s1 + $0x108] sm:$0xff]
    %v384 = vld [vmem:[%s1 + $0x110] sm:$0xff]
    %v385 = vld [vmem:[%s1 + $0x118] sm:$0xff]
    %v386 = vld [vmem:[%s1 + $0x120] sm:$0xff]
    %v387 = vld [vmem:[%s1 + $0x128] sm:$0xff]
    %v388 = vld [vmem:[%s1 + $0x130] sm:$0xff]
    %v389 = vld [vmem:[%s1 + $0x138] sm:$0xff]
    %v390 = vld [vmem:[%s1 + $0x140] sm:$0xff]
    %v391 = vld [vmem:[%s1 + $0x148] sm:$0xff]
    %v392 = vld [vmem:[%s1 + $0x150] sm:$0xff]
    %v393 = vld [vmem:[%s1 + $0x158] sm:$0xff]
    %v394 = vld [vmem:[%s1 + $0x160] sm:$0xff]
    %v395 = vld [vmem:[%s1 + $0x168] sm:$0xff]
    %v396 = vld [vmem:[%s1 + $0x170] sm:$0xff]
    %v397 = vld [vmem:[%s1 + $0x178] sm:$0xff]
    %v398 = vld [vmem:[%s1 + $0x180] sm:$0xff]
    %v399 = vld [vmem:[%s1 + $0x188] sm:$0xff]
    %v400 = vld [vmem:[%s2] sm:$0x3]
    %v402 = vperm.slane %v400, 0
    %v403 = vperm.slane %v400, 1
    %vm406 = vcmask 588800
    %v408 = vsel %vm406, %v334, 0
    %v411 = vsel %vm406, %v335, 0
    %v414 = vsel %vm406, %v336, 0
    %v417 = vsel %vm406, %v337, 0
    %v420 = vsel %vm406, %v338, 0
    %v423 = vsel %vm406, %v339, 0
    %v426 = vsel %vm406, %v340, 0
    %v429 = vsel %vm406, %v341, 0
    %v432 = vsel %vm406, %v342, 0
    %v435 = vsel %vm406, %v343, 0
    %v438 = vsel %vm406, %v344, 0
    %v441 = vsel %vm406, %v345, 0
    %v444 = vsel %vm406, %v346, 0
    %v447 = vsel %vm406, %v347, 0
    %v450 = vsel %vm406, %v348, 0
    %v453 = vsel %vm406, %v349, 0
    %455 = vmatpush.msra.mxu0 %v380
    %456 = vmatpush.msra.mxu0 %v378
    %457 = vmatpush.msra.mxu0 %v376
    %458 = vmatpush.msra.mxu0 %v374
    %459 = vmatpush.msra.mxu0 %v372
    %460 = vmatpush.msra.mxu0 %v370
    %461 = vmatpush.msra.mxu0 %v368
    %462 = vmatpush.msra.mxu0 %v366
    %463 = vmatpush.msra.mxu0 %v364
    %464 = vmatpush.msra.mxu0 %v362
    %465 = vmatpush.msra.mxu0 %v360
    %466 = vmatpush.msra.mxu0 %v358
    %467 = vmatpush.msra.mxu0 %v356
    %468 = vmatpush.msra.mxu0 %v354
    %469 = vmatpush.msra.mxu0 %v352
    %470 = vmatpush.msra.mxu0 %v350
    %471 = vmatmul.f32.gmra.mxu0 %v317
    %v472 = vpop.f32.mrf.mxu0
    %v473 = vadd.f32 %v402, %v472
    %474 = vmatmul.f32.gmra.mxu0 %v318
    %v475 = vpop.f32.mrf.mxu0
    %v476 = vadd.f32 %v402, %v475
    %477 = vmatmul.f32.gmra.mxu0 %v319
    %v478 = vpop.f32.mrf.mxu0
    %v479 = vadd.f32 %v402, %v478
    %480 = vmatmul.f32.gmra.mxu0 %v320
    %v481 = vpop.f32.mrf.mxu0
    %v482 = vadd.f32 %v402, %v481
    %483 = vmatmul.f32.gmra.mxu0 %v321
    %v484 = vpop.f32.mrf.mxu0
    %v485 = vadd.f32 %v402, %v484
    %486 = vmatmul.f32.gmra.mxu0 %v322
    %v487 = vpop.f32.mrf.mxu0
    %v488 = vadd.f32 %v402, %v487
    %489 = vmatmul.f32.gmra.mxu0 %v323
    %v490 = vpop.f32.mrf.mxu0
    %v491 = vadd.f32 %v402, %v490
    %492 = vmatmul.f32.gmra.mxu0 %v324
    %v493 = vpop.f32.mrf.mxu0
    %v494 = vadd.f32 %v402, %v493
    %495 = vmatmul.f32.gmra.mxu0 %v325
    %v496 = vpop.f32.mrf.mxu0
    %v497 = vadd.f32 %v402, %v496
    %498 = vmatmul.f32.gmra.mxu0 %v326
    %v499 = vpop.f32.mrf.mxu0
    %v500 = vadd.f32 %v402, %v499
    %501 = vmatmul.f32.gmra.mxu0 %v327
    %v502 = vpop.f32.mrf.mxu0
    %v503 = vadd.f32 %v402, %v502
    %504 = vmatmul.f32.gmra.mxu0 %v328
    %v505 = vpop.f32.mrf.mxu0
    %v506 = vadd.f32 %v402, %v505
    %507 = vmatmul.f32.gmra.mxu0 %v329
    %v508 = vpop.f32.mrf.mxu0
    %v509 = vadd.f32 %v402, %v508
    %510 = vmatmul.f32.gmra.mxu0 %v330
    %v511 = vpop.f32.mrf.mxu0
    %v512 = vadd.f32 %v402, %v511
    %513 = vmatmul.f32.gmra.mxu0 %v331
    %v514 = vpop.f32.mrf.mxu0
    %v515 = vadd.f32 %v402, %v514
    %516 = vmatmul.f32.gmra.mxu0 %v332
    %v517 = vpop.f32.mrf.mxu0
    %v518 = vadd.f32 %v402, %v517
    %519 = vdwg.mxu0
    %520 = vmatpush.msra.mxu0 0.0
    %521 = vmatpush.msra.mxu0 0.0
    %522 = vmatpush.msra.mxu0 0.0
    %523 = vmatpush.msra.mxu0 0.0
    %524 = vmatpush.msra.mxu0 0.0
    %525 = vmatpush.msra.mxu0 0.0
    %526 = vmatpush.msra.mxu0 0.0
    %527 = vmatpush.msra.mxu0 %v398
    %528 = vmatpush.msra.mxu0 %v396
    %529 = vmatpush.msra.mxu0 %v394
    %530 = vmatpush.msra.mxu0 %v392
    %531 = vmatpush.msra.mxu0 %v390
    %532 = vmatpush.msra.mxu0 %v388
    %533 = vmatpush.msra.mxu0 %v386
    %534 = vmatpush.msra.mxu0 %v384
    %535 = vmatpush.msra.mxu0 %v382
    %536 = vmatmul.f32.gmra.mxu0 %v408
    %v537 = vpop.f32.mrf.mxu0
    %v538 = vadd.f32 %v473, %v537
    %539 = vmatmul.f32.gmra.mxu0 %v411
    %v540 = vpop.f32.mrf.mxu0
    %v541 = vadd.f32 %v476, %v540
    %542 = vmatmul.f32.gmra.mxu0 %v414
    %v543 = vpop.f32.mrf.mxu0
    %v544 = vadd.f32 %v479, %v543
    %545 = vmatmul.f32.gmra.mxu0 %v417
    %v546 = vpop.f32.mrf.mxu0
    %v547 = vadd.f32 %v482, %v546
    %548 = vmatmul.f32.gmra.mxu0 %v420
    %v549 = vpop.f32.mrf.mxu0
    %v550 = vadd.f32 %v485, %v549
    %551 = vmatmul.f32.gmra.mxu0 %v423
    %v552 = vpop.f32.mrf.mxu0
    %v553 = vadd.f32 %v488, %v552
    %554 = vmatmul.f32.gmra.mxu0 %v426
    %v555 = vpop.f32.mrf.mxu0
    %v556 = vadd.f32 %v491, %v555
    %557 = vmatmul.f32.gmra.mxu0 %v429
    %v558 = vpop.f32.mrf.mxu0
    %v559 = vadd.f32 %v494, %v558
    %560 = vmatmul.f32.gmra.mxu0 %v432
    %v561 = vpop.f32.mrf.mxu0
    %v562 = vadd.f32 %v497, %v561
    %563 = vmatmul.f32.gmra.mxu0 %v435
    %v564 = vpop.f32.mrf.mxu0
    %v565 = vadd.f32 %v500, %v564
    %566 = vmatmul.f32.gmra.mxu0 %v438
    %v567 = vpop.f32.mrf.mxu0
    %v568 = vadd.f32 %v503, %v567
    %569 = vmatmul.f32.gmra.mxu0 %v441
    %v570 = vpop.f32.mrf.mxu0
    %v571 = vadd.f32 %v506, %v570
    %572 = vmatmul.f32.gmra.mxu0 %v444
    %v573 = vpop.f32.mrf.mxu0
    %v574 = vadd.f32 %v509, %v573
    %575 = vmatmul.f32.gmra.mxu0 %v447
    %v576 = vpop.f32.mrf.mxu0
    %v577 = vadd.f32 %v512, %v576
    %578 = vmatmul.f32.gmra.mxu0 %v450
    %v579 = vpop.f32.mrf.mxu0
    %v580 = vadd.f32 %v515, %v579
    %581 = vmatmul.f32.gmra.mxu0 %v453
    %v582 = vpop.f32.mrf.mxu0
    %v583 = vadd.f32 %v518, %v582
    %584 = vdwg.mxu0
    %585 = vmatpush.msra.mxu0 %v381
    %586 = vmatpush.msra.mxu0 %v379
    %587 = vmatpush.msra.mxu0 %v377
    %588 = vmatpush.msra.mxu0 %v375
    %589 = vmatpush.msra.mxu0 %v373
    %590 = vmatpush.msra.mxu0 %v371
    %591 = vmatpush.msra.mxu0 %v369
    %592 = vmatpush.msra.mxu0 %v367
    %593 = vmatpush.msra.mxu0 %v365
    %594 = vmatpush.msra.mxu0 %v363
    %595 = vmatpush.msra.mxu0 %v361
    %596 = vmatpush.msra.mxu0 %v359
    %597 = vmatpush.msra.mxu0 %v357
    %598 = vmatpush.msra.mxu0 %v355
    %599 = vmatpush.msra.mxu0 %v353
    %600 = vmatpush.msra.mxu0 %v351
    %601 = vmatmul.f32.gmra.mxu0 %v317
    %v602 = vpop.f32.mrf.mxu0
    %v603 = vadd.f32 %v403, %v602
    %604 = vmatmul.f32.gmra.mxu0 %v318
    %v605 = vpop.f32.mrf.mxu0
    %v606 = vadd.f32 %v403, %v605
    %607 = vmatmul.f32.gmra.mxu0 %v319
    %v608 = vpop.f32.mrf.mxu0
    %v609 = vadd.f32 %v403, %v608
    %610 = vmatmul.f32.gmra.mxu0 %v320
    %v611 = vpop.f32.mrf.mxu0
    %v612 = vadd.f32 %v403, %v611
    %613 = vmatmul.f32.gmra.mxu0 %v321
    %v614 = vpop.f32.mrf.mxu0
    %v615 = vadd.f32 %v403, %v614
    %616 = vmatmul.f32.gmra.mxu0 %v322
    %v617 = vpop.f32.mrf.mxu0
    %v618 = vadd.f32 %v403, %v617
    %619 = vmatmul.f32.gmra.mxu0 %v323
    %v620 = vpop.f32.mrf.mxu0
    %v621 = vadd.f32 %v403, %v620
    %622 = vmatmul.f32.gmra.mxu0 %v324
    %v623 = vpop.f32.mrf.mxu0
    %v624 = vadd.f32 %v403, %v623
    %625 = vmatmul.f32.gmra.mxu0 %v325
    %v626 = vpop.f32.mrf.mxu0
    %v627 = vadd.f32 %v403, %v626
    %628 = vmatmul.f32.gmra.mxu0 %v326
    %v629 = vpop.f32.mrf.mxu0
    %v630 = vadd.f32 %v403, %v629
    %631 = vmatmul.f32.gmra.mxu0 %v327
    %v632 = vpop.f32.mrf.mxu0
    %v633 = vadd.f32 %v403, %v632
    %634 = vmatmul.f32.gmra.mxu0 %v328
    %v635 = vpop.f32.mrf.mxu0
    %v636 = vadd.f32 %v403, %v635
    %637 = vmatmul.f32.gmra.mxu0 %v329
    %v638 = vpop.f32.mrf.mxu0
    %v639 = vadd.f32 %v403, %v638
    %640 = vmatmul.f32.gmra.mxu0 %v330
    %v641 = vpop.f32.mrf.mxu0
    %v642 = vadd.f32 %v403, %v641
    %643 = vmatmul.f32.gmra.mxu0 %v331
    %v644 = vpop.f32.mrf.mxu0
    %v645 = vadd.f32 %v403, %v644
    %646 = vmatmul.f32.gmra.mxu0 %v332
    %v647 = vpop.f32.mrf.mxu0
    %v648 = vadd.f32 %v403, %v647
    %649 = vdwg.mxu0
    %650 = vmatpush.msra.mxu0 0.0
    %651 = vmatpush.msra.mxu0 0.0
    %652 = vmatpush.msra.mxu0 0.0
    %653 = vmatpush.msra.mxu0 0.0
    %654 = vmatpush.msra.mxu0 0.0
    %655 = vmatpush.msra.mxu0 0.0
    %656 = vmatpush.msra.mxu0 0.0
    %657 = vmatpush.msra.mxu0 %v399
    %658 = vmatpush.msra.mxu0 %v397
    %659 = vmatpush.msra.mxu0 %v395
    %660 = vmatpush.msra.mxu0 %v393
    %661 = vmatpush.msra.mxu0 %v391
    %662 = vmatpush.msra.mxu0 %v389
    %663 = vmatpush.msra.mxu0 %v387
    %664 = vmatpush.msra.mxu0 %v385
    %665 = vmatpush.msra.mxu0 %v383
    %666 = vmatmul.f32.gmra.mxu0 %v408
    %v667 = vpop.f32.mrf.mxu0
    %v668 = vadd.f32 %v603, %v667
    %669 = vmatmul.f32.gmra.mxu0 %v411
    %v670 = vpop.f32.mrf.mxu0
    %v671 = vadd.f32 %v606, %v670
    %672 = vmatmul.f32.gmra.mxu0 %v414
    %v673 = vpop.f32.mrf.mxu0
    %v674 = vadd.f32 %v609, %v673
    %675 = vmatmul.f32.gmra.mxu0 %v417
    %v676 = vpop.f32.mrf.mxu0
    %v677 = vadd.f32 %v612, %v676
    %678 = vmatmul.f32.gmra.mxu0 %v420
    %v679 = vpop.f32.mrf.mxu0
    %v680 = vadd.f32 %v615, %v679
    %681 = vmatmul.f32.gmra.mxu0 %v423
    %v682 = vpop.f32.mrf.mxu0
    %v683 = vadd.f32 %v618, %v682
    %684 = vmatmul.f32.gmra.mxu0 %v426
    %v685 = vpop.f32.mrf.mxu0
    %v686 = vadd.f32 %v621, %v685
    %687 = vmatmul.f32.gmra.mxu0 %v429
    %v688 = vpop.f32.mrf.mxu0
    %v689 = vadd.f32 %v624, %v688
    %690 = vmatmul.f32.gmra.mxu0 %v432
    %v691 = vpop.f32.mrf.mxu0
    %v692 = vadd.f32 %v627, %v691
    %693 = vmatmul.f32.gmra.mxu0 %v435
    %v694 = vpop.f32.mrf.mxu0
    %v695 = vadd.f32 %v630, %v694
    %696 = vmatmul.f32.gmra.mxu0 %v438
    %v697 = vpop.f32.mrf.mxu0
    %v698 = vadd.f32 %v633, %v697
    %699 = vmatmul.f32.gmra.mxu0 %v441
    %v700 = vpop.f32.mrf.mxu0
    %v701 = vadd.f32 %v636, %v700
    %702 = vmatmul.f32.gmra.mxu0 %v444
    %v703 = vpop.f32.mrf.mxu0
    %v704 = vadd.f32 %v639, %v703
    %705 = vmatmul.f32.gmra.mxu0 %v447
    %v706 = vpop.f32.mrf.mxu0
    %v707 = vadd.f32 %v642, %v706
    %708 = vmatmul.f32.gmra.mxu0 %v450
    %v709 = vpop.f32.mrf.mxu0
    %v710 = vadd.f32 %v645, %v709
    %711 = vmatmul.f32.gmra.mxu0 %v453
    %v712 = vpop.f32.mrf.mxu0
    %v713 = vadd.f32 %v648, %v712
    %714 = vdwg.mxu0
    %731 = vrot.lane.b32.xlu0 %v538, 112
    %v732 = vpop.permute.xlu0 %731
    %733 = vrot.lane.b32.xlu0 %v541, 112
    %v734 = vpop.permute.xlu0 %733
    %735 = vrot.lane.b32.xlu0 %v544, 112
    %v736 = vpop.permute.xlu0 %735
    %737 = vrot.lane.b32.xlu0 %v547, 112
    %v738 = vpop.permute.xlu0 %737
    %739 = vrot.lane.b32.xlu0 %v550, 112
    %v740 = vpop.permute.xlu0 %739
    %741 = vrot.lane.b32.xlu0 %v553, 112
    %v742 = vpop.permute.xlu0 %741
    %743 = vrot.lane.b32.xlu0 %v556, 112
    %v744 = vpop.permute.xlu0 %743
    %745 = vrot.lane.b32.xlu0 %v559, 112
    %v746 = vpop.permute.xlu0 %745
    %747 = vrot.lane.b32.xlu0 %v562, 112
    %v748 = vpop.permute.xlu0 %747
    %749 = vrot.lane.b32.xlu0 %v565, 112
    %v750 = vpop.permute.xlu0 %749
    %751 = vrot.lane.b32.xlu0 %v568, 112
    %v752 = vpop.permute.xlu0 %751
    %753 = vrot.lane.b32.xlu0 %v571, 112
    %v754 = vpop.permute.xlu0 %753
    %755 = vrot.lane.b32.xlu0 %v574, 112
    %v756 = vpop.permute.xlu0 %755
    %757 = vrot.lane.b32.xlu0 %v577, 112
    %v758 = vpop.permute.xlu0 %757
    %759 = vrot.lane.b32.xlu0 %v580, 112
    %v760 = vpop.permute.xlu0 %759
    %761 = vrot.lane.b32.xlu0 %v583, 112
    %v762 = vpop.permute.xlu0 %761
    %779 = vrot.lane.b32.xlu0 %v538, 96
    %v780 = vpop.permute.xlu0 %779
    %781 = vrot.lane.b32.xlu0 %v541, 96
    %v782 = vpop.permute.xlu0 %781
    %783 = vrot.lane.b32.xlu0 %v544, 96
    %v784 = vpop.permute.xlu0 %783
    %785 = vrot.lane.b32.xlu0 %v547, 96
    %v786 = vpop.permute.xlu0 %785
    %787 = vrot.lane.b32.xlu0 %v550, 96
    %v788 = vpop.permute.xlu0 %787
    %789 = vrot.lane.b32.xlu0 %v553, 96
    %v790 = vpop.permute.xlu0 %789
    %791 = vrot.lane.b32.xlu0 %v556, 96
    %v792 = vpop.permute.xlu0 %791
    %793 = vrot.lane.b32.xlu0 %v559, 96
    %v794 = vpop.permute.xlu0 %793
    %795 = vrot.lane.b32.xlu0 %v562, 96
    %v796 = vpop.permute.xlu0 %795
    %797 = vrot.lane.b32.xlu0 %v565, 96
    %v798 = vpop.permute.xlu0 %797
    %799 = vrot.lane.b32.xlu0 %v568, 96
    %v800 = vpop.permute.xlu0 %799
    %801 = vrot.lane.b32.xlu0 %v571, 96
    %v802 = vpop.permute.xlu0 %801
    %803 = vrot.lane.b32.xlu0 %v574, 96
    %v804 = vpop.permute.xlu0 %803
    %805 = vrot.lane.b32.xlu0 %v577, 96
    %v806 = vpop.permute.xlu0 %805
    %807 = vrot.lane.b32.xlu0 %v580, 96
    %v808 = vpop.permute.xlu0 %807
    %809 = vrot.lane.b32.xlu0 %v583, 96
    %v810 = vpop.permute.xlu0 %809
    %827 = vrot.lane.b32.xlu0 %v538, 80
    %v828 = vpop.permute.xlu0 %827
    %829 = vrot.lane.b32.xlu0 %v541, 80
    %v830 = vpop.permute.xlu0 %829
    %831 = vrot.lane.b32.xlu0 %v544, 80
    %v832 = vpop.permute.xlu0 %831
    %833 = vrot.lane.b32.xlu0 %v547, 80
    %v834 = vpop.permute.xlu0 %833
    %835 = vrot.lane.b32.xlu0 %v550, 80
    %v836 = vpop.permute.xlu0 %835
    %837 = vrot.lane.b32.xlu0 %v553, 80
    %v838 = vpop.permute.xlu0 %837
    %839 = vrot.lane.b32.xlu0 %v556, 80
    %v840 = vpop.permute.xlu0 %839
    %841 = vrot.lane.b32.xlu0 %v559, 80
    %v842 = vpop.permute.xlu0 %841
    %843 = vrot.lane.b32.xlu0 %v562, 80
    %v844 = vpop.permute.xlu0 %843
    %845 = vrot.lane.b32.xlu0 %v565, 80
    %v846 = vpop.permute.xlu0 %845
    %847 = vrot.lane.b32.xlu0 %v568, 80
    %v848 = vpop.permute.xlu0 %847
    %849 = vrot.lane.b32.xlu0 %v571, 80
    %v850 = vpop.permute.xlu0 %849
    %851 = vrot.lane.b32.xlu0 %v574, 80
    %v852 = vpop.permute.xlu0 %851
    %853 = vrot.lane.b32.xlu0 %v577, 80
    %v854 = vpop.permute.xlu0 %853
    %855 = vrot.lane.b32.xlu0 %v580, 80
    %v856 = vpop.permute.xlu0 %855
    %857 = vrot.lane.b32.xlu0 %v583, 80
    %v858 = vpop.permute.xlu0 %857
    %891 = vrot.lane.b32.xlu0 %v668, 64
    %v892 = vpop.permute.xlu0 %891
    %893 = vrot.lane.b32.xlu0 %v671, 64
    %v894 = vpop.permute.xlu0 %893
    %895 = vrot.lane.b32.xlu0 %v674, 64
    %v896 = vpop.permute.xlu0 %895
    %897 = vrot.lane.b32.xlu0 %v677, 64
    %v898 = vpop.permute.xlu0 %897
    %899 = vrot.lane.b32.xlu0 %v680, 64
    %v900 = vpop.permute.xlu0 %899
    %901 = vrot.lane.b32.xlu0 %v683, 64
    %v902 = vpop.permute.xlu0 %901
    %903 = vrot.lane.b32.xlu0 %v686, 64
    %v904 = vpop.permute.xlu0 %903
    %905 = vrot.lane.b32.xlu0 %v689, 64
    %v906 = vpop.permute.xlu0 %905
    %907 = vrot.lane.b32.xlu0 %v692, 64
    %v908 = vpop.permute.xlu0 %907
    %909 = vrot.lane.b32.xlu0 %v695, 64
    %v910 = vpop.permute.xlu0 %909
    %911 = vrot.lane.b32.xlu0 %v698, 64
    %v912 = vpop.permute.xlu0 %911
    %913 = vrot.lane.b32.xlu0 %v701, 64
    %v914 = vpop.permute.xlu0 %913
    %915 = vrot.lane.b32.xlu0 %v704, 64
    %v916 = vpop.permute.xlu0 %915
    %917 = vrot.lane.b32.xlu0 %v707, 64
    %v918 = vpop.permute.xlu0 %917
    %919 = vrot.lane.b32.xlu0 %v710, 64
    %v920 = vpop.permute.xlu0 %919
    %921 = vrot.lane.b32.xlu0 %v713, 64
    %v922 = vpop.permute.xlu0 %921
    %939 = vrot.lane.b32.xlu0 %v668, 48
    %v940 = vpop.permute.xlu0 %939
    %941 = vrot.lane.b32.xlu0 %v671, 48
    %v942 = vpop.permute.xlu0 %941
    %943 = vrot.lane.b32.xlu0 %v674, 48
    %v944 = vpop.permute.xlu0 %943
    %945 = vrot.lane.b32.xlu0 %v677, 48
    %v946 = vpop.permute.xlu0 %945
    %947 = vrot.lane.b32.xlu0 %v680, 48
    %v948 = vpop.permute.xlu0 %947
    %949 = vrot.lane.b32.xlu0 %v683, 48
    %v950 = vpop.permute.xlu0 %949
    %951 = vrot.lane.b32.xlu0 %v686, 48
    %v952 = vpop.permute.xlu0 %951
    %953 = vrot.lane.b32.xlu0 %v689, 48
    %v954 = vpop.permute.xlu0 %953
    %955 = vrot.lane.b32.xlu0 %v692, 48
    %v956 = vpop.permute.xlu0 %955
    %957 = vrot.lane.b32.xlu0 %v695, 48
    %v958 = vpop.permute.xlu0 %957
    %959 = vrot.lane.b32.xlu0 %v698, 48
    %v960 = vpop.permute.xlu0 %959
    %961 = vrot.lane.b32.xlu0 %v701, 48
    %v962 = vpop.permute.xlu0 %961
    %963 = vrot.lane.b32.xlu0 %v704, 48
    %v964 = vpop.permute.xlu0 %963
    %965 = vrot.lane.b32.xlu0 %v707, 48
    %v966 = vpop.permute.xlu0 %965
    %967 = vrot.lane.b32.xlu0 %v710, 48
    %v968 = vpop.permute.xlu0 %967
    %969 = vrot.lane.b32.xlu0 %v713, 48
    %v970 = vpop.permute.xlu0 %969
    %987 = vrot.lane.b32.xlu0 %v668, 32
    %v988 = vpop.permute.xlu0 %987
    %989 = vrot.lane.b32.xlu0 %v671, 32
    %v990 = vpop.permute.xlu0 %989
    %991 = vrot.lane.b32.xlu0 %v674, 32
    %v992 = vpop.permute.xlu0 %991
    %993 = vrot.lane.b32.xlu0 %v677, 32
    %v994 = vpop.permute.xlu0 %993
    %995 = vrot.lane.b32.xlu0 %v680, 32
    %v996 = vpop.permute.xlu0 %995
    %997 = vrot.lane.b32.xlu0 %v683, 32
    %v998 = vpop.permute.xlu0 %997
    %999 = vrot.lane.b32.xlu0 %v686, 32
    %v1000 = vpop.permute.xlu0 %999
    %1001 = vrot.lane.b32.xlu0 %v689, 32
    %v1002 = vpop.permute.xlu0 %1001
    %1003 = vrot.lane.b32.xlu0 %v692, 32
    %v1004 = vpop.permute.xlu0 %1003
    %1005 = vrot.lane.b32.xlu0 %v695, 32
    %v1006 = vpop.permute.xlu0 %1005
    %1007 = vrot.lane.b32.xlu0 %v698, 32
    %v1008 = vpop.permute.xlu0 %1007
    %1009 = vrot.lane.b32.xlu0 %v701, 32
    %v1010 = vpop.permute.xlu0 %1009
    %1011 = vrot.lane.b32.xlu0 %v704, 32
    %v1012 = vpop.permute.xlu0 %1011
    %1013 = vrot.lane.b32.xlu0 %v707, 32
    %v1014 = vpop.permute.xlu0 %1013
    %1015 = vrot.lane.b32.xlu0 %v710, 32
    %v1016 = vpop.permute.xlu0 %1015
    %1017 = vrot.lane.b32.xlu0 %v713, 32
    %v1018 = vpop.permute.xlu0 %1017
    %1035 = vrot.lane.b32.xlu0 %v668, 16
    %v1036 = vpop.permute.xlu0 %1035
    %1037 = vrot.lane.b32.xlu0 %v671, 16
    %v1038 = vpop.permute.xlu0 %1037
    %1039 = vrot.lane.b32.xlu0 %v674, 16
    %v1040 = vpop.permute.xlu0 %1039
    %1041 = vrot.lane.b32.xlu0 %v677, 16
    %v1042 = vpop.permute.xlu0 %1041
    %1043 = vrot.lane.b32.xlu0 %v680, 16
    %v1044 = vpop.permute.xlu0 %1043
    %1045 = vrot.lane.b32.xlu0 %v683, 16
    %v1046 = vpop.permute.xlu0 %1045
    %1047 = vrot.lane.b32.xlu0 %v686, 16
    %v1048 = vpop.permute.xlu0 %1047
    %1049 = vrot.lane.b32.xlu0 %v689, 16
    %v1050 = vpop.permute.xlu0 %1049
    %1051 = vrot.lane.b32.xlu0 %v692, 16
    %v1052 = vpop.permute.xlu0 %1051
    %1053 = vrot.lane.b32.xlu0 %v695, 16
    %v1054 = vpop.permute.xlu0 %1053
    %1055 = vrot.lane.b32.xlu0 %v698, 16
    %v1056 = vpop.permute.xlu0 %1055
    %1057 = vrot.lane.b32.xlu0 %v701, 16
    %v1058 = vpop.permute.xlu0 %1057
    %1059 = vrot.lane.b32.xlu0 %v704, 16
    %v1060 = vpop.permute.xlu0 %1059
    %1061 = vrot.lane.b32.xlu0 %v707, 16
    %v1062 = vpop.permute.xlu0 %1061
    %1063 = vrot.lane.b32.xlu0 %v710, 16
    %v1064 = vpop.permute.xlu0 %1063
    %1065 = vrot.lane.b32.xlu0 %v713, 16
    %v1066 = vpop.permute.xlu0 %1065
    %vm1083 = vcmask 130048
    %v1084 = vsel %vm1083, %v538, %v732
    %v1085 = vsel %vm1083, %v541, %v734
    %v1086 = vsel %vm1083, %v544, %v736
    %v1087 = vsel %vm1083, %v547, %v738
    %v1088 = vsel %vm1083, %v550, %v740
    %v1089 = vsel %vm1083, %v553, %v742
    %v1090 = vsel %vm1083, %v556, %v744
    %v1091 = vsel %vm1083, %v559, %v746
    %v1092 = vsel %vm1083, %v562, %v748
    %v1093 = vsel %vm1083, %v565, %v750
    %v1094 = vsel %vm1083, %v568, %v752
    %v1095 = vsel %vm1083, %v571, %v754
    %v1096 = vsel %vm1083, %v574, %v756
    %v1097 = vsel %vm1083, %v577, %v758
    %v1098 = vsel %vm1083, %v580, %v760
    %v1099 = vsel %vm1083, %v583, %v762
    %v1100 = vsel %vm333, %v1084, %v780
    %v1101 = vsel %vm333, %v1085, %v782
    %v1102 = vsel %vm333, %v1086, %v784
    %v1103 = vsel %vm333, %v1087, %v786
    %v1104 = vsel %vm333, %v1088, %v788
    %v1105 = vsel %vm333, %v1089, %v790
    %v1106 = vsel %vm333, %v1090, %v792
    %v1107 = vsel %vm333, %v1091, %v794
    %v1108 = vsel %vm333, %v1092, %v796
    %v1109 = vsel %vm333, %v1093, %v798
    %v1110 = vsel %vm333, %v1094, %v800
    %v1111 = vsel %vm333, %v1095, %v802
    %v1112 = vsel %vm333, %v1096, %v804
    %v1113 = vsel %vm333, %v1097, %v806
    %v1114 = vsel %vm333, %v1098, %v808
    %v1115 = vsel %vm333, %v1099, %v810
    %vm1116 = vcmask 392192
    %v1117 = vsel %vm1116, %v1100, %v828
    %v1118 = vsel %vm1116, %v1101, %v830
    %v1119 = vsel %vm1116, %v1102, %v832
    %v1120 = vsel %vm1116, %v1103, %v834
    %v1121 = vsel %vm1116, %v1104, %v836
    %v1122 = vsel %vm1116, %v1105, %v838
    %v1123 = vsel %vm1116, %v1106, %v840
    %v1124 = vsel %vm1116, %v1107, %v842
    %v1125 = vsel %vm1116, %v1108, %v844
    %v1126 = vsel %vm1116, %v1109, %v846
    %v1127 = vsel %vm1116, %v1110, %v848
    %v1128 = vsel %vm1116, %v1111, %v850
    %v1129 = vsel %vm1116, %v1112, %v852
    %v1130 = vsel %vm1116, %v1113, %v854
    %v1131 = vsel %vm1116, %v1114, %v856
    %v1132 = vsel %vm1116, %v1115, %v858
    %vm1133 = vcmask 523264
    %v1134 = vsel %vm1133, %v1117, %v892
    %v1135 = vsel %vm1133, %v1118, %v894
    %v1136 = vsel %vm1133, %v1119, %v896
    %v1137 = vsel %vm1133, %v1120, %v898
    %v1138 = vsel %vm1133, %v1121, %v900
    %v1139 = vsel %vm1133, %v1122, %v902
    %v1140 = vsel %vm1133, %v1123, %v904
    %v1141 = vsel %vm1133, %v1124, %v906
    %v1142 = vsel %vm1133, %v1125, %v908
    %v1143 = vsel %vm1133, %v1126, %v910
    %v1144 = vsel %vm1133, %v1127, %v912
    %v1145 = vsel %vm1133, %v1128, %v914
    %v1146 = vsel %vm1133, %v1129, %v916
    %v1147 = vsel %vm1133, %v1130, %v918
    %v1148 = vsel %vm1133, %v1131, %v920
    %v1149 = vsel %vm1133, %v1132, %v922
    %v1150 = vsel %vm299, %v1134, %v940
    %v1151 = vsel %vm299, %v1135, %v942
    %v1152 = vsel %vm299, %v1136, %v944
    %v1153 = vsel %vm299, %v1137, %v946
    %v1154 = vsel %vm299, %v1138, %v948
    %v1155 = vsel %vm299, %v1139, %v950
    %v1156 = vsel %vm299, %v1140, %v952
    %v1157 = vsel %vm299, %v1141, %v954
    %v1158 = vsel %vm299, %v1142, %v956
    %v1159 = vsel %vm299, %v1143, %v958
    %v1160 = vsel %vm299, %v1144, %v960
    %v1161 = vsel %vm299, %v1145, %v962
    %v1162 = vsel %vm299, %v1146, %v964
    %v1163 = vsel %vm299, %v1147, %v966
    %v1164 = vsel %vm299, %v1148, %v968
    %v1165 = vsel %vm299, %v1149, %v970
    %vm1166 = vcmask 785408
    %v1167 = vsel %vm1166, %v1150, %v988
    %v1168 = vsel %vm1166, %v1151, %v990
    %v1169 = vsel %vm1166, %v1152, %v992
    %v1170 = vsel %vm1166, %v1153, %v994
    %v1171 = vsel %vm1166, %v1154, %v996
    %v1172 = vsel %vm1166, %v1155, %v998
    %v1173 = vsel %vm1166, %v1156, %v1000
    %v1174 = vsel %vm1166, %v1157, %v1002
    %v1175 = vsel %vm1166, %v1158, %v1004
    %v1176 = vsel %vm1166, %v1159, %v1006
    %v1177 = vsel %vm1166, %v1160, %v1008
    %v1178 = vsel %vm1166, %v1161, %v1010
    %v1179 = vsel %vm1166, %v1162, %v1012
    %v1180 = vsel %vm1166, %v1163, %v1014
    %v1181 = vsel %vm1166, %v1164, %v1016
    %v1182 = vsel %vm1166, %v1165, %v1018
    %vm1183 = vcmask 916480
    %v1184 = vsel %vm1183, %v1167, %v1036
    %v1185 = vsel %vm1183, %v1168, %v1038
    %v1186 = vsel %vm1183, %v1169, %v1040
    %v1187 = vsel %vm1183, %v1170, %v1042
    %v1188 = vsel %vm1183, %v1171, %v1044
    %v1189 = vsel %vm1183, %v1172, %v1046
    %v1190 = vsel %vm1183, %v1173, %v1048
    %v1191 = vsel %vm1183, %v1174, %v1050
    %v1192 = vsel %vm1183, %v1175, %v1052
    %v1193 = vsel %vm1183, %v1176, %v1054
    %v1194 = vsel %vm1183, %v1177, %v1056
    %v1195 = vsel %vm1183, %v1178, %v1058
    %v1196 = vsel %vm1183, %v1179, %v1060
    %v1197 = vsel %vm1183, %v1180, %v1062
    %v1198 = vsel %vm1183, %v1181, %v1064
    %v1199 = vsel %vm1183, %v1182, %v1066
    %1200 = vrot.lane.b32.xlu0 %v538, 64
    %v1201 = vpop.permute.xlu0 %1200
    %1202 = vrot.lane.b32.xlu0 %v541, 64
    %v1203 = vpop.permute.xlu0 %1202
    %1204 = vrot.lane.b32.xlu0 %v544, 64
    %v1205 = vpop.permute.xlu0 %1204
    %1206 = vrot.lane.b32.xlu0 %v547, 64
    %v1207 = vpop.permute.xlu0 %1206
    %1208 = vrot.lane.b32.xlu0 %v550, 64
    %v1209 = vpop.permute.xlu0 %1208
    %1210 = vrot.lane.b32.xlu0 %v553, 64
    %v1211 = vpop.permute.xlu0 %1210
    %1212 = vrot.lane.b32.xlu0 %v556, 64
    %v1213 = vpop.permute.xlu0 %1212
    %1214 = vrot.lane.b32.xlu0 %v559, 64
    %v1215 = vpop.permute.xlu0 %1214
    %1216 = vrot.lane.b32.xlu0 %v562, 64
    %v1217 = vpop.permute.xlu0 %1216
    %1218 = vrot.lane.b32.xlu0 %v565, 64
    %v1219 = vpop.permute.xlu0 %1218
    %1220 = vrot.lane.b32.xlu0 %v568, 64
    %v1221 = vpop.permute.xlu0 %1220
    %1222 = vrot.lane.b32.xlu0 %v571, 64
    %v1223 = vpop.permute.xlu0 %1222
    %1224 = vrot.lane.b32.xlu0 %v574, 64
    %v1225 = vpop.permute.xlu0 %1224
    %1226 = vrot.lane.b32.xlu0 %v577, 64
    %v1227 = vpop.permute.xlu0 %1226
    %1228 = vrot.lane.b32.xlu0 %v580, 64
    %v1229 = vpop.permute.xlu0 %1228
    %1230 = vrot.lane.b32.xlu0 %v583, 64
    %v1231 = vpop.permute.xlu0 %1230
    %v1248 = vsel %vm1083, %v732, %v780
    %v1249 = vsel %vm1083, %v734, %v782
    %v1250 = vsel %vm1083, %v736, %v784
    %v1251 = vsel %vm1083, %v738, %v786
    %v1252 = vsel %vm1083, %v740, %v788
    %v1253 = vsel %vm1083, %v742, %v790
    %v1254 = vsel %vm1083, %v744, %v792
    %v1255 = vsel %vm1083, %v746, %v794
    %v1256 = vsel %vm1083, %v748, %v796
    %v1257 = vsel %vm1083, %v750, %v798
    %v1258 = vsel %vm1083, %v752, %v800
    %v1259 = vsel %vm1083, %v754, %v802
    %v1260 = vsel %vm1083, %v756, %v804
    %v1261 = vsel %vm1083, %v758, %v806
    %v1262 = vsel %vm1083, %v760, %v808
    %v1263 = vsel %vm1083, %v762, %v810
    %v1264 = vsel %vm333, %v1248, %v828
    %v1265 = vsel %vm333, %v1249, %v830
    %v1266 = vsel %vm333, %v1250, %v832
    %v1267 = vsel %vm333, %v1251, %v834
    %v1268 = vsel %vm333, %v1252, %v836
    %v1269 = vsel %vm333, %v1253, %v838
    %v1270 = vsel %vm333, %v1254, %v840
    %v1271 = vsel %vm333, %v1255, %v842
    %v1272 = vsel %vm333, %v1256, %v844
    %v1273 = vsel %vm333, %v1257, %v846
    %v1274 = vsel %vm333, %v1258, %v848
    %v1275 = vsel %vm333, %v1259, %v850
    %v1276 = vsel %vm333, %v1260, %v852
    %v1277 = vsel %vm333, %v1261, %v854
    %v1278 = vsel %vm333, %v1262, %v856
    %v1279 = vsel %vm333, %v1263, %v858
    %v1280 = vsel %vm1116, %v1264, %v1201
    %v1281 = vsel %vm1116, %v1265, %v1203
    %v1282 = vsel %vm1116, %v1266, %v1205
    %v1283 = vsel %vm1116, %v1267, %v1207
    %v1284 = vsel %vm1116, %v1268, %v1209
    %v1285 = vsel %vm1116, %v1269, %v1211
    %v1286 = vsel %vm1116, %v1270, %v1213
    %v1287 = vsel %vm1116, %v1271, %v1215
    %v1288 = vsel %vm1116, %v1272, %v1217
    %v1289 = vsel %vm1116, %v1273, %v1219
    %v1290 = vsel %vm1116, %v1274, %v1221
    %v1291 = vsel %vm1116, %v1275, %v1223
    %v1292 = vsel %vm1116, %v1276, %v1225
    %v1293 = vsel %vm1116, %v1277, %v1227
    %v1294 = vsel %vm1116, %v1278, %v1229
    %v1295 = vsel %vm1116, %v1279, %v1231
    %v1296 = vsel %vm1133, %v1280, %v940
    %v1297 = vsel %vm1133, %v1281, %v942
    %v1298 = vsel %vm1133, %v1282, %v944
    %v1299 = vsel %vm1133, %v1283, %v946
    %v1300 = vsel %vm1133, %v1284, %v948
    %v1301 = vsel %vm1133, %v1285, %v950
    %v1302 = vsel %vm1133, %v1286, %v952
    %v1303 = vsel %vm1133, %v1287, %v954
    %v1304 = vsel %vm1133, %v1288, %v956
    %v1305 = vsel %vm1133, %v1289, %v958
    %v1306 = vsel %vm1133, %v1290, %v960
    %v1307 = vsel %vm1133, %v1291, %v962
    %v1308 = vsel %vm1133, %v1292, %v964
    %v1309 = vsel %vm1133, %v1293, %v966
    %v1310 = vsel %vm1133, %v1294, %v968
    %v1311 = vsel %vm1133, %v1295, %v970
    %v1312 = vsel %vm299, %v1296, %v988
    %v1313 = vsel %vm299, %v1297, %v990
    %v1314 = vsel %vm299, %v1298, %v992
    %v1315 = vsel %vm299, %v1299, %v994
    %v1316 = vsel %vm299, %v1300, %v996
    %v1317 = vsel %vm299, %v1301, %v998
    %v1318 = vsel %vm299, %v1302, %v1000
    %v1319 = vsel %vm299, %v1303, %v1002
    %v1320 = vsel %vm299, %v1304, %v1004
    %v1321 = vsel %vm299, %v1305, %v1006
    %v1322 = vsel %vm299, %v1306, %v1008
    %v1323 = vsel %vm299, %v1307, %v1010
    %v1324 = vsel %vm299, %v1308, %v1012
    %v1325 = vsel %vm299, %v1309, %v1014
    %v1326 = vsel %vm299, %v1310, %v1016
    %v1327 = vsel %vm299, %v1311, %v1018
    %v1328 = vsel %vm1166, %v1312, %v1036
    %v1329 = vsel %vm1166, %v1313, %v1038
    %v1330 = vsel %vm1166, %v1314, %v1040
    %v1331 = vsel %vm1166, %v1315, %v1042
    %v1332 = vsel %vm1166, %v1316, %v1044
    %v1333 = vsel %vm1166, %v1317, %v1046
    %v1334 = vsel %vm1166, %v1318, %v1048
    %v1335 = vsel %vm1166, %v1319, %v1050
    %v1336 = vsel %vm1166, %v1320, %v1052
    %v1337 = vsel %vm1166, %v1321, %v1054
    %v1338 = vsel %vm1166, %v1322, %v1056
    %v1339 = vsel %vm1166, %v1323, %v1058
    %v1340 = vsel %vm1166, %v1324, %v1060
    %v1341 = vsel %vm1166, %v1325, %v1062
    %v1342 = vsel %vm1166, %v1326, %v1064
    %v1343 = vsel %vm1166, %v1327, %v1066
    %v1344 = vsel %vm1183, %v1328, %v668
    %v1345 = vsel %vm1183, %v1329, %v671
    %v1346 = vsel %vm1183, %v1330, %v674
    %v1347 = vsel %vm1183, %v1331, %v677
    %v1348 = vsel %vm1183, %v1332, %v680
    %v1349 = vsel %vm1183, %v1333, %v683
    %v1350 = vsel %vm1183, %v1334, %v686
    %v1351 = vsel %vm1183, %v1335, %v689
    %v1352 = vsel %vm1183, %v1336, %v692
    %v1353 = vsel %vm1183, %v1337, %v695
    %v1354 = vsel %vm1183, %v1338, %v698
    %v1355 = vsel %vm1183, %v1339, %v701
    %v1356 = vsel %vm1183, %v1340, %v704
    %v1357 = vsel %vm1183, %v1341, %v707
    %v1358 = vsel %vm1183, %v1342, %v710
    %v1359 = vsel %vm1183, %v1343, %v713
    %v1360 = vmax.f32 %v1184, %v1344
    %v1361 = vmax.f32 %v1185, %v1345
    %v1362 = vmax.f32 %v1186, %v1346
    %v1363 = vmax.f32 %v1187, %v1347
    %v1364 = vmax.f32 %v1188, %v1348
    %v1365 = vmax.f32 %v1189, %v1349
    %v1366 = vmax.f32 %v1190, %v1350
    %v1367 = vmax.f32 %v1191, %v1351
    %v1368 = vmax.f32 %v1192, %v1352
    %v1369 = vmax.f32 %v1193, %v1353
    %v1370 = vmax.f32 %v1194, %v1354
    %v1371 = vmax.f32 %v1195, %v1355
    %v1372 = vmax.f32 %v1196, %v1356
    %v1373 = vmax.f32 %v1197, %v1357
    %v1374 = vmax.f32 %v1198, %v1358
    %v1375 = vmax.f32 %v1199, %v1359
    %v1376 = vmax.f32 %v1360, %v1361
    %v1377 = vmax.f32 %v1362, %v1363
    %v1378 = vmax.f32 %v1364, %v1365
    %v1379 = vmax.f32 %v1366, %v1367
    %v1380 = vmax.f32 %v1368, %v1369
    %v1381 = vmax.f32 %v1370, %v1371
    %v1382 = vmax.f32 %v1372, %v1373
    %v1383 = vmax.f32 %v1374, %v1375
    %v1384 = vmax.f32 %v1376, 0.0
    %v1385 = vmax.f32 %v1377, 0.0
    %v1386 = vmax.f32 %v1378, 0.0
    %v1387 = vmax.f32 %v1379, 0.0
    %v1388 = vmax.f32 %v1380, 0.0
    %v1389 = vmax.f32 %v1381, 0.0
    %v1390 = vmax.f32 %v1382, 0.0
    %v1391 = vmax.f32 %v1383, 0.0
    %v1392 = vld [vmem:[%s3] sm:$0x1]
    %v1393 = vld [vmem:[%s4] sm:$0x1]
    %v1394 = vadd.f32 %v1384, %v1385
    %v1395 = vadd.f32 %v1394, %v1386
    %v1396 = vadd.f32 %v1395, %v1387
    %v1397 = vadd.f32 %v1396, %v1388
    %v1398 = vadd.f32 %v1397, %v1389
    %v1399 = vadd.f32 %v1398, %v1390
    %v1400 = vadd.f32 %v1399, %v1391
    %v1401 = vrot.slane %v1400, 4
    %v1402 = vadd.f32 %v1400, %v1401
    %v1403 = vrot.slane %v1402, 2
    %v1404 = vadd.f32 %v1402, %v1403
    %v1405 = vrot.slane %v1404, 1
    %v1406 = vadd.f32 %v1404, %v1405
    %1408 = vrot.lane.b32.xlu0 %v1406, 112
    %v1409 = vpop.permute.xlu0 %1408
    %v1411 = vadd.f32 %v1406, %v1409
    %1412 = vrot.lane.b32.xlu0 %v1406, 96
    %v1413 = vpop.permute.xlu0 %1412
    %v1415 = vadd.f32 %v1411, %v1413
    %1416 = vrot.lane.b32.xlu0 %v1406, 80
    %v1417 = vpop.permute.xlu0 %1416
    %v1419 = vadd.f32 %v1415, %v1417
    %1420 = vrot.lane.b32.xlu0 %v1406, 64
    %v1421 = vpop.permute.xlu0 %1420
    %v1423 = vadd.f32 %v1419, %v1421
    %1424 = vrot.lane.b32.xlu0 %v1406, 48
    %v1425 = vpop.permute.xlu0 %1424
    %v1427 = vadd.f32 %v1423, %v1425
    %1428 = vrot.lane.b32.xlu0 %v1406, 32
    %v1429 = vpop.permute.xlu0 %1428
    %v1431 = vadd.f32 %v1427, %v1429
    %1432 = vrot.lane.b32.xlu0 %v1406, 16
    %v1433 = vpop.permute.xlu0 %1432
    %v1435 = vadd.f32 %v1431, %v1433
    %v1436 = vmul.f32 %v1384, %v1384
    %v1437 = vmul.f32 %v1385, %v1385
    %v1438 = vmul.f32 %v1386, %v1386
    %v1439 = vmul.f32 %v1387, %v1387
    %v1440 = vmul.f32 %v1388, %v1388
    %v1441 = vmul.f32 %v1389, %v1389
    %v1442 = vmul.f32 %v1390, %v1390
    %v1443 = vmul.f32 %v1391, %v1391
    %v1444 = vadd.f32 %v1436, %v1437
    %v1445 = vadd.f32 %v1444, %v1438
    %v1446 = vadd.f32 %v1445, %v1439
    %v1447 = vadd.f32 %v1446, %v1440
    %v1448 = vadd.f32 %v1447, %v1441
    %v1449 = vadd.f32 %v1448, %v1442
    %v1450 = vadd.f32 %v1449, %v1443
    %v1451 = vrot.slane %v1450, 4
    %v1452 = vadd.f32 %v1450, %v1451
    %v1453 = vrot.slane %v1452, 2
    %v1454 = vadd.f32 %v1452, %v1453
    %v1455 = vrot.slane %v1454, 1
    %v1456 = vadd.f32 %v1454, %v1455
    %1458 = vrot.lane.b32.xlu0 %v1456, 112
    %v1459 = vpop.permute.xlu0 %1458
    %v1461 = vadd.f32 %v1456, %v1459
    %1462 = vrot.lane.b32.xlu0 %v1456, 96
    %v1463 = vpop.permute.xlu0 %1462
    %v1465 = vadd.f32 %v1461, %v1463
    %1466 = vrot.lane.b32.xlu0 %v1456, 80
    %v1467 = vpop.permute.xlu0 %1466
    %v1469 = vadd.f32 %v1465, %v1467
    %1470 = vrot.lane.b32.xlu0 %v1456, 64
    %v1471 = vpop.permute.xlu0 %1470
    %v1473 = vadd.f32 %v1469, %v1471
    %1474 = vrot.lane.b32.xlu0 %v1456, 48
    %v1475 = vpop.permute.xlu0 %1474
    %v1477 = vadd.f32 %v1473, %v1475
    %1478 = vrot.lane.b32.xlu0 %v1456, 32
    %v1479 = vpop.permute.xlu0 %1478
    %v1481 = vadd.f32 %v1477, %v1479
    %1482 = vrot.lane.b32.xlu0 %v1456, 16
    %v1483 = vpop.permute.xlu0 %1482
    %v1485 = vadd.f32 %v1481, %v1483
    %v1486 = vmul.f32 %v1435, 0.001953125
    %v1487 = vmul.f32 %v1485, 0.001953125
    %v1488 = vmul.f32 %v1486, %v1486
    %v1489 = vsub.f32 %v1487, %v1488
    %v1490 = vadd.f32 %v1489, 1e-05
    %v1491 = vrsqrt.pop %v1490
    %v1492 = vmul.f32 %v1491, %v1490
    %v1493 = vmul.f32 %v1492, %v1491
    %v1494 = vmul.f32 0.5, %v1493
    %v1495 = vsub.f32 1.5, %v1494
    %v1496 = vmul.f32 %v1491, %v1495
    %vm1497 = vweird.f32 %v1490
    %vm1498 = vweird.f32 %v1491
    %vm1499 = vmor %vm1497, %vm1498
    %v1500 = vsel %vm1499, %v1491, %v1496
    %v1501 = vmul.f32 %v1392, %v1500
    %v1502 = vmul.f32 %v1486, %v1501
    %v1503 = vsub.f32 %v1393, %v1502
    %v1505 = vperm.slane %v1501, 0
    %1506 = vrot.lane.b32.xlu0 %v1505, 16
    %v1507 = vpop.permute.xlu0 %1506
    %1509 = vrot.lane.b32.xlu0 %v1505, 32
    %v1510 = vpop.permute.xlu0 %1509
    %1512 = vrot.lane.b32.xlu0 %v1505, 48
    %v1513 = vpop.permute.xlu0 %1512
    %1515 = vrot.lane.b32.xlu0 %v1505, 64
    %v1516 = vpop.permute.xlu0 %1515
    %1518 = vrot.lane.b32.xlu0 %v1505, 80
    %v1519 = vpop.permute.xlu0 %1518
    %1521 = vrot.lane.b32.xlu0 %v1505, 96
    %v1522 = vpop.permute.xlu0 %1521
    %1524 = vrot.lane.b32.xlu0 %v1505, 112
    %v1525 = vpop.permute.xlu0 %1524
    %v1527 = vsel %vm1083, %v1501, %v1507
    %v1528 = vsel %vm333, %v1527, %v1510
    %v1529 = vsel %vm1116, %v1528, %v1513
    %v1530 = vsel %vm1133, %v1529, %v1516
    %v1531 = vsel %vm299, %v1530, %v1519
    %v1532 = vsel %vm1166, %v1531, %v1522
    %v1533 = vsel %vm1183, %v1532, %v1525
    %v1534 = vperm.slane %v1533, 0
    %v1535 = vmul.f32 %v1384, %v1534
    %v1536 = vmul.f32 %v1385, %v1534
    %v1537 = vmul.f32 %v1386, %v1534
    %v1538 = vmul.f32 %v1387, %v1534
    %v1539 = vmul.f32 %v1388, %v1534
    %v1540 = vmul.f32 %v1389, %v1534
    %v1541 = vmul.f32 %v1390, %v1534
    %v1542 = vmul.f32 %v1391, %v1534
    %v1544 = vperm.slane %v1503, 0
    %1545 = vrot.lane.b32.xlu0 %v1544, 16
    %v1546 = vpop.permute.xlu0 %1545
    %1548 = vrot.lane.b32.xlu0 %v1544, 32
    %v1549 = vpop.permute.xlu0 %1548
    %1551 = vrot.lane.b32.xlu0 %v1544, 48
    %v1552 = vpop.permute.xlu0 %1551
    %1554 = vrot.lane.b32.xlu0 %v1544, 64
    %v1555 = vpop.permute.xlu0 %1554
    %1557 = vrot.lane.b32.xlu0 %v1544, 80
    %v1558 = vpop.permute.xlu0 %1557
    %1560 = vrot.lane.b32.xlu0 %v1544, 96
    %v1561 = vpop.permute.xlu0 %1560
    %1563 = vrot.lane.b32.xlu0 %v1544, 112
    %v1564 = vpop.permute.xlu0 %1563
    %v1566 = vsel %vm1083, %v1503, %v1546
    %v1567 = vsel %vm333, %v1566, %v1549
    %v1568 = vsel %vm1116, %v1567, %v1552
    %v1569 = vsel %vm1133, %v1568, %v1555
    %v1570 = vsel %vm299, %v1569, %v1558
    %v1571 = vsel %vm1166, %v1570, %v1561
    %v1572 = vsel %vm1183, %v1571, %v1564
    %v1573 = vperm.slane %v1572, 0
    %v1574 = vadd.f32 %v1535, %v1573
    %v1575 = vadd.f32 %v1536, %v1573
    %v1576 = vadd.f32 %v1537, %v1573
    %v1577 = vadd.f32 %v1538, %v1573
    %v1578 = vadd.f32 %v1539, %v1573
    %v1579 = vadd.f32 %v1540, %v1573
    %v1580 = vadd.f32 %v1541, %v1573
    %v1581 = vadd.f32 %v1542, %v1573
    %1590 = vrot.lane.b32.xlu0 %v1574, 32
    %v1591 = vpop.permute.xlu0 %1590
    %1592 = vrot.lane.b32.xlu0 %v1575, 32
    %v1593 = vpop.permute.xlu0 %1592
    %1594 = vrot.lane.b32.xlu0 %v1576, 32
    %v1595 = vpop.permute.xlu0 %1594
    %1596 = vrot.lane.b32.xlu0 %v1577, 32
    %v1597 = vpop.permute.xlu0 %1596
    %1598 = vrot.lane.b32.xlu0 %v1578, 32
    %v1599 = vpop.permute.xlu0 %1598
    %1600 = vrot.lane.b32.xlu0 %v1579, 32
    %v1601 = vpop.permute.xlu0 %1600
    %1602 = vrot.lane.b32.xlu0 %v1580, 32
    %v1603 = vpop.permute.xlu0 %1602
    %1604 = vrot.lane.b32.xlu0 %v1581, 32
    %v1605 = vpop.permute.xlu0 %1604
    %v1614 = vsel %vm333, 0.0, %v1591
    %v1615 = vsel %vm333, 0.0, %v1593
    %v1616 = vsel %vm333, 0.0, %v1595
    %v1617 = vsel %vm333, 0.0, %v1597
    %v1618 = vsel %vm333, 0.0, %v1599
    %v1619 = vsel %vm333, 0.0, %v1601
    %v1620 = vsel %vm333, 0.0, %v1603
    %v1621 = vsel %vm333, 0.0, %v1605
    %v1622 = vsel %vm333, %v1591, 0.0
    %v1623 = vsel %vm333, %v1593, 0.0
    %v1624 = vsel %vm333, %v1595, 0.0
    %v1625 = vsel %vm333, %v1597, 0.0
    %v1626 = vsel %vm333, %v1599, 0.0
    %v1627 = vsel %vm333, %v1601, 0.0
    %v1628 = vsel %vm333, %v1603, 0.0
    %v1629 = vsel %vm333, %v1605, 0.0
    %1647 = vrot.lane.b32.xlu0 0.0, 64
    %v1648 = vpop.permute.xlu0 %1647
    %1649 = vrot.lane.b32.xlu0 %v1614, 64
    %v1650 = vpop.permute.xlu0 %1649
    %1651 = vrot.lane.b32.xlu0 %v1622, 64
    %v1652 = vpop.permute.xlu0 %1651
    %1653 = vrot.lane.b32.xlu0 %v1615, 64
    %v1654 = vpop.permute.xlu0 %1653
    %1655 = vrot.lane.b32.xlu0 %v1623, 64
    %v1656 = vpop.permute.xlu0 %1655
    %1657 = vrot.lane.b32.xlu0 %v1616, 64
    %v1658 = vpop.permute.xlu0 %1657
    %1659 = vrot.lane.b32.xlu0 %v1624, 64
    %v1660 = vpop.permute.xlu0 %1659
    %1661 = vrot.lane.b32.xlu0 %v1617, 64
    %v1662 = vpop.permute.xlu0 %1661
    %1663 = vrot.lane.b32.xlu0 %v1625, 64
    %v1664 = vpop.permute.xlu0 %1663
    %1665 = vrot.lane.b32.xlu0 %v1618, 64
    %v1666 = vpop.permute.xlu0 %1665
    %1667 = vrot.lane.b32.xlu0 %v1626, 64
    %v1668 = vpop.permute.xlu0 %1667
    %1669 = vrot.lane.b32.xlu0 %v1619, 64
    %v1670 = vpop.permute.xlu0 %1669
    %1671 = vrot.lane.b32.xlu0 %v1627, 64
    %v1672 = vpop.permute.xlu0 %1671
    %1673 = vrot.lane.b32.xlu0 %v1620, 64
    %v1674 = vpop.permute.xlu0 %1673
    %1675 = vrot.lane.b32.xlu0 %v1628, 64
    %v1676 = vpop.permute.xlu0 %1675
    %1677 = vrot.lane.b32.xlu0 %v1621, 64
    %v1678 = vpop.permute.xlu0 %1677
    %1679 = vrot.lane.b32.xlu0 %v1629, 64
    %v1680 = vpop.permute.xlu0 %1679
    %v1681 = vsel %vm1133, %v1650, %v1652
    %v1682 = vsel %vm1133, %v1654, %v1656
    %v1683 = vsel %vm1133, %v1658, %v1660
    %v1684 = vsel %vm1133, %v1662, %v1664
    %v1685 = vsel %vm1133, %v1666, %v1668
    %v1686 = vsel %vm1133, %v1670, %v1672
    %v1687 = vsel %vm1133, %v1674, %v1676
    %v1688 = vsel %vm1133, %v1678, %v1680
    %v1706 = vsel %vm1133, 0.0, %v1648
    %v1707 = vsel %vm1133, 0.0, %v1650
    %v1708 = vsel %vm1133, %v1622, %v1654
    %v1709 = vsel %vm1133, %v1623, %v1658
    %v1710 = vsel %vm1133, %v1624, %v1662
    %v1711 = vsel %vm1133, %v1625, %v1666
    %v1712 = vsel %vm1133, %v1626, %v1670
    %v1713 = vsel %vm1133, %v1627, %v1674
    %v1714 = vsel %vm1133, %v1628, %v1678
    %v1715 = vsel %vm1133, %v1629, %v1648
    %v1716 = vld [vmem:[%s5] sm:$0xff]
    %v1717 = vld [vmem:[%s5 + $0x8] sm:$0xff]
    %v1718 = vld [vmem:[%s5 + $0x10] sm:$0xff]
    %v1719 = vld [vmem:[%s5 + $0x18] sm:$0xff]
    %v1720 = vld [vmem:[%s5 + $0x20] sm:$0xff]
    %v1721 = vld [vmem:[%s5 + $0x28] sm:$0xff]
    %v1722 = vld [vmem:[%s5 + $0x30] sm:$0xff]
    %v1723 = vld [vmem:[%s5 + $0x38] sm:$0xff]
    %v1724 = vld [vmem:[%s5 + $0x40] sm:$0xff]
    %v1725 = vld [vmem:[%s5 + $0x48] sm:$0xff]
    %v1726 = vld [vmem:[%s5 + $0x50] sm:$0xff]
    %v1727 = vld [vmem:[%s5 + $0x58] sm:$0xff]
    %v1728 = vld [vmem:[%s5 + $0x60] sm:$0xff]
    %v1729 = vld [vmem:[%s5 + $0x68] sm:$0xff]
    %v1730 = vld [vmem:[%s5 + $0x70] sm:$0xff]
    %v1731 = vld [vmem:[%s5 + $0x78] sm:$0xff]
    %v1732 = vld [vmem:[%s5 + $0x80] sm:$0xff]
    %v1733 = vld [vmem:[%s5 + $0x88] sm:$0xff]
    %v1734 = vld [vmem:[%s5 + $0x90] sm:$0xff]
    %v1735 = vld [vmem:[%s5 + $0x98] sm:$0xff]
    %v1736 = vld [vmem:[%s5 + $0xa0] sm:$0xff]
    %v1737 = vld [vmem:[%s5 + $0xa8] sm:$0xff]
    %v1738 = vld [vmem:[%s5 + $0xb0] sm:$0xff]
    %v1739 = vld [vmem:[%s5 + $0xb8] sm:$0xff]
    %v1740 = vld [vmem:[%s5 + $0xc0] sm:$0xff]
    %v1741 = vld [vmem:[%s5 + $0xc8] sm:$0xff]
    %v1742 = vld [vmem:[%s5 + $0xd0] sm:$0xff]
    %v1743 = vld [vmem:[%s5 + $0xd8] sm:$0xff]
    %v1744 = vld [vmem:[%s5 + $0xe0] sm:$0xff]
    %v1745 = vld [vmem:[%s5 + $0xe8] sm:$0xff]
    %v1746 = vld [vmem:[%s5 + $0xf0] sm:$0xff]
    %v1747 = vld [vmem:[%s5 + $0xf8] sm:$0xff]
    %v1748 = vld [vmem:[%s5 + $0x100] sm:$0xff]
    %v1749 = vld [vmem:[%s5 + $0x108] sm:$0xff]
    %v1750 = vld [vmem:[%s5 + $0x110] sm:$0xff]
    %v1751 = vld [vmem:[%s5 + $0x118] sm:$0xff]
    %v1752 = vld [vmem:[%s5 + $0x120] sm:$0xff]
    %v1753 = vld [vmem:[%s5 + $0x128] sm:$0xff]
    %v1754 = vld [vmem:[%s5 + $0x130] sm:$0xff]
    %v1755 = vld [vmem:[%s5 + $0x138] sm:$0xff]
    %v1756 = vld [vmem:[%s5 + $0x140] sm:$0xff]
    %v1757 = vld [vmem:[%s5 + $0x148] sm:$0xff]
    %v1758 = vld [vmem:[%s5 + $0x150] sm:$0xff]
    %v1759 = vld [vmem:[%s5 + $0x158] sm:$0xff]
    %v1760 = vld [vmem:[%s5 + $0x160] sm:$0xff]
    %v1761 = vld [vmem:[%s5 + $0x168] sm:$0xff]
    %v1762 = vld [vmem:[%s5 + $0x170] sm:$0xff]
    %v1763 = vld [vmem:[%s5 + $0x178] sm:$0xff]
    %v1764 = vld [vmem:[%s5 + $0x180] sm:$0xff]
    %v1765 = vld [vmem:[%s5 + $0x188] sm:$0xff]
    %v1766 = vld [vmem:[%s5 + $0x190] sm:$0xff]
    %v1767 = vld [vmem:[%s5 + $0x198] sm:$0xff]
    %v1768 = vld [vmem:[%s5 + $0x1a0] sm:$0xff]
    %v1769 = vld [vmem:[%s5 + $0x1a8] sm:$0xff]
    %v1770 = vld [vmem:[%s5 + $0x1b0] sm:$0xff]
    %v1771 = vld [vmem:[%s5 + $0x1b8] sm:$0xff]
    %v1772 = vld [vmem:[%s5 + $0x1c0] sm:$0xff]
    %v1773 = vld [vmem:[%s5 + $0x1c8] sm:$0xff]
    %v1774 = vld [vmem:[%s5 + $0x1d0] sm:$0xff]
    %v1775 = vld [vmem:[%s5 + $0x1d8] sm:$0xff]
    %v1776 = vld [vmem:[%s5 + $0x1e0] sm:$0xff]
    %v1777 = vld [vmem:[%s5 + $0x1e8] sm:$0xff]
    %v1778 = vld [vmem:[%s5 + $0x1f0] sm:$0xff]
    %v1779 = vld [vmem:[%s5 + $0x1f8] sm:$0xff]
    %v1780 = vld [vmem:[%s5 + $0x200] sm:$0xff]
    %v1781 = vld [vmem:[%s5 + $0x208] sm:$0xff]
    %v1782 = vld [vmem:[%s5 + $0x210] sm:$0xff]
    %v1783 = vld [vmem:[%s5 + $0x218] sm:$0xff]
    %v1784 = vld [vmem:[%s5 + $0x220] sm:$0xff]
    %v1785 = vld [vmem:[%s5 + $0x228] sm:$0xff]
    %v1786 = vld [vmem:[%s5 + $0x230] sm:$0xff]
    %v1787 = vld [vmem:[%s5 + $0x238] sm:$0xff]
    %v1788 = vld [vmem:[%s5 + $0x240] sm:$0xff]
    %v1789 = vld [vmem:[%s5 + $0x248] sm:$0xff]
    %v1790 = vld [vmem:[%s5 + $0x250] sm:$0xff]
    %v1791 = vld [vmem:[%s5 + $0x258] sm:$0xff]
    %v1792 = vld [vmem:[%s5 + $0x260] sm:$0xff]
    %v1793 = vld [vmem:[%s5 + $0x268] sm:$0xff]
    %v1794 = vld [vmem:[%s5 + $0x270] sm:$0xff]
    %v1795 = vld [vmem:[%s5 + $0x278] sm:$0xff]
    %v1796 = vld [vmem:[%s5 + $0x280] sm:$0xff]
    %v1797 = vld [vmem:[%s5 + $0x288] sm:$0xff]
    %v1798 = vld [vmem:[%s5 + $0x290] sm:$0xff]
    %v1799 = vld [vmem:[%s5 + $0x298] sm:$0xff]
    %v1800 = vld [vmem:[%s5 + $0x2a0] sm:$0xff]
    %v1801 = vld [vmem:[%s5 + $0x2a8] sm:$0xff]
    %v1802 = vld [vmem:[%s5 + $0x2b0] sm:$0xff]
    %v1803 = vld [vmem:[%s5 + $0x2b8] sm:$0xff]
    %v1804 = vld [vmem:[%s5 + $0x2c0] sm:$0xff]
    %v1805 = vld [vmem:[%s5 + $0x2c8] sm:$0xff]
    %v1806 = vld [vmem:[%s5 + $0x2d0] sm:$0xff]
    %v1807 = vld [vmem:[%s5 + $0x2d8] sm:$0xff]
    %v1808 = vld [vmem:[%s5 + $0x2e0] sm:$0xff]
    %v1809 = vld [vmem:[%s5 + $0x2e8] sm:$0xff]
    %v1810 = vld [vmem:[%s5 + $0x2f0] sm:$0xff]
    %v1811 = vld [vmem:[%s5 + $0x2f8] sm:$0xff]
    %v1812 = vld [vmem:[%s5 + $0x300] sm:$0xff]
    %v1813 = vld [vmem:[%s5 + $0x308] sm:$0xff]
    %v1814 = vld [vmem:[%s5 + $0x310] sm:$0xff]
    %v1815 = vld [vmem:[%s5 + $0x318] sm:$0xff]
    %v1816 = vld [vmem:[%s5 + $0x320] sm:$0xff]
    %v1817 = vld [vmem:[%s5 + $0x328] sm:$0xff]
    %v1818 = vld [vmem:[%s5 + $0x330] sm:$0xff]
    %v1819 = vld [vmem:[%s5 + $0x338] sm:$0xff]
    %v1820 = vld [vmem:[%s5 + $0x340] sm:$0xff]
    %v1821 = vld [vmem:[%s5 + $0x348] sm:$0xff]
    %v1822 = vld [vmem:[%s5 + $0x350] sm:$0xff]
    %v1823 = vld [vmem:[%s5 + $0x358] sm:$0xff]
    %v1824 = vld [vmem:[%s5 + $0x360] sm:$0xff]
    %v1825 = vld [vmem:[%s5 + $0x368] sm:$0xff]
    %v1826 = vld [vmem:[%s5 + $0x370] sm:$0xff]
    %v1827 = vld [vmem:[%s5 + $0x378] sm:$0xff]
    %v1828 = vld [vmem:[%s5 + $0x380] sm:$0xff]
    %v1829 = vld [vmem:[%s5 + $0x388] sm:$0xff]
    %v1830 = vld [vmem:[%s5 + $0x390] sm:$0xff]
    %v1831 = vld [vmem:[%s5 + $0x398] sm:$0xff]
    %v1832 = vld [vmem:[%s5 + $0x3a0] sm:$0xff]
    %v1833 = vld [vmem:[%s5 + $0x3a8] sm:$0xff]
    %v1834 = vld [vmem:[%s5 + $0x3b0] sm:$0xff]
    %v1835 = vld [vmem:[%s5 + $0x3b8] sm:$0xff]
    %v1836 = vld [vmem:[%s5 + $0x3c0] sm:$0xff]
    %v1837 = vld [vmem:[%s5 + $0x3c8] sm:$0xff]
    %v1838 = vld [vmem:[%s5 + $0x3d0] sm:$0xff]
    %v1839 = vld [vmem:[%s5 + $0x3d8] sm:$0xff]
    %v1840 = vld [vmem:[%s5 + $0x3e0] sm:$0xff]
    %v1841 = vld [vmem:[%s5 + $0x3e8] sm:$0xff]
    %v1842 = vld [vmem:[%s5 + $0x3f0] sm:$0xff]
    %v1843 = vld [vmem:[%s5 + $0x3f8] sm:$0xff]
    %v1844 = vld [vmem:[%s5 + $0x400] sm:$0xff]
    %v1845 = vld [vmem:[%s5 + $0x408] sm:$0xff]
    %v1846 = vld [vmem:[%s5 + $0x410] sm:$0xff]
    %v1847 = vld [vmem:[%s5 + $0x418] sm:$0xff]
    %v1848 = vld [vmem:[%s5 + $0x420] sm:$0xff]
    %v1849 = vld [vmem:[%s5 + $0x428] sm:$0xff]
    %v1850 = vld [vmem:[%s5 + $0x430] sm:$0xff]
    %v1851 = vld [vmem:[%s5 + $0x438] sm:$0xff]
    %v1852 = vld [vmem:[%s5 + $0x440] sm:$0xff]
    %v1853 = vld [vmem:[%s5 + $0x448] sm:$0xff]
    %v1854 = vld [vmem:[%s5 + $0x450] sm:$0xff]
    %v1855 = vld [vmem:[%s5 + $0x458] sm:$0xff]
    %v1856 = vld [vmem:[%s5 + $0x460] sm:$0xff]
    %v1857 = vld [vmem:[%s5 + $0x468] sm:$0xff]
    %v1858 = vld [vmem:[%s5 + $0x470] sm:$0xff]
    %v1859 = vld [vmem:[%s5 + $0x478] sm:$0xff]
    %v1860 = vld [vmem:[%s5 + $0x480] sm:$0xff]
    %v1861 = vld [vmem:[%s5 + $0x488] sm:$0xff]
    %v1862 = vld [vmem:[%s5 + $0x490] sm:$0xff]
    %v1863 = vld [vmem:[%s5 + $0x498] sm:$0xff]
    %v1864 = vld [vmem:[%s5 + $0x4a0] sm:$0xff]
    %v1865 = vld [vmem:[%s5 + $0x4a8] sm:$0xff]
    %v1866 = vld [vmem:[%s5 + $0x4b0] sm:$0xff]
    %v1867 = vld [vmem:[%s5 + $0x4b8] sm:$0xff]
    %v1868 = vld [vmem:[%s5 + $0x4c0] sm:$0xff]
    %v1869 = vld [vmem:[%s5 + $0x4c8] sm:$0xff]
    %v1870 = vld [vmem:[%s5 + $0x4d0] sm:$0xff]
    %v1871 = vld [vmem:[%s5 + $0x4d8] sm:$0xff]
    %v1872 = vld [vmem:[%s5 + $0x4e0] sm:$0xff]
    %v1873 = vld [vmem:[%s5 + $0x4e8] sm:$0xff]
    %v1874 = vld [vmem:[%s5 + $0x4f0] sm:$0xff]
    %v1875 = vld [vmem:[%s5 + $0x4f8] sm:$0xff]
    %v1876 = vld [vmem:[%s5 + $0x500] sm:$0xff]
    %v1877 = vld [vmem:[%s5 + $0x508] sm:$0xff]
    %v1878 = vld [vmem:[%s5 + $0x510] sm:$0xff]
    %v1879 = vld [vmem:[%s5 + $0x518] sm:$0xff]
    %v1880 = vld [vmem:[%s5 + $0x520] sm:$0xff]
    %v1881 = vld [vmem:[%s5 + $0x528] sm:$0xff]
    %v1882 = vld [vmem:[%s5 + $0x530] sm:$0xff]
    %v1883 = vld [vmem:[%s5 + $0x538] sm:$0xff]
    %v1884 = vld [vmem:[%s5 + $0x540] sm:$0xff]
    %v1885 = vld [vmem:[%s5 + $0x548] sm:$0xff]
    %v1886 = vld [vmem:[%s5 + $0x550] sm:$0xff]
    %v1887 = vld [vmem:[%s5 + $0x558] sm:$0xff]
    %v1888 = vld [vmem:[%s5 + $0x560] sm:$0xff]
    %v1889 = vld [vmem:[%s5 + $0x568] sm:$0xff]
    %v1890 = vld [vmem:[%s5 + $0x570] sm:$0xff]
    %v1891 = vld [vmem:[%s5 + $0x578] sm:$0xff]
    %v1892 = vld [vmem:[%s5 + $0x580] sm:$0xff]
    %v1893 = vld [vmem:[%s5 + $0x588] sm:$0xff]
    %v1894 = vld [vmem:[%s5 + $0x590] sm:$0xff]
    %v1895 = vld [vmem:[%s5 + $0x598] sm:$0xff]
    %v1896 = vld [vmem:[%s5 + $0x5a0] sm:$0xff]
    %v1897 = vld [vmem:[%s5 + $0x5a8] sm:$0xff]
    %v1898 = vld [vmem:[%s5 + $0x5b0] sm:$0xff]
    %v1899 = vld [vmem:[%s5 + $0x5b8] sm:$0xff]
    %v1900 = vld [vmem:[%s5 + $0x5c0] sm:$0xff]
    %v1901 = vld [vmem:[%s5 + $0x5c8] sm:$0xff]
    %v1902 = vld [vmem:[%s5 + $0x5d0] sm:$0xff]
    %v1903 = vld [vmem:[%s5 + $0x5d8] sm:$0xff]
    %v1904 = vld [vmem:[%s5 + $0x5e0] sm:$0xff]
    %v1905 = vld [vmem:[%s5 + $0x5e8] sm:$0xff]
    %v1906 = vld [vmem:[%s5 + $0x5f0] sm:$0xff]
    %v1907 = vld [vmem:[%s5 + $0x5f8] sm:$0xff]
    %v1908 = vld [vmem:[%s5 + $0x600] sm:$0xff]
    %v1909 = vld [vmem:[%s5 + $0x608] sm:$0xff]
    %v1910 = vld [vmem:[%s5 + $0x610] sm:$0xff]
    %v1911 = vld [vmem:[%s5 + $0x618] sm:$0xff]
    %v1912 = vld [vmem:[%s5 + $0x620] sm:$0xff]
    %v1913 = vld [vmem:[%s5 + $0x628] sm:$0xff]
    %v1914 = vld [vmem:[%s5 + $0x630] sm:$0xff]
    %v1915 = vld [vmem:[%s5 + $0x638] sm:$0xff]
    %v1916 = vld [vmem:[%s5 + $0x640] sm:$0xff]
    %v1917 = vld [vmem:[%s5 + $0x648] sm:$0xff]
    %v1918 = vld [vmem:[%s5 + $0x650] sm:$0xff]
    %v1919 = vld [vmem:[%s5 + $0x658] sm:$0xff]
    %v1920 = vld [vmem:[%s5 + $0x660] sm:$0xff]
    %v1921 = vld [vmem:[%s5 + $0x668] sm:$0xff]
    %v1922 = vld [vmem:[%s5 + $0x670] sm:$0xff]
    %v1923 = vld [vmem:[%s5 + $0x678] sm:$0xff]
    %v1924 = vld [vmem:[%s5 + $0x680] sm:$0xff]
    %v1925 = vld [vmem:[%s5 + $0x688] sm:$0xff]
    %v1926 = vld [vmem:[%s5 + $0x690] sm:$0xff]
    %v1927 = vld [vmem:[%s5 + $0x698] sm:$0xff]
    %v1928 = vld [vmem:[%s5 + $0x6a0] sm:$0xff]
    %v1929 = vld [vmem:[%s5 + $0x6a8] sm:$0xff]
    %v1930 = vld [vmem:[%s5 + $0x6b0] sm:$0xff]
    %v1931 = vld [vmem:[%s5 + $0x6b8] sm:$0xff]
    %v1932 = vld [vmem:[%s6] sm:$0x7]
    %v1934 = vperm.slane %v1932, 0
    %v1935 = vperm.slane %v1932, 1
    %v1936 = vperm.slane %v1932, 2
    %v1940 = vsel %vm1133, %v1622, 0
    %v1942 = vsel %vm1133, %v1623, 0
    %v1944 = vsel %vm1133, %v1624, 0
    %v1946 = vsel %vm1133, %v1625, 0
    %v1948 = vsel %vm1133, %v1626, 0
    %v1950 = vsel %vm1133, %v1627, 0
    %v1952 = vsel %vm1133, %v1628, 0
    %v1954 = vsel %vm1133, %v1629, 0
    %v1956 = vsel %vm1133, 0.0, 0
    %1958 = vmatpush.msra.mxu0 %v1761
    %1959 = vmatpush.msra.mxu0 %v1758
    %1960 = vmatpush.msra.mxu0 %v1755
    %1961 = vmatpush.msra.mxu0 %v1752
    %1962 = vmatpush.msra.mxu0 %v1749
    %1963 = vmatpush.msra.mxu0 %v1746
    %1964 = vmatpush.msra.mxu0 %v1743
    %1965 = vmatpush.msra.mxu0 %v1740
    %1966 = vmatpush.msra.mxu0 %v1737
    %1967 = vmatpush.msra.mxu0 %v1734
    %1968 = vmatpush.msra.mxu0 %v1731
    %1969 = vmatpush.msra.mxu0 %v1728
    %1970 = vmatpush.msra.mxu0 %v1725
    %1971 = vmatpush.msra.mxu0 %v1722
    %1972 = vmatpush.msra.mxu0 %v1719
    %1973 = vmatpush.msra.mxu0 %v1716
    %1974 = vmatmul.f32.gmra.mxu0 0.0
    %v1975 = vpop.f32.mrf.mxu0
    %v1976 = vadd.f32 %v1934, %v1975
    %1977 = vmatmul.f32.gmra.mxu0 0.0
    %v1978 = vpop.f32.mrf.mxu0
    %v1979 = vadd.f32 %v1934, %v1978
    %1980 = vmatmul.f32.gmra.mxu0 %v1614
    %v1981 = vpop.f32.mrf.mxu0
    %v1982 = vadd.f32 %v1934, %v1981
    %1983 = vmatmul.f32.gmra.mxu0 %v1615
    %v1984 = vpop.f32.mrf.mxu0
    %v1985 = vadd.f32 %v1934, %v1984
    %1986 = vmatmul.f32.gmra.mxu0 %v1616
    %v1987 = vpop.f32.mrf.mxu0
    %v1988 = vadd.f32 %v1934, %v1987
    %1989 = vmatmul.f32.gmra.mxu0 %v1617
    %v1990 = vpop.f32.mrf.mxu0
    %v1991 = vadd.f32 %v1934, %v1990
    %1992 = vmatmul.f32.gmra.mxu0 %v1618
    %v1993 = vpop.f32.mrf.mxu0
    %v1994 = vadd.f32 %v1934, %v1993
    %1995 = vmatmul.f32.gmra.mxu0 %v1619
    %v1996 = vpop.f32.mrf.mxu0
    %v1997 = vadd.f32 %v1934, %v1996
    %1998 = vmatmul.f32.gmra.mxu0 %v1620
    %v1999 = vpop.f32.mrf.mxu0
    %v2000 = vadd.f32 %v1934, %v1999
    %2001 = vmatmul.f32.gmra.mxu0 %v1621
    %v2002 = vpop.f32.mrf.mxu0
    %v2003 = vadd.f32 %v1934, %v2002
    %2004 = vdwg.mxu0
    %2005 = vmatpush.msra.mxu0 %v1809
    %2006 = vmatpush.msra.mxu0 %v1806
    %2007 = vmatpush.msra.mxu0 %v1803
    %2008 = vmatpush.msra.mxu0 %v1800
    %2009 = vmatpush.msra.mxu0 %v1797
    %2010 = vmatpush.msra.mxu0 %v1794
    %2011 = vmatpush.msra.mxu0 %v1791
    %2012 = vmatpush.msra.mxu0 %v1788
    %2013 = vmatpush.msra.mxu0 %v1785
    %2014 = vmatpush.msra.mxu0 %v1782
    %2015 = vmatpush.msra.mxu0 %v1779
    %2016 = vmatpush.msra.mxu0 %v1776
    %2017 = vmatpush.msra.mxu0 %v1773
    %2018 = vmatpush.msra.mxu0 %v1770
    %2019 = vmatpush.msra.mxu0 %v1767
    %2020 = vmatpush.msra.mxu0 %v1764
    %2021 = vmatmul.f32.gmra.mxu0 %v1706
    %v2022 = vpop.f32.mrf.mxu0
    %v2023 = vadd.f32 %v1976, %v2022
    %2024 = vmatmul.f32.gmra.mxu0 %v1707
    %v2025 = vpop.f32.mrf.mxu0
    %v2026 = vadd.f32 %v1979, %v2025
    %2027 = vmatmul.f32.gmra.mxu0 %v1708
    %v2028 = vpop.f32.mrf.mxu0
    %v2029 = vadd.f32 %v1982, %v2028
    %2030 = vmatmul.f32.gmra.mxu0 %v1709
    %v2031 = vpop.f32.mrf.mxu0
    %v2032 = vadd.f32 %v1985, %v2031
    %2033 = vmatmul.f32.gmra.mxu0 %v1710
    %v2034 = vpop.f32.mrf.mxu0
    %v2035 = vadd.f32 %v1988, %v2034
    %2036 = vmatmul.f32.gmra.mxu0 %v1711
    %v2037 = vpop.f32.mrf.mxu0
    %v2038 = vadd.f32 %v1991, %v2037
    %2039 = vmatmul.f32.gmra.mxu0 %v1712
    %v2040 = vpop.f32.mrf.mxu0
    %v2041 = vadd.f32 %v1994, %v2040
    %2042 = vmatmul.f32.gmra.mxu0 %v1713
    %v2043 = vpop.f32.mrf.mxu0
    %v2044 = vadd.f32 %v1997, %v2043
    %2045 = vmatmul.f32.gmra.mxu0 %v1714
    %v2046 = vpop.f32.mrf.mxu0
    %v2047 = vadd.f32 %v2000, %v2046
    %2048 = vmatmul.f32.gmra.mxu0 %v1715
    %v2049 = vpop.f32.mrf.mxu0
    %v2050 = vadd.f32 %v2003, %v2049
    %2051 = vdwg.mxu0
    %2052 = vmatpush.msra.mxu0 %v1857
    %2053 = vmatpush.msra.mxu0 %v1854
    %2054 = vmatpush.msra.mxu0 %v1851
    %2055 = vmatpush.msra.mxu0 %v1848
    %2056 = vmatpush.msra.mxu0 %v1845
    %2057 = vmatpush.msra.mxu0 %v1842
    %2058 = vmatpush.msra.mxu0 %v1839
    %2059 = vmatpush.msra.mxu0 %v1836
    %2060 = vmatpush.msra.mxu0 %v1833
    %2061 = vmatpush.msra.mxu0 %v1830
    %2062 = vmatpush.msra.mxu0 %v1827
    %2063 = vmatpush.msra.mxu0 %v1824
    %2064 = vmatpush.msra.mxu0 %v1821
    %2065 = vmatpush.msra.mxu0 %v1818
    %2066 = vmatpush.msra.mxu0 %v1815
    %2067 = vmatpush.msra.mxu0 %v1812
    %2068 = vmatmul.f32.gmra.mxu0 %v1648
    %v2069 = vpop.f32.mrf.mxu0
    %v2070 = vadd.f32 %v2023, %v2069
    %2071 = vmatmul.f32.gmra.mxu0 %v1681
    %v2072 = vpop.f32.mrf.mxu0
    %v2073 = vadd.f32 %v2026, %v2072
    %2074 = vmatmul.f32.gmra.mxu0 %v1682
    %v2075 = vpop.f32.mrf.mxu0
    %v2076 = vadd.f32 %v2029, %v2075
    %2077 = vmatmul.f32.gmra.mxu0 %v1683
    %v2078 = vpop.f32.mrf.mxu0
    %v2079 = vadd.f32 %v2032, %v2078
    %2080 = vmatmul.f32.gmra.mxu0 %v1684
    %v2081 = vpop.f32.mrf.mxu0
    %v2082 = vadd.f32 %v2035, %v2081
    %2083 = vmatmul.f32.gmra.mxu0 %v1685
    %v2084 = vpop.f32.mrf.mxu0
    %v2085 = vadd.f32 %v2038, %v2084
    %2086 = vmatmul.f32.gmra.mxu0 %v1686
    %v2087 = vpop.f32.mrf.mxu0
    %v2088 = vadd.f32 %v2041, %v2087
    %2089 = vmatmul.f32.gmra.mxu0 %v1687
    %v2090 = vpop.f32.mrf.mxu0
    %v2091 = vadd.f32 %v2044, %v2090
    %2092 = vmatmul.f32.gmra.mxu0 %v1688
    %v2093 = vpop.f32.mrf.mxu0
    %v2094 = vadd.f32 %v2047, %v2093
    %2095 = vmatmul.f32.gmra.mxu0 %v1648
    %v2096 = vpop.f32.mrf.mxu0
    %v2097 = vadd.f32 %v2050, %v2096
    %2098 = vdwg.mxu0
    %2099 = vmatpush.msra.mxu0 %v1905
    %2100 = vmatpush.msra.mxu0 %v1902
    %2101 = vmatpush.msra.mxu0 %v1899
    %2102 = vmatpush.msra.mxu0 %v1896
    %2103 = vmatpush.msra.mxu0 %v1893
    %2104 = vmatpush.msra.mxu0 %v1890
    %2105 = vmatpush.msra.mxu0 %v1887
    %2106 = vmatpush.msra.mxu0 %v1884
    %2107 = vmatpush.msra.mxu0 %v1881
    %2108 = vmatpush.msra.mxu0 %v1878
    %2109 = vmatpush.msra.mxu0 %v1875
    %2110 = vmatpush.msra.mxu0 %v1872
    %2111 = vmatpush.msra.mxu0 %v1869
    %2112 = vmatpush.msra.mxu0 %v1866
    %2113 = vmatpush.msra.mxu0 %v1863
    %2114 = vmatpush.msra.mxu0 %v1860
    %2115 = vmatmul.f32.gmra.mxu0 %v1614
    %v2116 = vpop.f32.mrf.mxu0
    %v2117 = vadd.f32 %v2070, %v2116
    %2118 = vmatmul.f32.gmra.mxu0 %v1615
    %v2119 = vpop.f32.mrf.mxu0
    %v2120 = vadd.f32 %v2073, %v2119
    %2121 = vmatmul.f32.gmra.mxu0 %v1616
    %v2122 = vpop.f32.mrf.mxu0
    %v2123 = vadd.f32 %v2076, %v2122
    %2124 = vmatmul.f32.gmra.mxu0 %v1617
    %v2125 = vpop.f32.mrf.mxu0
    %v2126 = vadd.f32 %v2079, %v2125
    %2127 = vmatmul.f32.gmra.mxu0 %v1618
    %v2128 = vpop.f32.mrf.mxu0
    %v2129 = vadd.f32 %v2082, %v2128
    %2130 = vmatmul.f32.gmra.mxu0 %v1619
    %v2131 = vpop.f32.mrf.mxu0
    %v2132 = vadd.f32 %v2085, %v2131
    %2133 = vmatmul.f32.gmra.mxu0 %v1620
    %v2134 = vpop.f32.mrf.mxu0
    %v2135 = vadd.f32 %v2088, %v2134
    %2136 = vmatmul.f32.gmra.mxu0 %v1621
    %v2137 = vpop.f32.mrf.mxu0
    %v2138 = vadd.f32 %v2091, %v2137
    %2139 = vmatmul.f32.gmra.mxu0 0.0
    %v2140 = vpop.f32.mrf.mxu0
    %v2141 = vadd.f32 %v2094, %v2140
    %2142 = vmatmul.f32.gmra.mxu0 0.0
    %v2143 = vpop.f32.mrf.mxu0
    %v2144 = vadd.f32 %v2097, %v2143
    %2145 = vdwg.mxu0
    %2146 = vmatpush.msra.mxu0 0.0
    %2147 = vmatpush.msra.mxu0 0.0
    %2148 = vmatpush.msra.mxu0 0.0
    %2149 = vmatpush.msra.mxu0 0.0
    %2150 = vmatpush.msra.mxu0 0.0
    %2151 = vmatpush.msra.mxu0 0.0
    %2152 = vmatpush.msra.mxu0 0.0
    %2153 = vmatpush.msra.mxu0 0.0
    %2154 = vmatpush.msra.mxu0 %v1929
    %2155 = vmatpush.msra.mxu0 %v1926
    %2156 = vmatpush.msra.mxu0 %v1923
    %2157 = vmatpush.msra.mxu0 %v1920
    %2158 = vmatpush.msra.mxu0 %v1917
    %2159 = vmatpush.msra.mxu0 %v1914
    %2160 = vmatpush.msra.mxu0 %v1911
    %2161 = vmatpush.msra.mxu0 %v1908
    %2162 = vmatmul.f32.gmra.mxu0 %v1940
    %v2163 = vpop.f32.mrf.mxu0
    %v2164 = vadd.f32 %v2117, %v2163
    %2165 = vmatmul.f32.gmra.mxu0 %v1942
    %v2166 = vpop.f32.mrf.mxu0
    %v2167 = vadd.f32 %v2120, %v2166
    %2168 = vmatmul.f32.gmra.mxu0 %v1944
    %v2169 = vpop.f32.mrf.mxu0
    %v2170 = vadd.f32 %v2123, %v2169
    %2171 = vmatmul.f32.gmra.mxu0 %v1946
    %v2172 = vpop.f32.mrf.mxu0
    %v2173 = vadd.f32 %v2126, %v2172
    %2174 = vmatmul.f32.gmra.mxu0 %v1948
    %v2175 = vpop.f32.mrf.mxu0
    %v2176 = vadd.f32 %v2129, %v2175
    %2177 = vmatmul.f32.gmra.mxu0 %v1950
    %v2178 = vpop.f32.mrf.mxu0
    %v2179 = vadd.f32 %v2132, %v2178
    %2180 = vmatmul.f32.gmra.mxu0 %v1952
    %v2181 = vpop.f32.mrf.mxu0
    %v2182 = vadd.f32 %v2135, %v2181
    %2183 = vmatmul.f32.gmra.mxu0 %v1954
    %v2184 = vpop.f32.mrf.mxu0
    %v2185 = vadd.f32 %v2138, %v2184
    %2186 = vmatmul.f32.gmra.mxu0 %v1956
    %v2187 = vpop.f32.mrf.mxu0
    %v2188 = vadd.f32 %v2141, %v2187
    %2189 = vmatmul.f32.gmra.mxu0 %v1956
    %v2190 = vpop.f32.mrf.mxu0
    %v2191 = vadd.f32 %v2144, %v2190
    %2192 = vdwg.mxu0
    %2193 = vmatpush.msra.mxu0 %v1762
    %2194 = vmatpush.msra.mxu0 %v1759
    %2195 = vmatpush.msra.mxu0 %v1756
    %2196 = vmatpush.msra.mxu0 %v1753
    %2197 = vmatpush.msra.mxu0 %v1750
    %2198 = vmatpush.msra.mxu0 %v1747
    %2199 = vmatpush.msra.mxu0 %v1744
    %2200 = vmatpush.msra.mxu0 %v1741
    %2201 = vmatpush.msra.mxu0 %v1738
    %2202 = vmatpush.msra.mxu0 %v1735
    %2203 = vmatpush.msra.mxu0 %v1732
    %2204 = vmatpush.msra.mxu0 %v1729
    %2205 = vmatpush.msra.mxu0 %v1726
    %2206 = vmatpush.msra.mxu0 %v1723
    %2207 = vmatpush.msra.mxu0 %v1720
    %2208 = vmatpush.msra.mxu0 %v1717
    %2209 = vmatmul.f32.gmra.mxu0 0.0
    %v2210 = vpop.f32.mrf.mxu0
    %v2211 = vadd.f32 %v1935, %v2210
    %2212 = vmatmul.f32.gmra.mxu0 0.0
    %v2213 = vpop.f32.mrf.mxu0
    %v2214 = vadd.f32 %v1935, %v2213
    %2215 = vmatmul.f32.gmra.mxu0 %v1614
    %v2216 = vpop.f32.mrf.mxu0
    %v2217 = vadd.f32 %v1935, %v2216
    %2218 = vmatmul.f32.gmra.mxu0 %v1615
    %v2219 = vpop.f32.mrf.mxu0
    %v2220 = vadd.f32 %v1935, %v2219
    %2221 = vmatmul.f32.gmra.mxu0 %v1616
    %v2222 = vpop.f32.mrf.mxu0
    %v2223 = vadd.f32 %v1935, %v2222
    %2224 = vmatmul.f32.gmra.mxu0 %v1617
    %v2225 = vpop.f32.mrf.mxu0
    %v2226 = vadd.f32 %v1935, %v2225
    %2227 = vmatmul.f32.gmra.mxu0 %v1618
    %v2228 = vpop.f32.mrf.mxu0
    %v2229 = vadd.f32 %v1935, %v2228
    %2230 = vmatmul.f32.gmra.mxu0 %v1619
    %v2231 = vpop.f32.mrf.mxu0
    %v2232 = vadd.f32 %v1935, %v2231
    %2233 = vmatmul.f32.gmra.mxu0 %v1620
    %v2234 = vpop.f32.mrf.mxu0
    %v2235 = vadd.f32 %v1935, %v2234
    %2236 = vmatmul.f32.gmra.mxu0 %v1621
    %v2237 = vpop.f32.mrf.mxu0
    %v2238 = vadd.f32 %v1935, %v2237
    %2239 = vdwg.mxu0
    %2240 = vmatpush.msra.mxu0 %v1810
    %2241 = vmatpush.msra.mxu0 %v1807
    %2242 = vmatpush.msra.mxu0 %v1804
    %2243 = vmatpush.msra.mxu0 %v1801
    %2244 = vmatpush.msra.mxu0 %v1798
    %2245 = vmatpush.msra.mxu0 %v1795
    %2246 = vmatpush.msra.mxu0 %v1792
    %2247 = vmatpush.msra.mxu0 %v1789
    %2248 = vmatpush.msra.mxu0 %v1786
    %2249 = vmatpush.msra.mxu0 %v1783
    %2250 = vmatpush.msra.mxu0 %v1780
    %2251 = vmatpush.msra.mxu0 %v1777
    %2252 = vmatpush.msra.mxu0 %v1774
    %2253 = vmatpush.msra.mxu0 %v1771
    %2254 = vmatpush.msra.mxu0 %v1768
    %2255 = vmatpush.msra.mxu0 %v1765
    %2256 = vmatmul.f32.gmra.mxu0 %v1706
    %v2257 = vpop.f32.mrf.mxu0
    %v2258 = vadd.f32 %v2211, %v2257
    %2259 = vmatmul.f32.gmra.mxu0 %v1707
    %v2260 = vpop.f32.mrf.mxu0
    %v2261 = vadd.f32 %v2214, %v2260
    %2262 = vmatmul.f32.gmra.mxu0 %v1708
    %v2263 = vpop.f32.mrf.mxu0
    %v2264 = vadd.f32 %v2217, %v2263
    %2265 = vmatmul.f32.gmra.mxu0 %v1709
    %v2266 = vpop.f32.mrf.mxu0
    %v2267 = vadd.f32 %v2220, %v2266
    %2268 = vmatmul.f32.gmra.mxu0 %v1710
    %v2269 = vpop.f32.mrf.mxu0
    %v2270 = vadd.f32 %v2223, %v2269
    %2271 = vmatmul.f32.gmra.mxu0 %v1711
    %v2272 = vpop.f32.mrf.mxu0
    %v2273 = vadd.f32 %v2226, %v2272
    %2274 = vmatmul.f32.gmra.mxu0 %v1712
    %v2275 = vpop.f32.mrf.mxu0
    %v2276 = vadd.f32 %v2229, %v2275
    %2277 = vmatmul.f32.gmra.mxu0 %v1713
    %v2278 = vpop.f32.mrf.mxu0
    %v2279 = vadd.f32 %v2232, %v2278
    %2280 = vmatmul.f32.gmra.mxu0 %v1714
    %v2281 = vpop.f32.mrf.mxu0
    %v2282 = vadd.f32 %v2235, %v2281
    %2283 = vmatmul.f32.gmra.mxu0 %v1715
    %v2284 = vpop.f32.mrf.mxu0
    %v2285 = vadd.f32 %v2238, %v2284
    %2286 = vdwg.mxu0
    %2287 = vmatpush.msra.mxu0 %v1858
    %2288 = vmatpush.msra.mxu0 %v1855
    %2289 = vmatpush.msra.mxu0 %v1852
    %2290 = vmatpush.msra.mxu0 %v1849
    %2291 = vmatpush.msra.mxu0 %v1846
    %2292 = vmatpush.msra.mxu0 %v1843
    %2293 = vmatpush.msra.mxu0 %v1840
    %2294 = vmatpush.msra.mxu0 %v1837
    %2295 = vmatpush.msra.mxu0 %v1834
    %2296 = vmatpush.msra.mxu0 %v1831
    %2297 = vmatpush.msra.mxu0 %v1828
    %2298 = vmatpush.msra.mxu0 %v1825
    %2299 = vmatpush.msra.mxu0 %v1822
    %2300 = vmatpush.msra.mxu0 %v1819
    %2301 = vmatpush.msra.mxu0 %v1816
    %2302 = vmatpush.msra.mxu0 %v1813
    %2303 = vmatmul.f32.gmra.mxu0 %v1648
    %v2304 = vpop.f32.mrf.mxu0
    %v2305 = vadd.f32 %v2258, %v2304
    %2306 = vmatmul.f32.gmra.mxu0 %v1681
    %v2307 = vpop.f32.mrf.mxu0
    %v2308 = vadd.f32 %v2261, %v2307
    %2309 = vmatmul.f32.gmra.mxu0 %v1682
    %v2310 = vpop.f32.mrf.mxu0
    %v2311 = vadd.f32 %v2264, %v2310
    %2312 = vmatmul.f32.gmra.mxu0 %v1683
    %v2313 = vpop.f32.mrf.mxu0
    %v2314 = vadd.f32 %v2267, %v2313
    %2315 = vmatmul.f32.gmra.mxu0 %v1684
    %v2316 = vpop.f32.mrf.mxu0
    %v2317 = vadd.f32 %v2270, %v2316
    %2318 = vmatmul.f32.gmra.mxu0 %v1685
    %v2319 = vpop.f32.mrf.mxu0
    %v2320 = vadd.f32 %v2273, %v2319
    %2321 = vmatmul.f32.gmra.mxu0 %v1686
    %v2322 = vpop.f32.mrf.mxu0
    %v2323 = vadd.f32 %v2276, %v2322
    %2324 = vmatmul.f32.gmra.mxu0 %v1687
    %v2325 = vpop.f32.mrf.mxu0
    %v2326 = vadd.f32 %v2279, %v2325
    %2327 = vmatmul.f32.gmra.mxu0 %v1688
    %v2328 = vpop.f32.mrf.mxu0
    %v2329 = vadd.f32 %v2282, %v2328
    %2330 = vmatmul.f32.gmra.mxu0 %v1648
    %v2331 = vpop.f32.mrf.mxu0
    %v2332 = vadd.f32 %v2285, %v2331
    %2333 = vdwg.mxu0
    %2334 = vmatpush.msra.mxu0 %v1906
    %2335 = vmatpush.msra.mxu0 %v1903
    %2336 = vmatpush.msra.mxu0 %v1900
    %2337 = vmatpush.msra.mxu0 %v1897
    %2338 = vmatpush.msra.mxu0 %v1894
    %2339 = vmatpush.msra.mxu0 %v1891
    %2340 = vmatpush.msra.mxu0 %v1888
    %2341 = vmatpush.msra.mxu0 %v1885
    %2342 = vmatpush.msra.mxu0 %v1882
    %2343 = vmatpush.msra.mxu0 %v1879
    %2344 = vmatpush.msra.mxu0 %v1876
    %2345 = vmatpush.msra.mxu0 %v1873
    %2346 = vmatpush.msra.mxu0 %v1870
    %2347 = vmatpush.msra.mxu0 %v1867
    %2348 = vmatpush.msra.mxu0 %v1864
    %2349 = vmatpush.msra.mxu0 %v1861
    %2350 = vmatmul.f32.gmra.mxu0 %v1614
    %v2351 = vpop.f32.mrf.mxu0
    %v2352 = vadd.f32 %v2305, %v2351
    %2353 = vmatmul.f32.gmra.mxu0 %v1615
    %v2354 = vpop.f32.mrf.mxu0
    %v2355 = vadd.f32 %v2308, %v2354
    %2356 = vmatmul.f32.gmra.mxu0 %v1616
    %v2357 = vpop.f32.mrf.mxu0
    %v2358 = vadd.f32 %v2311, %v2357
    %2359 = vmatmul.f32.gmra.mxu0 %v1617
    %v2360 = vpop.f32.mrf.mxu0
    %v2361 = vadd.f32 %v2314, %v2360
    %2362 = vmatmul.f32.gmra.mxu0 %v1618
    %v2363 = vpop.f32.mrf.mxu0
    %v2364 = vadd.f32 %v2317, %v2363
    %2365 = vmatmul.f32.gmra.mxu0 %v1619
    %v2366 = vpop.f32.mrf.mxu0
    %v2367 = vadd.f32 %v2320, %v2366
    %2368 = vmatmul.f32.gmra.mxu0 %v1620
    %v2369 = vpop.f32.mrf.mxu0
    %v2370 = vadd.f32 %v2323, %v2369
    %2371 = vmatmul.f32.gmra.mxu0 %v1621
    %v2372 = vpop.f32.mrf.mxu0
    %v2373 = vadd.f32 %v2326, %v2372
    %2374 = vmatmul.f32.gmra.mxu0 0.0
    %v2375 = vpop.f32.mrf.mxu0
    %v2376 = vadd.f32 %v2329, %v2375
    %2377 = vmatmul.f32.gmra.mxu0 0.0
    %v2378 = vpop.f32.mrf.mxu0
    %v2379 = vadd.f32 %v2332, %v2378
    %2380 = vdwg.mxu0
    %2381 = vmatpush.msra.mxu0 0.0
    %2382 = vmatpush.msra.mxu0 0.0
    %2383 = vmatpush.msra.mxu0 0.0
    %2384 = vmatpush.msra.mxu0 0.0
    %2385 = vmatpush.msra.mxu0 0.0
    %2386 = vmatpush.msra.mxu0 0.0
    %2387 = vmatpush.msra.mxu0 0.0
    %2388 = vmatpush.msra.mxu0 0.0
    %2389 = vmatpush.msra.mxu0 %v1930
    %2390 = vmatpush.msra.mxu0 %v1927
    %2391 = vmatpush.msra.mxu0 %v1924
    %2392 = vmatpush.msra.mxu0 %v1921
    %2393 = vmatpush.msra.mxu0 %v1918
    %2394 = vmatpush.msra.mxu0 %v1915
    %2395 = vmatpush.msra.mxu0 %v1912
    %2396 = vmatpush.msra.mxu0 %v1909
    %2397 = vmatmul.f32.gmra.mxu0 %v1940
    %v2398 = vpop.f32.mrf.mxu0
    %v2399 = vadd.f32 %v2352, %v2398
    %2400 = vmatmul.f32.gmra.mxu0 %v1942
    %v2401 = vpop.f32.mrf.mxu0
    %v2402 = vadd.f32 %v2355, %v2401
    %2403 = vmatmul.f32.gmra.mxu0 %v1944
    %v2404 = vpop.f32.mrf.mxu0
    %v2405 = vadd.f32 %v2358, %v2404
    %2406 = vmatmul.f32.gmra.mxu0 %v1946
    %v2407 = vpop.f32.mrf.mxu0
    %v2408 = vadd.f32 %v2361, %v2407
    %2409 = vmatmul.f32.gmra.mxu0 %v1948
    %v2410 = vpop.f32.mrf.mxu0
    %v2411 = vadd.f32 %v2364, %v2410
    %2412 = vmatmul.f32.gmra.mxu0 %v1950
    %v2413 = vpop.f32.mrf.mxu0
    %v2414 = vadd.f32 %v2367, %v2413
    %2415 = vmatmul.f32.gmra.mxu0 %v1952
    %v2416 = vpop.f32.mrf.mxu0
    %v2417 = vadd.f32 %v2370, %v2416
    %2418 = vmatmul.f32.gmra.mxu0 %v1954
    %v2419 = vpop.f32.mrf.mxu0
    %v2420 = vadd.f32 %v2373, %v2419
    %2421 = vmatmul.f32.gmra.mxu0 %v1956
    %v2422 = vpop.f32.mrf.mxu0
    %v2423 = vadd.f32 %v2376, %v2422
    %2424 = vmatmul.f32.gmra.mxu0 %v1956
    %v2425 = vpop.f32.mrf.mxu0
    %v2426 = vadd.f32 %v2379, %v2425
    %2427 = vdwg.mxu0
    %2428 = vmatpush.msra.mxu0 %v1763
    %2429 = vmatpush.msra.mxu0 %v1760
    %2430 = vmatpush.msra.mxu0 %v1757
    %2431 = vmatpush.msra.mxu0 %v1754
    %2432 = vmatpush.msra.mxu0 %v1751
    %2433 = vmatpush.msra.mxu0 %v1748
    %2434 = vmatpush.msra.mxu0 %v1745
    %2435 = vmatpush.msra.mxu0 %v1742
    %2436 = vmatpush.msra.mxu0 %v1739
    %2437 = vmatpush.msra.mxu0 %v1736
    %2438 = vmatpush.msra.mxu0 %v1733
    %2439 = vmatpush.msra.mxu0 %v1730
    %2440 = vmatpush.msra.mxu0 %v1727
    %2441 = vmatpush.msra.mxu0 %v1724
    %2442 = vmatpush.msra.mxu0 %v1721
    %2443 = vmatpush.msra.mxu0 %v1718
    %2444 = vmatmul.f32.gmra.mxu0 0.0
    %v2445 = vpop.f32.mrf.mxu0
    %v2446 = vadd.f32 %v1936, %v2445
    %2447 = vmatmul.f32.gmra.mxu0 0.0
    %v2448 = vpop.f32.mrf.mxu0
    %v2449 = vadd.f32 %v1936, %v2448
    %2450 = vmatmul.f32.gmra.mxu0 %v1614
    %v2451 = vpop.f32.mrf.mxu0
    %v2452 = vadd.f32 %v1936, %v2451
    %2453 = vmatmul.f32.gmra.mxu0 %v1615
    %v2454 = vpop.f32.mrf.mxu0
    %v2455 = vadd.f32 %v1936, %v2454
    %2456 = vmatmul.f32.gmra.mxu0 %v1616
    %v2457 = vpop.f32.mrf.mxu0
    %v2458 = vadd.f32 %v1936, %v2457
    %2459 = vmatmul.f32.gmra.mxu0 %v1617
    %v2460 = vpop.f32.mrf.mxu0
    %v2461 = vadd.f32 %v1936, %v2460
    %2462 = vmatmul.f32.gmra.mxu0 %v1618
    %v2463 = vpop.f32.mrf.mxu0
    %v2464 = vadd.f32 %v1936, %v2463
    %2465 = vmatmul.f32.gmra.mxu0 %v1619
    %v2466 = vpop.f32.mrf.mxu0
    %v2467 = vadd.f32 %v1936, %v2466
    %2468 = vmatmul.f32.gmra.mxu0 %v1620
    %v2469 = vpop.f32.mrf.mxu0
    %v2470 = vadd.f32 %v1936, %v2469
    %2471 = vmatmul.f32.gmra.mxu0 %v1621
    %v2472 = vpop.f32.mrf.mxu0
    %v2473 = vadd.f32 %v1936, %v2472
    %2474 = vdwg.mxu0
    %2475 = vmatpush.msra.mxu0 %v1811
    %2476 = vmatpush.msra.mxu0 %v1808
    %2477 = vmatpush.msra.mxu0 %v1805
    %2478 = vmatpush.msra.mxu0 %v1802
    %2479 = vmatpush.msra.mxu0 %v1799
    %2480 = vmatpush.msra.mxu0 %v1796
    %2481 = vmatpush.msra.mxu0 %v1793
    %2482 = vmatpush.msra.mxu0 %v1790
    %2483 = vmatpush.msra.mxu0 %v1787
    %2484 = vmatpush.msra.mxu0 %v1784
    %2485 = vmatpush.msra.mxu0 %v1781
    %2486 = vmatpush.msra.mxu0 %v1778
    %2487 = vmatpush.msra.mxu0 %v1775
    %2488 = vmatpush.msra.mxu0 %v1772
    %2489 = vmatpush.msra.mxu0 %v1769
    %2490 = vmatpush.msra.mxu0 %v1766
    %2491 = vmatmul.f32.gmra.mxu0 %v1706
    %v2492 = vpop.f32.mrf.mxu0
    %v2493 = vadd.f32 %v2446, %v2492
    %2494 = vmatmul.f32.gmra.mxu0 %v1707
    %v2495 = vpop.f32.mrf.mxu0
    %v2496 = vadd.f32 %v2449, %v2495
    %2497 = vmatmul.f32.gmra.mxu0 %v1708
    %v2498 = vpop.f32.mrf.mxu0
    %v2499 = vadd.f32 %v2452, %v2498
    %2500 = vmatmul.f32.gmra.mxu0 %v1709
    %v2501 = vpop.f32.mrf.mxu0
    %v2502 = vadd.f32 %v2455, %v2501
    %2503 = vmatmul.f32.gmra.mxu0 %v1710
    %v2504 = vpop.f32.mrf.mxu0
    %v2505 = vadd.f32 %v2458, %v2504
    %2506 = vmatmul.f32.gmra.mxu0 %v1711
    %v2507 = vpop.f32.mrf.mxu0
    %v2508 = vadd.f32 %v2461, %v2507
    %2509 = vmatmul.f32.gmra.mxu0 %v1712
    %v2510 = vpop.f32.mrf.mxu0
    %v2511 = vadd.f32 %v2464, %v2510
    %2512 = vmatmul.f32.gmra.mxu0 %v1713
    %v2513 = vpop.f32.mrf.mxu0
    %v2514 = vadd.f32 %v2467, %v2513
    %2515 = vmatmul.f32.gmra.mxu0 %v1714
    %v2516 = vpop.f32.mrf.mxu0
    %v2517 = vadd.f32 %v2470, %v2516
    %2518 = vmatmul.f32.gmra.mxu0 %v1715
    %v2519 = vpop.f32.mrf.mxu0
    %v2520 = vadd.f32 %v2473, %v2519
    %2521 = vdwg.mxu0
    %2522 = vmatpush.msra.mxu0 %v1859
    %2523 = vmatpush.msra.mxu0 %v1856
    %2524 = vmatpush.msra.mxu0 %v1853
    %2525 = vmatpush.msra.mxu0 %v1850
    %2526 = vmatpush.msra.mxu0 %v1847
    %2527 = vmatpush.msra.mxu0 %v1844
    %2528 = vmatpush.msra.mxu0 %v1841
    %2529 = vmatpush.msra.mxu0 %v1838
    %2530 = vmatpush.msra.mxu0 %v1835
    %2531 = vmatpush.msra.mxu0 %v1832
    %2532 = vmatpush.msra.mxu0 %v1829
    %2533 = vmatpush.msra.mxu0 %v1826
    %2534 = vmatpush.msra.mxu0 %v1823
    %2535 = vmatpush.msra.mxu0 %v1820
    %2536 = vmatpush.msra.mxu0 %v1817
    %2537 = vmatpush.msra.mxu0 %v1814
    %2538 = vmatmul.f32.gmra.mxu0 %v1648
    %v2539 = vpop.f32.mrf.mxu0
    %v2540 = vadd.f32 %v2493, %v2539
    %2541 = vmatmul.f32.gmra.mxu0 %v1681
    %v2542 = vpop.f32.mrf.mxu0
    %v2543 = vadd.f32 %v2496, %v2542
    %2544 = vmatmul.f32.gmra.mxu0 %v1682
    %v2545 = vpop.f32.mrf.mxu0
    %v2546 = vadd.f32 %v2499, %v2545
    %2547 = vmatmul.f32.gmra.mxu0 %v1683
    %v2548 = vpop.f32.mrf.mxu0
    %v2549 = vadd.f32 %v2502, %v2548
    %2550 = vmatmul.f32.gmra.mxu0 %v1684
    %v2551 = vpop.f32.mrf.mxu0
    %v2552 = vadd.f32 %v2505, %v2551
    %2553 = vmatmul.f32.gmra.mxu0 %v1685
    %v2554 = vpop.f32.mrf.mxu0
    %v2555 = vadd.f32 %v2508, %v2554
    %2556 = vmatmul.f32.gmra.mxu0 %v1686
    %v2557 = vpop.f32.mrf.mxu0
    %v2558 = vadd.f32 %v2511, %v2557
    %2559 = vmatmul.f32.gmra.mxu0 %v1687
    %v2560 = vpop.f32.mrf.mxu0
    %v2561 = vadd.f32 %v2514, %v2560
    %2562 = vmatmul.f32.gmra.mxu0 %v1688
    %v2563 = vpop.f32.mrf.mxu0
    %v2564 = vadd.f32 %v2517, %v2563
    %2565 = vmatmul.f32.gmra.mxu0 %v1648
    %v2566 = vpop.f32.mrf.mxu0
    %v2567 = vadd.f32 %v2520, %v2566
    %2568 = vdwg.mxu0
    %2569 = vmatpush.msra.mxu0 %v1907
    %2570 = vmatpush.msra.mxu0 %v1904
    %2571 = vmatpush.msra.mxu0 %v1901
    %2572 = vmatpush.msra.mxu0 %v1898
    %2573 = vmatpush.msra.mxu0 %v1895
    %2574 = vmatpush.msra.mxu0 %v1892
    %2575 = vmatpush.msra.mxu0 %v1889
    %2576 = vmatpush.msra.mxu0 %v1886
    %2577 = vmatpush.msra.mxu0 %v1883
    %2578 = vmatpush.msra.mxu0 %v1880
    %2579 = vmatpush.msra.mxu0 %v1877
    %2580 = vmatpush.msra.mxu0 %v1874
    %2581 = vmatpush.msra.mxu0 %v1871
    %2582 = vmatpush.msra.mxu0 %v1868
    %2583 = vmatpush.msra.mxu0 %v1865
    %2584 = vmatpush.msra.mxu0 %v1862
    %2585 = vmatmul.f32.gmra.mxu0 %v1614
    %v2586 = vpop.f32.mrf.mxu0
    %v2587 = vadd.f32 %v2540, %v2586
    %2588 = vmatmul.f32.gmra.mxu0 %v1615
    %v2589 = vpop.f32.mrf.mxu0
    %v2590 = vadd.f32 %v2543, %v2589
    %2591 = vmatmul.f32.gmra.mxu0 %v1616
    %v2592 = vpop.f32.mrf.mxu0
    %v2593 = vadd.f32 %v2546, %v2592
    %2594 = vmatmul.f32.gmra.mxu0 %v1617
    %v2595 = vpop.f32.mrf.mxu0
    %v2596 = vadd.f32 %v2549, %v2595
    %2597 = vmatmul.f32.gmra.mxu0 %v1618
    %v2598 = vpop.f32.mrf.mxu0
    %v2599 = vadd.f32 %v2552, %v2598
    %2600 = vmatmul.f32.gmra.mxu0 %v1619
    %v2601 = vpop.f32.mrf.mxu0
    %v2602 = vadd.f32 %v2555, %v2601
    %2603 = vmatmul.f32.gmra.mxu0 %v1620
    %v2604 = vpop.f32.mrf.mxu0
    %v2605 = vadd.f32 %v2558, %v2604
    %2606 = vmatmul.f32.gmra.mxu0 %v1621
    %v2607 = vpop.f32.mrf.mxu0
    %v2608 = vadd.f32 %v2561, %v2607
    %2609 = vmatmul.f32.gmra.mxu0 0.0
    %v2610 = vpop.f32.mrf.mxu0
    %v2611 = vadd.f32 %v2564, %v2610
    %2612 = vmatmul.f32.gmra.mxu0 0.0
    %v2613 = vpop.f32.mrf.mxu0
    %v2614 = vadd.f32 %v2567, %v2613
    %2615 = vdwg.mxu0
    %2616 = vmatpush.msra.mxu0 0.0
    %2617 = vmatpush.msra.mxu0 0.0
    %2618 = vmatpush.msra.mxu0 0.0
    %2619 = vmatpush.msra.mxu0 0.0
    %2620 = vmatpush.msra.mxu0 0.0
    %2621 = vmatpush.msra.mxu0 0.0
    %2622 = vmatpush.msra.mxu0 0.0
    %2623 = vmatpush.msra.mxu0 0.0
    %2624 = vmatpush.msra.mxu0 %v1931
    %2625 = vmatpush.msra.mxu0 %v1928
    %2626 = vmatpush.msra.mxu0 %v1925
    %2627 = vmatpush.msra.mxu0 %v1922
    %2628 = vmatpush.msra.mxu0 %v1919
    %2629 = vmatpush.msra.mxu0 %v1916
    %2630 = vmatpush.msra.mxu0 %v1913
    %2631 = vmatpush.msra.mxu0 %v1910
    %2632 = vmatmul.f32.gmra.mxu0 %v1940
    %v2633 = vpop.f32.mrf.mxu0
    %v2634 = vadd.f32 %v2587, %v2633
    %2635 = vmatmul.f32.gmra.mxu0 %v1942
    %v2636 = vpop.f32.mrf.mxu0
    %v2637 = vadd.f32 %v2590, %v2636
    %2638 = vmatmul.f32.gmra.mxu0 %v1944
    %v2639 = vpop.f32.mrf.mxu0
    %v2640 = vadd.f32 %v2593, %v2639
    %2641 = vmatmul.f32.gmra.mxu0 %v1946
    %v2642 = vpop.f32.mrf.mxu0
    %v2643 = vadd.f32 %v2596, %v2642
    %2644 = vmatmul.f32.gmra.mxu0 %v1948
    %v2645 = vpop.f32.mrf.mxu0
    %v2646 = vadd.f32 %v2599, %v2645
    %2647 = vmatmul.f32.gmra.mxu0 %v1950
    %v2648 = vpop.f32.mrf.mxu0
    %v2649 = vadd.f32 %v2602, %v2648
    %2650 = vmatmul.f32.gmra.mxu0 %v1952
    %v2651 = vpop.f32.mrf.mxu0
    %v2652 = vadd.f32 %v2605, %v2651
    %2653 = vmatmul.f32.gmra.mxu0 %v1954
    %v2654 = vpop.f32.mrf.mxu0
    %v2655 = vadd.f32 %v2608, %v2654
    %2656 = vmatmul.f32.gmra.mxu0 %v1956
    %v2657 = vpop.f32.mrf.mxu0
    %v2658 = vadd.f32 %v2611, %v2657
    %2659 = vmatmul.f32.gmra.mxu0 %v1956
    %v2660 = vpop.f32.mrf.mxu0
    %v2661 = vadd.f32 %v2614, %v2660
    %2662 = vdwg.mxu0
    %2673 = vrot.lane.b32.xlu0 %v2164, 96
    %v2674 = vpop.permute.xlu0 %2673
    %2675 = vrot.lane.b32.xlu0 %v2167, 96
    %v2676 = vpop.permute.xlu0 %2675
    %2677 = vrot.lane.b32.xlu0 %v2170, 96
    %v2678 = vpop.permute.xlu0 %2677
    %2679 = vrot.lane.b32.xlu0 %v2173, 96
    %v2680 = vpop.permute.xlu0 %2679
    %2681 = vrot.lane.b32.xlu0 %v2176, 96
    %v2682 = vpop.permute.xlu0 %2681
    %2683 = vrot.lane.b32.xlu0 %v2179, 96
    %v2684 = vpop.permute.xlu0 %2683
    %2685 = vrot.lane.b32.xlu0 %v2182, 96
    %v2686 = vpop.permute.xlu0 %2685
    %2687 = vrot.lane.b32.xlu0 %v2185, 96
    %v2688 = vpop.permute.xlu0 %2687
    %2689 = vrot.lane.b32.xlu0 %v2188, 96
    %v2690 = vpop.permute.xlu0 %2689
    %2691 = vrot.lane.b32.xlu0 %v2191, 96
    %v2692 = vpop.permute.xlu0 %2691
    %2713 = vrot.lane.b32.xlu0 %v2399, 64
    %v2714 = vpop.permute.xlu0 %2713
    %2715 = vrot.lane.b32.xlu0 %v2402, 64
    %v2716 = vpop.permute.xlu0 %2715
    %2717 = vrot.lane.b32.xlu0 %v2405, 64
    %v2718 = vpop.permute.xlu0 %2717
    %2719 = vrot.lane.b32.xlu0 %v2408, 64
    %v2720 = vpop.permute.xlu0 %2719
    %2721 = vrot.lane.b32.xlu0 %v2411, 64
    %v2722 = vpop.permute.xlu0 %2721
    %2723 = vrot.lane.b32.xlu0 %v2414, 64
    %v2724 = vpop.permute.xlu0 %2723
    %2725 = vrot.lane.b32.xlu0 %v2417, 64
    %v2726 = vpop.permute.xlu0 %2725
    %2727 = vrot.lane.b32.xlu0 %v2420, 64
    %v2728 = vpop.permute.xlu0 %2727
    %2729 = vrot.lane.b32.xlu0 %v2423, 64
    %v2730 = vpop.permute.xlu0 %2729
    %2731 = vrot.lane.b32.xlu0 %v2426, 64
    %v2732 = vpop.permute.xlu0 %2731
    %2743 = vrot.lane.b32.xlu0 %v2399, 32
    %v2744 = vpop.permute.xlu0 %2743
    %2745 = vrot.lane.b32.xlu0 %v2402, 32
    %v2746 = vpop.permute.xlu0 %2745
    %2747 = vrot.lane.b32.xlu0 %v2405, 32
    %v2748 = vpop.permute.xlu0 %2747
    %2749 = vrot.lane.b32.xlu0 %v2408, 32
    %v2750 = vpop.permute.xlu0 %2749
    %2751 = vrot.lane.b32.xlu0 %v2411, 32
    %v2752 = vpop.permute.xlu0 %2751
    %2753 = vrot.lane.b32.xlu0 %v2414, 32
    %v2754 = vpop.permute.xlu0 %2753
    %2755 = vrot.lane.b32.xlu0 %v2417, 32
    %v2756 = vpop.permute.xlu0 %2755
    %2757 = vrot.lane.b32.xlu0 %v2420, 32
    %v2758 = vpop.permute.xlu0 %2757
    %2759 = vrot.lane.b32.xlu0 %v2423, 32
    %v2760 = vpop.permute.xlu0 %2759
    %2761 = vrot.lane.b32.xlu0 %v2426, 32
    %v2762 = vpop.permute.xlu0 %2761
    %v2773 = vsel %vm333, %v2164, %v2674
    %v2774 = vsel %vm333, %v2167, %v2676
    %v2775 = vsel %vm333, %v2170, %v2678
    %v2776 = vsel %vm333, %v2173, %v2680
    %v2777 = vsel %vm333, %v2176, %v2682
    %v2778 = vsel %vm333, %v2179, %v2684
    %v2779 = vsel %vm333, %v2182, %v2686
    %v2780 = vsel %vm333, %v2185, %v2688
    %v2781 = vsel %vm333, %v2188, %v2690
    %v2782 = vsel %vm333, %v2191, %v2692
    %v2783 = vsel %vm1133, %v2773, %v2714
    %v2784 = vsel %vm1133, %v2774, %v2716
    %v2785 = vsel %vm1133, %v2775, %v2718
    %v2786 = vsel %vm1133, %v2776, %v2720
    %v2787 = vsel %vm1133, %v2777, %v2722
    %v2788 = vsel %vm1133, %v2778, %v2724
    %v2789 = vsel %vm1133, %v2779, %v2726
    %v2790 = vsel %vm1133, %v2780, %v2728
    %v2791 = vsel %vm1133, %v2781, %v2730
    %v2792 = vsel %vm1133, %v2782, %v2732
    %v2793 = vsel %vm1166, %v2783, %v2744
    %v2794 = vsel %vm1166, %v2784, %v2746
    %v2795 = vsel %vm1166, %v2785, %v2748
    %v2796 = vsel %vm1166, %v2786, %v2750
    %v2797 = vsel %vm1166, %v2787, %v2752
    %v2798 = vsel %vm1166, %v2788, %v2754
    %v2799 = vsel %vm1166, %v2789, %v2756
    %v2800 = vsel %vm1166, %v2790, %v2758
    %v2801 = vsel %vm1166, %v2791, %v2760
    %v2802 = vsel %vm1166, %v2792, %v2762
    %2803 = vrot.lane.b32.xlu0 %v2164, 64
    %v2804 = vpop.permute.xlu0 %2803
    %2805 = vrot.lane.b32.xlu0 %v2167, 64
    %v2806 = vpop.permute.xlu0 %2805
    %2807 = vrot.lane.b32.xlu0 %v2170, 64
    %v2808 = vpop.permute.xlu0 %2807
    %2809 = vrot.lane.b32.xlu0 %v2173, 64
    %v2810 = vpop.permute.xlu0 %2809
    %2811 = vrot.lane.b32.xlu0 %v2176, 64
    %v2812 = vpop.permute.xlu0 %2811
    %2813 = vrot.lane.b32.xlu0 %v2179, 64
    %v2814 = vpop.permute.xlu0 %2813
    %2815 = vrot.lane.b32.xlu0 %v2182, 64
    %v2816 = vpop.permute.xlu0 %2815
    %2817 = vrot.lane.b32.xlu0 %v2185, 64
    %v2818 = vpop.permute.xlu0 %2817
    %2819 = vrot.lane.b32.xlu0 %v2188, 64
    %v2820 = vpop.permute.xlu0 %2819
    %2821 = vrot.lane.b32.xlu0 %v2191, 64
    %v2822 = vpop.permute.xlu0 %2821
    %2843 = vrot.lane.b32.xlu0 %v2634, 96
    %v2844 = vpop.permute.xlu0 %2843
    %2845 = vrot.lane.b32.xlu0 %v2637, 96
    %v2846 = vpop.permute.xlu0 %2845
    %2847 = vrot.lane.b32.xlu0 %v2640, 96
    %v2848 = vpop.permute.xlu0 %2847
    %2849 = vrot.lane.b32.xlu0 %v2643, 96
    %v2850 = vpop.permute.xlu0 %2849
    %2851 = vrot.lane.b32.xlu0 %v2646, 96
    %v2852 = vpop.permute.xlu0 %2851
    %2853 = vrot.lane.b32.xlu0 %v2649, 96
    %v2854 = vpop.permute.xlu0 %2853
    %2855 = vrot.lane.b32.xlu0 %v2652, 96
    %v2856 = vpop.permute.xlu0 %2855
    %2857 = vrot.lane.b32.xlu0 %v2655, 96
    %v2858 = vpop.permute.xlu0 %2857
    %2859 = vrot.lane.b32.xlu0 %v2658, 96
    %v2860 = vpop.permute.xlu0 %2859
    %2861 = vrot.lane.b32.xlu0 %v2661, 96
    %v2862 = vpop.permute.xlu0 %2861
    %v2873 = vsel %vm333, %v2674, %v2804
    %v2874 = vsel %vm333, %v2676, %v2806
    %v2875 = vsel %vm333, %v2678, %v2808
    %v2876 = vsel %vm333, %v2680, %v2810
    %v2877 = vsel %vm333, %v2682, %v2812
    %v2878 = vsel %vm333, %v2684, %v2814
    %v2879 = vsel %vm333, %v2686, %v2816
    %v2880 = vsel %vm333, %v2688, %v2818
    %v2881 = vsel %vm333, %v2690, %v2820
    %v2882 = vsel %vm333, %v2692, %v2822
    %v2883 = vsel %vm1133, %v2873, %v2744
    %v2884 = vsel %vm1133, %v2874, %v2746
    %v2885 = vsel %vm1133, %v2875, %v2748
    %v2886 = vsel %vm1133, %v2876, %v2750
    %v2887 = vsel %vm1133, %v2877, %v2752
    %v2888 = vsel %vm1133, %v2878, %v2754
    %v2889 = vsel %vm1133, %v2879, %v2756
    %v2890 = vsel %vm1133, %v2880, %v2758
    %v2891 = vsel %vm1133, %v2881, %v2760
    %v2892 = vsel %vm1133, %v2882, %v2762
    %v2893 = vsel %vm1166, %v2883, %v2399
    %v2894 = vsel %vm1166, %v2884, %v2402
    %v2895 = vsel %vm1166, %v2885, %v2405
    %v2896 = vsel %vm1166, %v2886, %v2408
    %v2897 = vsel %vm1166, %v2887, %v2411
    %v2898 = vsel %vm1166, %v2888, %v2414
    %v2899 = vsel %vm1166, %v2889, %v2417
    %v2900 = vsel %vm1166, %v2890, %v2420
    %v2901 = vsel %vm1166, %v2891, %v2423
    %v2902 = vsel %vm1166, %v2892, %v2426
    %v2903 = vmax.f32 %v2793, %v2893
    %v2904 = vmax.f32 %v2634, %v2844
    %v2905 = vmax.f32 %v2794, %v2894
    %v2906 = vmax.f32 %v2637, %v2846
    %v2907 = vmax.f32 %v2795, %v2895
    %v2908 = vmax.f32 %v2640, %v2848
    %v2909 = vmax.f32 %v2796, %v2896
    %v2910 = vmax.f32 %v2643, %v2850
    %v2911 = vmax.f32 %v2797, %v2897
    %v2912 = vmax.f32 %v2646, %v2852
    %v2913 = vmax.f32 %v2798, %v2898
    %v2914 = vmax.f32 %v2649, %v2854
    %v2915 = vmax.f32 %v2799, %v2899
    %v2916 = vmax.f32 %v2652, %v2856
    %v2917 = vmax.f32 %v2800, %v2900
    %v2918 = vmax.f32 %v2655, %v2858
    %v2919 = vmax.f32 %v2801, %v2901
    %v2920 = vmax.f32 %v2658, %v2860
    %v2921 = vmax.f32 %v2802, %v2902
    %v2922 = vmax.f32 %v2661, %v2862
    %v2923 = vmax.f32 %v2903, %v2905
    %v2924 = vmax.f32 %v2904, %v2906
    %v2925 = vmax.f32 %v2907, %v2909
    %v2926 = vmax.f32 %v2908, %v2910
    %v2927 = vmax.f32 %v2911, %v2913
    %v2928 = vmax.f32 %v2912, %v2914
    %v2929 = vmax.f32 %v2915, %v2917
    %v2930 = vmax.f32 %v2916, %v2918
    %v2931 = vmax.f32 %v2919, %v2921
    %v2932 = vmax.f32 %v2920, %v2922
    %v2933 = vmax.f32 %v2923, 0.0
    %v2934 = vmax.f32 %v2924, 0.0
    %v2935 = vmax.f32 %v2925, 0.0
    %v2936 = vmax.f32 %v2926, 0.0
    %v2937 = vmax.f32 %v2927, 0.0
    %v2938 = vmax.f32 %v2928, 0.0
    %v2939 = vmax.f32 %v2929, 0.0
    %v2940 = vmax.f32 %v2930, 0.0
    %v2941 = vmax.f32 %v2931, 0.0
    %v2942 = vmax.f32 %v2932, 0.0
    %v2943 = vld [vmem:[%s7] sm:$0x1]
    %v2944 = vld [vmem:[%s8] sm:$0x1]
    %v2945 = vadd.f32 %v2933, %v2935
    %v2946 = vadd.f32 %v2945, %v2937
    %v2947 = vadd.f32 %v2946, %v2939
    %v2948 = vadd.f32 %v2947, %v2941
    %v2949 = vrot.slane %v2948, 4
    %v2950 = vadd.f32 %v2948, %v2949
    %v2951 = vrot.slane %v2950, 2
    %v2952 = vadd.f32 %v2950, %v2951
    %v2953 = vrot.slane %v2952, 1
    %v2954 = vadd.f32 %v2952, %v2953
    %v2955 = vsel %vm333, %v2934, 0.0
    %v2956 = vsel %vm333, %v2936, 0.0
    %v2957 = vadd.f32 %v2955, %v2956
    %v2958 = vsel %vm333, %v2938, 0.0
    %v2959 = vadd.f32 %v2957, %v2958
    %v2960 = vsel %vm333, %v2940, 0.0
    %v2961 = vadd.f32 %v2959, %v2960
    %v2962 = vsel %vm333, %v2942, 0.0
    %v2963 = vadd.f32 %v2961, %v2962
    %v2964 = vrot.slane %v2963, 4
    %v2965 = vadd.f32 %v2963, %v2964
    %v2966 = vrot.slane %v2965, 2
    %v2967 = vadd.f32 %v2965, %v2966
    %v2968 = vrot.slane %v2967, 1
    %v2969 = vadd.f32 %v2967, %v2968
    %2971 = vrot.lane.b32.xlu0 %v2954, 96
    %v2972 = vpop.permute.xlu0 %2971
    %v2974 = vadd.f32 %v2954, %v2972
    %2975 = vrot.lane.b32.xlu0 %v2954, 64
    %v2976 = vpop.permute.xlu0 %2975
    %v2978 = vadd.f32 %v2974, %v2976
    %2979 = vrot.lane.b32.xlu0 %v2954, 32
    %v2980 = vpop.permute.xlu0 %2979
    %v2982 = vadd.f32 %v2978, %v2980
    %v2983 = vadd.f32 %v2982, %v2969
    %v2984 = vmul.f32 %v2933, %v2933
    %v2985 = vmul.f32 %v2934, %v2934
    %v2986 = vmul.f32 %v2935, %v2935
    %v2987 = vmul.f32 %v2936, %v2936
    %v2988 = vmul.f32 %v2937, %v2937
    %v2989 = vmul.f32 %v2938, %v2938
    %v2990 = vmul.f32 %v2939, %v2939
    %v2991 = vmul.f32 %v2940, %v2940
    %v2992 = vmul.f32 %v2941, %v2941
    %v2993 = vmul.f32 %v2942, %v2942
    %v2994 = vadd.f32 %v2984, %v2986
    %v2995 = vadd.f32 %v2994, %v2988
    %v2996 = vadd.f32 %v2995, %v2990
    %v2997 = vadd.f32 %v2996, %v2992
    %v2998 = vrot.slane %v2997, 4
    %v2999 = vadd.f32 %v2997, %v2998
    %v3000 = vrot.slane %v2999, 2
    %v3001 = vadd.f32 %v2999, %v3000
    %v3002 = vrot.slane %v3001, 1
    %v3003 = vadd.f32 %v3001, %v3002
    %v3004 = vsel %vm333, %v2985, 0.0
    %v3005 = vsel %vm333, %v2987, 0.0
    %v3006 = vadd.f32 %v3004, %v3005
    %v3007 = vsel %vm333, %v2989, 0.0
    %v3008 = vadd.f32 %v3006, %v3007
    %v3009 = vsel %vm333, %v2991, 0.0
    %v3010 = vadd.f32 %v3008, %v3009
    %v3011 = vsel %vm333, %v2993, 0.0
    %v3012 = vadd.f32 %v3010, %v3011
    %v3013 = vrot.slane %v3012, 4
    %v3014 = vadd.f32 %v3012, %v3013
    %v3015 = vrot.slane %v3014, 2
    %v3016 = vadd.f32 %v3014, %v3015
    %v3017 = vrot.slane %v3016, 1
    %v3018 = vadd.f32 %v3016, %v3017
    %3020 = vrot.lane.b32.xlu0 %v3003, 96
    %v3021 = vpop.permute.xlu0 %3020
    %v3023 = vadd.f32 %v3003, %v3021
    %3024 = vrot.lane.b32.xlu0 %v3003, 64
    %v3025 = vpop.permute.xlu0 %3024
    %v3027 = vadd.f32 %v3023, %v3025
    %3028 = vrot.lane.b32.xlu0 %v3003, 32
    %v3029 = vpop.permute.xlu0 %3028
    %v3031 = vadd.f32 %v3027, %v3029
    %v3032 = vadd.f32 %v3031, %v3018
    %v3033 = vmul.f32 %v2983, 0.005
    %v3034 = vmul.f32 %v3032, 0.005
    %v3035 = vmul.f32 %v3033, %v3033
    %v3036 = vsub.f32 %v3034, %v3035
    %v3037 = vadd.f32 %v3036, 1e-05
    %v3038 = vrsqrt.pop %v3037
    %v3039 = vmul.f32 %v3038, %v3037
    %v3040 = vmul.f32 %v3039, %v3038
    %v3041 = vmul.f32 0.5, %v3040
    %v3042 = vsub.f32 1.5, %v3041
    %v3043 = vmul.f32 %v3038, %v3042
    %vm3044 = vweird.f32 %v3037
    %vm3045 = vweird.f32 %v3038
    %vm3046 = vmor %vm3044, %vm3045
    %v3047 = vsel %vm3046, %v3038, %v3043
    %v3048 = vmul.f32 %v2943, %v3047
    %v3049 = vmul.f32 %v3033, %v3048
    %v3050 = vsub.f32 %v2944, %v3049
    %v3052 = vperm.slane %v3048, 0
    %3053 = vrot.lane.b32.xlu0 %v3052, 32
    %v3054 = vpop.permute.xlu0 %3053
    %3056 = vrot.lane.b32.xlu0 %v3052, 64
    %v3057 = vpop.permute.xlu0 %3056
    %3059 = vrot.lane.b32.xlu0 %v3052, 96
    %v3060 = vpop.permute.xlu0 %3059
    %v3062 = vsel %vm333, %v3048, %v3054
    %v3063 = vsel %vm1133, %v3062, %v3057
    %v3064 = vsel %vm1166, %v3063, %v3060
    %v3065 = vperm.slane %v3064, 0
    %v3066 = vperm.slane %v3048, 0
    %v3067 = vmul.f32 %v2933, %v3065
    %v3068 = vmul.f32 %v2934, %v3066
    %v3069 = vmul.f32 %v2935, %v3065
    %v3070 = vmul.f32 %v2936, %v3066
    %v3071 = vmul.f32 %v2937, %v3065
    %v3072 = vmul.f32 %v2938, %v3066
    %v3073 = vmul.f32 %v2939, %v3065
    %v3074 = vmul.f32 %v2940, %v3066
    %v3075 = vmul.f32 %v2941, %v3065
    %v3076 = vmul.f32 %v2942, %v3066
    %v3078 = vperm.slane %v3050, 0
    %3079 = vrot.lane.b32.xlu0 %v3078, 32
    %v3080 = vpop.permute.xlu0 %3079
    %3082 = vrot.lane.b32.xlu0 %v3078, 64
    %v3083 = vpop.permute.xlu0 %3082
    %3085 = vrot.lane.b32.xlu0 %v3078, 96
    %v3086 = vpop.permute.xlu0 %3085
    %v3088 = vsel %vm333, %v3050, %v3080
    %v3089 = vsel %vm1133, %v3088, %v3083
    %v3090 = vsel %vm1166, %v3089, %v3086
    %v3091 = vperm.slane %v3090, 0
    %v3092 = vperm.slane %v3050, 0
    %v3093 = vadd.f32 %v3067, %v3091
    %v3094 = vadd.f32 %v3068, %v3092
    %v3095 = vadd.f32 %v3069, %v3091
    %v3096 = vadd.f32 %v3070, %v3092
    %v3097 = vadd.f32 %v3071, %v3091
    %v3098 = vadd.f32 %v3072, %v3092
    %v3099 = vadd.f32 %v3073, %v3091
    %v3100 = vadd.f32 %v3074, %v3092
    %v3101 = vadd.f32 %v3075, %v3091
    %v3102 = vadd.f32 %v3076, %v3092
    %3105 = vrot.lane.b32.xlu0 %v3095, 32
    %v3106 = vpop.permute.xlu0 %3105
    %3107 = vrot.lane.b32.xlu0 %v3096, 32
    %v3108 = vpop.permute.xlu0 %3107
    %v3109 = vsel %vm333, %v3106, %v3108
    %3114 = vrot.lane.b32.xlu0 %v3097, 64
    %v3115 = vpop.permute.xlu0 %3114
    %3116 = vrot.lane.b32.xlu0 %v3098, 64
    %v3117 = vpop.permute.xlu0 %3116
    %v3118 = vsel %vm1133, %v3115, %v3117
    %3123 = vrot.lane.b32.xlu0 %v3099, 96
    %v3124 = vpop.permute.xlu0 %3123
    %3125 = vrot.lane.b32.xlu0 %v3100, 96
    %v3126 = vpop.permute.xlu0 %3125
    %v3127 = vsel %vm1166, %v3124, %v3126
    %v3130 = vsel %vm333, %v3094, %v3106
    %v3131 = vsel %vm1133, %v3109, %v3115
    %v3132 = vsel %vm1166, %v3118, %v3124
    %v3133 = vld [vmem:[%s9] sm:$0xff]
    %v3134 = vld [vmem:[%s9 + $0x8] sm:$0xff]
    %v3135 = vld [vmem:[%s9 + $0x10] sm:$0xff]
    %v3136 = vld [vmem:[%s9 + $0x18] sm:$0xff]
    %v3137 = vld [vmem:[%s9 + $0x20] sm:$0xff]
    %v3138 = vld [vmem:[%s9 + $0x28] sm:$0xff]
    %v3139 = vld [vmem:[%s9 + $0x30] sm:$0xff]
    %v3140 = vld [vmem:[%s9 + $0x38] sm:$0xff]
    %v3141 = vld [vmem:[%s9 + $0x40] sm:$0xff]
    %v3142 = vld [vmem:[%s9 + $0x48] sm:$0xff]
    %v3143 = vld [vmem:[%s9 + $0x50] sm:$0xff]
    %v3144 = vld [vmem:[%s9 + $0x58] sm:$0xff]
    %v3145 = vld [vmem:[%s9 + $0x60] sm:$0xff]
    %v3146 = vld [vmem:[%s9 + $0x68] sm:$0xff]
    %v3147 = vld [vmem:[%s9 + $0x70] sm:$0xff]
    %v3148 = vld [vmem:[%s9 + $0x78] sm:$0xff]
    %v3149 = vld [vmem:[%s9 + $0x80] sm:$0xff]
    %v3150 = vld [vmem:[%s9 + $0x88] sm:$0xff]
    %v3151 = vld [vmem:[%s9 + $0x90] sm:$0xff]
    %v3152 = vld [vmem:[%s9 + $0x98] sm:$0xff]
    %v3153 = vld [vmem:[%s9 + $0xa0] sm:$0xff]
    %v3154 = vld [vmem:[%s9 + $0xa8] sm:$0xff]
    %v3155 = vld [vmem:[%s9 + $0xb0] sm:$0xff]
    %v3156 = vld [vmem:[%s9 + $0xb8] sm:$0xff]
    %v3157 = vld [vmem:[%s9 + $0xc0] sm:$0xff]
    %v3158 = vld [vmem:[%s9 + $0xc8] sm:$0xff]
    %v3159 = vld [vmem:[%s9 + $0xd0] sm:$0xff]
    %v3160 = vld [vmem:[%s9 + $0xd8] sm:$0xff]
    %v3161 = vld [vmem:[%s9 + $0xe0] sm:$0xff]
    %v3162 = vld [vmem:[%s9 + $0xe8] sm:$0xff]
    %v3163 = vld [vmem:[%s9 + $0xf0] sm:$0xff]
    %v3164 = vld [vmem:[%s9 + $0xf8] sm:$0xff]
    %v3165 = vld [vmem:[%s9 + $0x100] sm:$0xff]
    %v3166 = vld [vmem:[%s9 + $0x108] sm:$0xff]
    %v3167 = vld [vmem:[%s9 + $0x110] sm:$0xff]
    %v3168 = vld [vmem:[%s9 + $0x118] sm:$0xff]
    %v3169 = vld [vmem:[%s9 + $0x120] sm:$0xff]
    %v3170 = vld [vmem:[%s9 + $0x128] sm:$0xff]
    %v3171 = vld [vmem:[%s9 + $0x130] sm:$0xff]
    %v3172 = vld [vmem:[%s9 + $0x138] sm:$0xff]
    %v3173 = vld [vmem:[%s9 + $0x140] sm:$0xff]
    %v3174 = vld [vmem:[%s9 + $0x148] sm:$0xff]
    %v3175 = vld [vmem:[%s9 + $0x150] sm:$0xff]
    %v3176 = vld [vmem:[%s9 + $0x158] sm:$0xff]
    %v3177 = vld [vmem:[%s9 + $0x160] sm:$0xff]
    %v3178 = vld [vmem:[%s9 + $0x168] sm:$0xff]
    %v3179 = vld [vmem:[%s9 + $0x170] sm:$0xff]
    %v3180 = vld [vmem:[%s9 + $0x178] sm:$0xff]
    %v3181 = vld [vmem:[%s9 + $0x180] sm:$0xff]
    %v3182 = vld [vmem:[%s9 + $0x188] sm:$0xff]
    %v3183 = vld [vmem:[%s9 + $0x190] sm:$0xff]
    %v3184 = vld [vmem:[%s9 + $0x198] sm:$0xff]
    %v3185 = vld [vmem:[%s9 + $0x1a0] sm:$0xff]
    %v3186 = vld [vmem:[%s9 + $0x1a8] sm:$0xff]
    %v3187 = vld [vmem:[%s9 + $0x1b0] sm:$0xff]
    %v3188 = vld [vmem:[%s9 + $0x1b8] sm:$0xff]
    %v3189 = vld [vmem:[%s9 + $0x1c0] sm:$0xff]
    %v3190 = vld [vmem:[%s9 + $0x1c8] sm:$0xff]
    %v3191 = vld [vmem:[%s9 + $0x1d0] sm:$0xff]
    %v3192 = vld [vmem:[%s9 + $0x1d8] sm:$0xff]
    %v3193 = vld [vmem:[%s9 + $0x1e0] sm:$0xff]
    %v3194 = vld [vmem:[%s9 + $0x1e8] sm:$0xff]
    %v3195 = vld [vmem:[%s9 + $0x1f0] sm:$0xff]
    %v3196 = vld [vmem:[%s9 + $0x1f8] sm:$0xff]
    %v3197 = vld [vmem:[%s9 + $0x200] sm:$0xff]
    %v3198 = vld [vmem:[%s9 + $0x208] sm:$0xff]
    %v3199 = vld [vmem:[%s9 + $0x210] sm:$0xff]
    %v3200 = vld [vmem:[%s9 + $0x218] sm:$0xff]
    %v3201 = vld [vmem:[%s9 + $0x220] sm:$0xff]
    %v3202 = vld [vmem:[%s9 + $0x228] sm:$0xff]
    %v3203 = vld [vmem:[%s9 + $0x230] sm:$0xff]
    %v3204 = vld [vmem:[%s9 + $0x238] sm:$0xff]
    %v3205 = vld [vmem:[%s9 + $0x240] sm:$0xff]
    %v3206 = vld [vmem:[%s9 + $0x248] sm:$0xff]
    %v3207 = vld [vmem:[%s9 + $0x250] sm:$0xff]
    %v3208 = vld [vmem:[%s9 + $0x258] sm:$0xff]
    %v3209 = vld [vmem:[%s9 + $0x260] sm:$0xff]
    %v3210 = vld [vmem:[%s9 + $0x268] sm:$0xff]
    %v3211 = vld [vmem:[%s9 + $0x270] sm:$0xff]
    %v3212 = vld [vmem:[%s9 + $0x278] sm:$0xff]
    %v3213 = vld [vmem:[%s9 + $0x280] sm:$0xff]
    %v3214 = vld [vmem:[%s9 + $0x288] sm:$0xff]
    %v3215 = vld [vmem:[%s9 + $0x290] sm:$0xff]
    %v3216 = vld [vmem:[%s9 + $0x298] sm:$0xff]
    %v3217 = vld [vmem:[%s9 + $0x2a0] sm:$0xff]
    %v3218 = vld [vmem:[%s9 + $0x2a8] sm:$0xff]
    %v3219 = vld [vmem:[%s9 + $0x2b0] sm:$0xff]
    %v3220 = vld [vmem:[%s9 + $0x2b8] sm:$0xff]
    %v3221 = vld [vmem:[%s9 + $0x2c0] sm:$0xff]
    %v3222 = vld [vmem:[%s9 + $0x2c8] sm:$0xff]
    %v3223 = vld [vmem:[%s9 + $0x2d0] sm:$0xff]
    %v3224 = vld [vmem:[%s9 + $0x2d8] sm:$0xff]
    %v3225 = vld [vmem:[%s9 + $0x2e0] sm:$0xff]
    %v3226 = vld [vmem:[%s9 + $0x2e8] sm:$0xff]
    %v3227 = vld [vmem:[%s9 + $0x2f0] sm:$0xff]
    %v3228 = vld [vmem:[%s9 + $0x2f8] sm:$0xff]
    %v3229 = vld [vmem:[%s9 + $0x300] sm:$0xff]
    %v3230 = vld [vmem:[%s9 + $0x308] sm:$0xff]
    %v3231 = vld [vmem:[%s9 + $0x310] sm:$0xff]
    %v3232 = vld [vmem:[%s9 + $0x318] sm:$0xff]
    %v3233 = vld [vmem:[%s9 + $0x320] sm:$0xff]
    %v3234 = vld [vmem:[%s9 + $0x328] sm:$0xff]
    %v3235 = vld [vmem:[%s9 + $0x330] sm:$0xff]
    %v3236 = vld [vmem:[%s9 + $0x338] sm:$0xff]
    %v3237 = vld [vmem:[%s9 + $0x340] sm:$0xff]
    %v3238 = vld [vmem:[%s9 + $0x348] sm:$0xff]
    %v3239 = vld [vmem:[%s9 + $0x350] sm:$0xff]
    %v3240 = vld [vmem:[%s9 + $0x358] sm:$0xff]
    %v3241 = vld [vmem:[%s9 + $0x360] sm:$0xff]
    %v3242 = vld [vmem:[%s9 + $0x368] sm:$0xff]
    %v3243 = vld [vmem:[%s9 + $0x370] sm:$0xff]
    %v3244 = vld [vmem:[%s9 + $0x378] sm:$0xff]
    %v3245 = vld [vmem:[%s9 + $0x380] sm:$0xff]
    %v3246 = vld [vmem:[%s9 + $0x388] sm:$0xff]
    %v3247 = vld [vmem:[%s9 + $0x390] sm:$0xff]
    %v3248 = vld [vmem:[%s9 + $0x398] sm:$0xff]
    %v3249 = vld [vmem:[%s9 + $0x3a0] sm:$0xff]
    %v3250 = vld [vmem:[%s9 + $0x3a8] sm:$0xff]
    %v3251 = vld [vmem:[%s9 + $0x3b0] sm:$0xff]
    %v3252 = vld [vmem:[%s9 + $0x3b8] sm:$0xff]
    %v3253 = vld [vmem:[%s9 + $0x3c0] sm:$0xff]
    %v3254 = vld [vmem:[%s9 + $0x3c8] sm:$0xff]
    %v3255 = vld [vmem:[%s9 + $0x3d0] sm:$0xff]
    %v3256 = vld [vmem:[%s9 + $0x3d8] sm:$0xff]
    %v3257 = vld [vmem:[%s9 + $0x3e0] sm:$0xff]
    %v3258 = vld [vmem:[%s9 + $0x3e8] sm:$0xff]
    %v3259 = vld [vmem:[%s9 + $0x3f0] sm:$0xff]
    %v3260 = vld [vmem:[%s9 + $0x3f8] sm:$0xff]
    %v3261 = vld [vmem:[%s9 + $0x400] sm:$0xff]
    %v3262 = vld [vmem:[%s9 + $0x408] sm:$0xff]
    %v3263 = vld [vmem:[%s9 + $0x410] sm:$0xff]
    %v3264 = vld [vmem:[%s9 + $0x418] sm:$0xff]
    %v3265 = vld [vmem:[%s9 + $0x420] sm:$0xff]
    %v3266 = vld [vmem:[%s9 + $0x428] sm:$0xff]
    %v3267 = vld [vmem:[%s9 + $0x430] sm:$0xff]
    %v3268 = vld [vmem:[%s9 + $0x438] sm:$0xff]
    %v3269 = vld [vmem:[%s9 + $0x440] sm:$0xff]
    %v3270 = vld [vmem:[%s9 + $0x448] sm:$0xff]
    %v3271 = vld [vmem:[%s9 + $0x450] sm:$0xff]
    %v3272 = vld [vmem:[%s9 + $0x458] sm:$0xff]
    %v3273 = vld [vmem:[%s9 + $0x460] sm:$0xff]
    %v3274 = vld [vmem:[%s9 + $0x468] sm:$0xff]
    %v3275 = vld [vmem:[%s9 + $0x470] sm:$0xff]
    %v3276 = vld [vmem:[%s9 + $0x478] sm:$0xff]
    %v3277 = vld [vmem:[%s9 + $0x480] sm:$0xff]
    %v3278 = vld [vmem:[%s9 + $0x488] sm:$0xff]
    %v3279 = vld [vmem:[%s9 + $0x490] sm:$0xff]
    %v3280 = vld [vmem:[%s9 + $0x498] sm:$0xff]
    %v3281 = vld [vmem:[%s9 + $0x4a0] sm:$0xff]
    %v3282 = vld [vmem:[%s9 + $0x4a8] sm:$0xff]
    %v3283 = vld [vmem:[%s9 + $0x4b0] sm:$0xff]
    %v3284 = vld [vmem:[%s9 + $0x4b8] sm:$0xff]
    %v3285 = vld [vmem:[%s9 + $0x4c0] sm:$0xff]
    %v3286 = vld [vmem:[%s9 + $0x4c8] sm:$0xff]
    %v3287 = vld [vmem:[%s9 + $0x4d0] sm:$0xff]
    %v3288 = vld [vmem:[%s9 + $0x4d8] sm:$0xff]
    %v3289 = vld [vmem:[%s9 + $0x4e0] sm:$0xff]
    %v3290 = vld [vmem:[%s9 + $0x4e8] sm:$0xff]
    %v3291 = vld [vmem:[%s9 + $0x4f0] sm:$0xff]
    %v3292 = vld [vmem:[%s9 + $0x4f8] sm:$0xff]
    %v3293 = vld [vmem:[%s9 + $0x500] sm:$0xff]
    %v3294 = vld [vmem:[%s9 + $0x508] sm:$0xff]
    %v3295 = vld [vmem:[%s9 + $0x510] sm:$0xff]
    %v3296 = vld [vmem:[%s9 + $0x518] sm:$0xff]
    %v3297 = vld [vmem:[%s9 + $0x520] sm:$0xff]
    %v3298 = vld [vmem:[%s9 + $0x528] sm:$0xff]
    %v3299 = vld [vmem:[%s9 + $0x530] sm:$0xff]
    %v3300 = vld [vmem:[%s9 + $0x538] sm:$0xff]
    %v3301 = vld [vmem:[%s9 + $0x540] sm:$0xff]
    %v3302 = vld [vmem:[%s9 + $0x548] sm:$0xff]
    %v3303 = vld [vmem:[%s9 + $0x550] sm:$0xff]
    %v3304 = vld [vmem:[%s9 + $0x558] sm:$0xff]
    %v3305 = vld [vmem:[%s9 + $0x560] sm:$0xff]
    %v3306 = vld [vmem:[%s9 + $0x568] sm:$0xff]
    %v3307 = vld [vmem:[%s9 + $0x570] sm:$0xff]
    %v3308 = vld [vmem:[%s9 + $0x578] sm:$0xff]
    %v3309 = vld [vmem:[%s9 + $0x580] sm:$0xff]
    %v3310 = vld [vmem:[%s9 + $0x588] sm:$0xff]
    %v3311 = vld [vmem:[%s9 + $0x590] sm:$0xff]
    %v3312 = vld [vmem:[%s9 + $0x598] sm:$0xff]
    %v3313 = vld [vmem:[%s9 + $0x5a0] sm:$0xff]
    %v3314 = vld [vmem:[%s9 + $0x5a8] sm:$0xff]
    %v3315 = vld [vmem:[%s9 + $0x5b0] sm:$0xff]
    %v3316 = vld [vmem:[%s9 + $0x5b8] sm:$0xff]
    %v3317 = vld [vmem:[%s9 + $0x5c0] sm:$0xff]
    %v3318 = vld [vmem:[%s9 + $0x5c8] sm:$0xff]
    %v3319 = vld [vmem:[%s9 + $0x5d0] sm:$0xff]
    %v3320 = vld [vmem:[%s9 + $0x5d8] sm:$0xff]
    %v3321 = vld [vmem:[%s9 + $0x5e0] sm:$0xff]
    %v3322 = vld [vmem:[%s9 + $0x5e8] sm:$0xff]
    %v3323 = vld [vmem:[%s9 + $0x5f0] sm:$0xff]
    %v3324 = vld [vmem:[%s9 + $0x5f8] sm:$0xff]
    %v3325 = vld [vmem:[%s9 + $0x600] sm:$0xff]
    %v3326 = vld [vmem:[%s9 + $0x608] sm:$0xff]
    %v3327 = vld [vmem:[%s9 + $0x610] sm:$0xff]
    %v3328 = vld [vmem:[%s9 + $0x618] sm:$0xff]
    %v3329 = vld [vmem:[%s9 + $0x620] sm:$0xff]
    %v3330 = vld [vmem:[%s9 + $0x628] sm:$0xff]
    %v3331 = vld [vmem:[%s9 + $0x630] sm:$0xff]
    %v3332 = vld [vmem:[%s9 + $0x638] sm:$0xff]
    %v3333 = vld [vmem:[%s10] sm:$0x3]
    %v3335 = vperm.slane %v3333, 0
    %v3336 = vperm.slane %v3333, 1
    %v3340 = vsel %vm333, %v3102, 0
    %3342 = vmatpush.msra.mxu0 %v3163
    %3343 = vmatpush.msra.mxu0 %v3161
    %3344 = vmatpush.msra.mxu0 %v3159
    %3345 = vmatpush.msra.mxu0 %v3157
    %3346 = vmatpush.msra.mxu0 %v3155
    %3347 = vmatpush.msra.mxu0 %v3153
    %3348 = vmatpush.msra.mxu0 %v3151
    %3349 = vmatpush.msra.mxu0 %v3149
    %3350 = vmatpush.msra.mxu0 %v3147
    %3351 = vmatpush.msra.mxu0 %v3145
    %3352 = vmatpush.msra.mxu0 %v3143
    %3353 = vmatpush.msra.mxu0 %v3141
    %3354 = vmatpush.msra.mxu0 %v3139
    %3355 = vmatpush.msra.mxu0 %v3137
    %3356 = vmatpush.msra.mxu0 %v3135
    %3357 = vmatpush.msra.mxu0 %v3133
    %3358 = vmatmul.f32.gmra.mxu0 %v3093
    %v3359 = vpop.f32.mrf.mxu0
    %v3360 = vadd.f32 %v3335, %v3359
    %3361 = vdwg.mxu0
    %3362 = vmatpush.msra.mxu0 %v3195
    %3363 = vmatpush.msra.mxu0 %v3193
    %3364 = vmatpush.msra.mxu0 %v3191
    %3365 = vmatpush.msra.mxu0 %v3189
    %3366 = vmatpush.msra.mxu0 %v3187
    %3367 = vmatpush.msra.mxu0 %v3185
    %3368 = vmatpush.msra.mxu0 %v3183
    %3369 = vmatpush.msra.mxu0 %v3181
    %3370 = vmatpush.msra.mxu0 %v3179
    %3371 = vmatpush.msra.mxu0 %v3177
    %3372 = vmatpush.msra.mxu0 %v3175
    %3373 = vmatpush.msra.mxu0 %v3173
    %3374 = vmatpush.msra.mxu0 %v3171
    %3375 = vmatpush.msra.mxu0 %v3169
    %3376 = vmatpush.msra.mxu0 %v3167
    %3377 = vmatpush.msra.mxu0 %v3165
    %3378 = vmatmul.f32.gmra.mxu0 %v3130
    %v3379 = vpop.f32.mrf.mxu0
    %v3380 = vadd.f32 %v3360, %v3379
    %3381 = vdwg.mxu0
    %3382 = vmatpush.msra.mxu0 %v3227
    %3383 = vmatpush.msra.mxu0 %v3225
    %3384 = vmatpush.msra.mxu0 %v3223
    %3385 = vmatpush.msra.mxu0 %v3221
    %3386 = vmatpush.msra.mxu0 %v3219
    %3387 = vmatpush.msra.mxu0 %v3217
    %3388 = vmatpush.msra.mxu0 %v3215
    %3389 = vmatpush.msra.mxu0 %v3213
    %3390 = vmatpush.msra.mxu0 %v3211
    %3391 = vmatpush.msra.mxu0 %v3209
    %3392 = vmatpush.msra.mxu0 %v3207
    %3393 = vmatpush.msra.mxu0 %v3205
    %3394 = vmatpush.msra.mxu0 %v3203
    %3395 = vmatpush.msra.mxu0 %v3201
    %3396 = vmatpush.msra.mxu0 %v3199
    %3397 = vmatpush.msra.mxu0 %v3197
    %3398 = vmatmul.f32.gmra.mxu0 %v3131
    %v3399 = vpop.f32.mrf.mxu0
    %v3400 = vadd.f32 %v3380, %v3399
    %3401 = vdwg.mxu0
    %3402 = vmatpush.msra.mxu0 %v3259
    %3403 = vmatpush.msra.mxu0 %v3257
    %3404 = vmatpush.msra.mxu0 %v3255
    %3405 = vmatpush.msra.mxu0 %v3253
    %3406 = vmatpush.msra.mxu0 %v3251
    %3407 = vmatpush.msra.mxu0 %v3249
    %3408 = vmatpush.msra.mxu0 %v3247
    %3409 = vmatpush.msra.mxu0 %v3245
    %3410 = vmatpush.msra.mxu0 %v3243
    %3411 = vmatpush.msra.mxu0 %v3241
    %3412 = vmatpush.msra.mxu0 %v3239
    %3413 = vmatpush.msra.mxu0 %v3237
    %3414 = vmatpush.msra.mxu0 %v3235
    %3415 = vmatpush.msra.mxu0 %v3233
    %3416 = vmatpush.msra.mxu0 %v3231
    %3417 = vmatpush.msra.mxu0 %v3229
    %3418 = vmatmul.f32.gmra.mxu0 %v3132
    %v3419 = vpop.f32.mrf.mxu0
    %v3420 = vadd.f32 %v3400, %v3419
    %3421 = vdwg.mxu0
    %3422 = vmatpush.msra.mxu0 %v3291
    %3423 = vmatpush.msra.mxu0 %v3289
    %3424 = vmatpush.msra.mxu0 %v3287
    %3425 = vmatpush.msra.mxu0 %v3285
    %3426 = vmatpush.msra.mxu0 %v3283
    %3427 = vmatpush.msra.mxu0 %v3281
    %3428 = vmatpush.msra.mxu0 %v3279
    %3429 = vmatpush.msra.mxu0 %v3277
    %3430 = vmatpush.msra.mxu0 %v3275
    %3431 = vmatpush.msra.mxu0 %v3273
    %3432 = vmatpush.msra.mxu0 %v3271
    %3433 = vmatpush.msra.mxu0 %v3269
    %3434 = vmatpush.msra.mxu0 %v3267
    %3435 = vmatpush.msra.mxu0 %v3265
    %3436 = vmatpush.msra.mxu0 %v3263
    %3437 = vmatpush.msra.mxu0 %v3261
    %3438 = vmatmul.f32.gmra.mxu0 %v3127
    %v3439 = vpop.f32.mrf.mxu0
    %v3440 = vadd.f32 %v3420, %v3439
    %3441 = vdwg.mxu0
    %3442 = vmatpush.msra.mxu0 %v3323
    %3443 = vmatpush.msra.mxu0 %v3321
    %3444 = vmatpush.msra.mxu0 %v3319
    %3445 = vmatpush.msra.mxu0 %v3317
    %3446 = vmatpush.msra.mxu0 %v3315
    %3447 = vmatpush.msra.mxu0 %v3313
    %3448 = vmatpush.msra.mxu0 %v3311
    %3449 = vmatpush.msra.mxu0 %v3309
    %3450 = vmatpush.msra.mxu0 %v3307
    %3451 = vmatpush.msra.mxu0 %v3305
    %3452 = vmatpush.msra.mxu0 %v3303
    %3453 = vmatpush.msra.mxu0 %v3301
    %3454 = vmatpush.msra.mxu0 %v3299
    %3455 = vmatpush.msra.mxu0 %v3297
    %3456 = vmatpush.msra.mxu0 %v3295
    %3457 = vmatpush.msra.mxu0 %v3293
    %3458 = vmatmul.f32.gmra.mxu0 %v3101
    %v3459 = vpop.f32.mrf.mxu0
    %v3460 = vadd.f32 %v3440, %v3459
    %3461 = vdwg.mxu0
    %3462 = vmatpush.msra.mxu0 0.0
    %3463 = vmatpush.msra.mxu0 0.0
    %3464 = vmatpush.msra.mxu0 0.0
    %3465 = vmatpush.msra.mxu0 0.0
    %3466 = vmatpush.msra.mxu0 0.0
    %3467 = vmatpush.msra.mxu0 0.0
    %3468 = vmatpush.msra.mxu0 0.0
    %3469 = vmatpush.msra.mxu0 0.0
    %3470 = vmatpush.msra.mxu0 0.0
    %3471 = vmatpush.msra.mxu0 0.0
    %3472 = vmatpush.msra.mxu0 0.0
    %3473 = vmatpush.msra.mxu0 0.0
    %3474 = vmatpush.msra.mxu0 %v3331
    %3475 = vmatpush.msra.mxu0 %v3329
    %3476 = vmatpush.msra.mxu0 %v3327
    %3477 = vmatpush.msra.mxu0 %v3325
    %3478 = vmatmul.f32.gmra.mxu0 %v3340
    %v3479 = vpop.f32.mrf.mxu0
    %v3480 = vadd.f32 %v3460, %v3479
    %3481 = vdwg.mxu0
    %3482 = vmatpush.msra.mxu0 %v3164
    %3483 = vmatpush.msra.mxu0 %v3162
    %3484 = vmatpush.msra.mxu0 %v3160
    %3485 = vmatpush.msra.mxu0 %v3158
    %3486 = vmatpush.msra.mxu0 %v3156
    %3487 = vmatpush.msra.mxu0 %v3154
    %3488 = vmatpush.msra.mxu0 %v3152
    %3489 = vmatpush.msra.mxu0 %v3150
    %3490 = vmatpush.msra.mxu0 %v3148
    %3491 = vmatpush.msra.mxu0 %v3146
    %3492 = vmatpush.msra.mxu0 %v3144
    %3493 = vmatpush.msra.mxu0 %v3142
    %3494 = vmatpush.msra.mxu0 %v3140
    %3495 = vmatpush.msra.mxu0 %v3138
    %3496 = vmatpush.msra.mxu0 %v3136
    %3497 = vmatpush.msra.mxu0 %v3134
    %3498 = vmatmul.f32.gmra.mxu0 %v3093
    %v3499 = vpop.f32.mrf.mxu0
    %v3500 = vadd.f32 %v3336, %v3499
    %3501 = vdwg.mxu0
    %3502 = vmatpush.msra.mxu0 %v3196
    %3503 = vmatpush.msra.mxu0 %v3194
    %3504 = vmatpush.msra.mxu0 %v3192
    %3505 = vmatpush.msra.mxu0 %v3190
    %3506 = vmatpush.msra.mxu0 %v3188
    %3507 = vmatpush.msra.mxu0 %v3186
    %3508 = vmatpush.msra.mxu0 %v3184
    %3509 = vmatpush.msra.mxu0 %v3182
    %3510 = vmatpush.msra.mxu0 %v3180
    %3511 = vmatpush.msra.mxu0 %v3178
    %3512 = vmatpush.msra.mxu0 %v3176
    %3513 = vmatpush.msra.mxu0 %v3174
    %3514 = vmatpush.msra.mxu0 %v3172
    %3515 = vmatpush.msra.mxu0 %v3170
    %3516 = vmatpush.msra.mxu0 %v3168
    %3517 = vmatpush.msra.mxu0 %v3166
    %3518 = vmatmul.f32.gmra.mxu0 %v3130
    %v3519 = vpop.f32.mrf.mxu0
    %v3520 = vadd.f32 %v3500, %v3519
    %3521 = vdwg.mxu0
    %3522 = vmatpush.msra.mxu0 %v3228
    %3523 = vmatpush.msra.mxu0 %v3226
    %3524 = vmatpush.msra.mxu0 %v3224
    %3525 = vmatpush.msra.mxu0 %v3222
    %3526 = vmatpush.msra.mxu0 %v3220
    %3527 = vmatpush.msra.mxu0 %v3218
    %3528 = vmatpush.msra.mxu0 %v3216
    %3529 = vmatpush.msra.mxu0 %v3214
    %3530 = vmatpush.msra.mxu0 %v3212
    %3531 = vmatpush.msra.mxu0 %v3210
    %3532 = vmatpush.msra.mxu0 %v3208
    %3533 = vmatpush.msra.mxu0 %v3206
    %3534 = vmatpush.msra.mxu0 %v3204
    %3535 = vmatpush.msra.mxu0 %v3202
    %3536 = vmatpush.msra.mxu0 %v3200
    %3537 = vmatpush.msra.mxu0 %v3198
    %3538 = vmatmul.f32.gmra.mxu0 %v3131
    %v3539 = vpop.f32.mrf.mxu0
    %v3540 = vadd.f32 %v3520, %v3539
    %3541 = vdwg.mxu0
    %3542 = vmatpush.msra.mxu0 %v3260
    %3543 = vmatpush.msra.mxu0 %v3258
    %3544 = vmatpush.msra.mxu0 %v3256
    %3545 = vmatpush.msra.mxu0 %v3254
    %3546 = vmatpush.msra.mxu0 %v3252
    %3547 = vmatpush.msra.mxu0 %v3250
    %3548 = vmatpush.msra.mxu0 %v3248
    %3549 = vmatpush.msra.mxu0 %v3246
    %3550 = vmatpush.msra.mxu0 %v3244
    %3551 = vmatpush.msra.mxu0 %v3242
    %3552 = vmatpush.msra.mxu0 %v3240
    %3553 = vmatpush.msra.mxu0 %v3238
    %3554 = vmatpush.msra.mxu0 %v3236
    %3555 = vmatpush.msra.mxu0 %v3234
    %3556 = vmatpush.msra.mxu0 %v3232
    %3557 = vmatpush.msra.mxu0 %v3230
    %3558 = vmatmul.f32.gmra.mxu0 %v3132
    %v3559 = vpop.f32.mrf.mxu0
    %v3560 = vadd.f32 %v3540, %v3559
    %3561 = vdwg.mxu0
    %3562 = vmatpush.msra.mxu0 %v3292
    %3563 = vmatpush.msra.mxu0 %v3290
    %3564 = vmatpush.msra.mxu0 %v3288
    %3565 = vmatpush.msra.mxu0 %v3286
    %3566 = vmatpush.msra.mxu0 %v3284
    %3567 = vmatpush.msra.mxu0 %v3282
    %3568 = vmatpush.msra.mxu0 %v3280
    %3569 = vmatpush.msra.mxu0 %v3278
    %3570 = vmatpush.msra.mxu0 %v3276
    %3571 = vmatpush.msra.mxu0 %v3274
    %3572 = vmatpush.msra.mxu0 %v3272
    %3573 = vmatpush.msra.mxu0 %v3270
    %3574 = vmatpush.msra.mxu0 %v3268
    %3575 = vmatpush.msra.mxu0 %v3266
    %3576 = vmatpush.msra.mxu0 %v3264
    %3577 = vmatpush.msra.mxu0 %v3262
    %3578 = vmatmul.f32.gmra.mxu0 %v3127
    %v3579 = vpop.f32.mrf.mxu0
    %v3580 = vadd.f32 %v3560, %v3579
    %3581 = vdwg.mxu0
    %3582 = vmatpush.msra.mxu0 %v3324
    %3583 = vmatpush.msra.mxu0 %v3322
    %3584 = vmatpush.msra.mxu0 %v3320
    %3585 = vmatpush.msra.mxu0 %v3318
    %3586 = vmatpush.msra.mxu0 %v3316
    %3587 = vmatpush.msra.mxu0 %v3314
    %3588 = vmatpush.msra.mxu0 %v3312
    %3589 = vmatpush.msra.mxu0 %v3310
    %3590 = vmatpush.msra.mxu0 %v3308
    %3591 = vmatpush.msra.mxu0 %v3306
    %3592 = vmatpush.msra.mxu0 %v3304
    %3593 = vmatpush.msra.mxu0 %v3302
    %3594 = vmatpush.msra.mxu0 %v3300
    %3595 = vmatpush.msra.mxu0 %v3298
    %3596 = vmatpush.msra.mxu0 %v3296
    %3597 = vmatpush.msra.mxu0 %v3294
    %3598 = vmatmul.f32.gmra.mxu0 %v3101
    %v3599 = vpop.f32.mrf.mxu0
    %v3600 = vadd.f32 %v3580, %v3599
    %3601 = vdwg.mxu0
    %3602 = vmatpush.msra.mxu0 0.0
    %3603 = vmatpush.msra.mxu0 0.0
    %3604 = vmatpush.msra.mxu0 0.0
    %3605 = vmatpush.msra.mxu0 0.0
    %3606 = vmatpush.msra.mxu0 0.0
    %3607 = vmatpush.msra.mxu0 0.0
    %3608 = vmatpush.msra.mxu0 0.0
    %3609 = vmatpush.msra.mxu0 0.0
    %3610 = vmatpush.msra.mxu0 0.0
    %3611 = vmatpush.msra.mxu0 0.0
    %3612 = vmatpush.msra.mxu0 0.0
    %3613 = vmatpush.msra.mxu0 0.0
    %3614 = vmatpush.msra.mxu0 %v3332
    %3615 = vmatpush.msra.mxu0 %v3330
    %3616 = vmatpush.msra.mxu0 %v3328
    %3617 = vmatpush.msra.mxu0 %v3326
    %3618 = vmatmul.f32.gmra.mxu0 %v3340
    %v3619 = vpop.f32.mrf.mxu0
    %v3620 = vadd.f32 %v3600, %v3619
    %3621 = vdwg.mxu0
    %v3622 = vmax.f32 %v3480, 0.0
    %v3623 = vmax.f32 %v3620, 0.0
    %v3624 = vrot.slane %v3622, 4
    %v3625 = vadd.f32 %v3622, %v3624
    %v3626 = vrot.slane %v3625, 2
    %v3627 = vadd.f32 %v3625, %v3626
    %v3628 = vrot.slane %v3627, 1
    %v3629 = vadd.f32 %v3627, %v3628
    %v3630 = vsel %vm406, %v3623, 0.0
    %v3631 = vrot.slane %v3630, 4
    %v3632 = vadd.f32 %v3630, %v3631
    %v3633 = vrot.slane %v3632, 2
    %v3634 = vadd.f32 %v3632, %v3633
    %v3635 = vrot.slane %v3634, 1
    %v3636 = vadd.f32 %v3634, %v3635
    %v3637 = vmul.f32 %v3629, 0.125
    %v3638 = vmul.f32 %v3636, 0.125
    %v3639 = vmul.f32 %v3622, %v3622
    %v3640 = vmul.f32 %v3623, %v3623
    %v3641 = vrot.slane %v3639, 4
    %v3642 = vadd.f32 %v3639, %v3641
    %v3643 = vrot.slane %v3642, 2
    %v3644 = vadd.f32 %v3642, %v3643
    %v3645 = vrot.slane %v3644, 1
    %v3646 = vadd.f32 %v3644, %v3645
    %v3647 = vsel %vm406, %v3640, 0.0
    %v3648 = vrot.slane %v3647, 4
    %v3649 = vadd.f32 %v3647, %v3648
    %v3650 = vrot.slane %v3649, 2
    %v3651 = vadd.f32 %v3649, %v3650
    %v3652 = vrot.slane %v3651, 1
    %v3653 = vadd.f32 %v3651, %v3652
    %v3654 = vmul.f32 %v3646, 0.125
    %v3655 = vmul.f32 %v3653, 0.125
    %v3656 = vmul.f32 %v3637, %v3637
    %v3657 = vmul.f32 %v3638, %v3638
    %v3658 = vsub.f32 %v3654, %v3656
    %v3659 = vsub.f32 %v3655, %v3657
    %v3660 = vsub.f32 %v3622, %v3637
    %v3661 = vsub.f32 %v3623, %v3638
    %v3662 = vld [vmem:[%s11] sm:$0x3]
    %v3663 = vadd.f32 %v3658, 1e-05
    %v3664 = vadd.f32 %v3659, 1e-05
    %v3665 = vrsqrt.pop %v3663
    %v3666 = vmul.f32 %v3665, %v3663
    %v3667 = vmul.f32 %v3666, %v3665
    %v3668 = vmul.f32 0.5, %v3667
    %v3669 = vsub.f32 1.5, %v3668
    %v3670 = vmul.f32 %v3665, %v3669
    %vm3671 = vweird.f32 %v3663
    %vm3672 = vweird.f32 %v3665
    %vm3673 = vmor %vm3671, %vm3672
    %v3674 = vsel %vm3673, %v3665, %v3670
    %v3675 = vrsqrt.pop %v3664
    %v3676 = vmul.f32 %v3675, %v3664
    %v3677 = vmul.f32 %v3676, %v3675
    %v3678 = vmul.f32 0.5, %v3677
    %v3679 = vsub.f32 1.5, %v3678
    %v3680 = vmul.f32 %v3675, %v3679
    %vm3681 = vweird.f32 %v3664
    %vm3682 = vweird.f32 %v3675
    %vm3683 = vmor %vm3681, %vm3682
    %v3684 = vsel %vm3683, %v3675, %v3680
    %v3687 = vrot.slane %v3684, 7
    %vm3688 = vcmask 1040384
    %v3689 = vsel %vm3688, %v3674, %v3687
    %v3691 = vmul.f32 %v3662, %v3689
    %v3693 = vperm.slane %v3691, 0
    %v3694 = vperm.slane %v3691, 1
    %v3697 = vmul.f32 %v3660, %v3693
    %v3698 = vmul.f32 %v3661, %v3694
    %v3699 = vld [vmem:[%s12] sm:$0x3]
    %v3701 = vperm.slane %v3699, 0
    %v3702 = vperm.slane %v3699, 1
    %v3705 = vadd.f32 %v3697, %v3701
    %v3706 = vadd.f32 %v3698, %v3702
    %v3707 = vld [vmem:[%s13] sm:$0xff]
    %v3708 = vld [vmem:[%s13 + $0x8] sm:$0xff]
    %v3709 = vld [vmem:[%s13 + $0x10] sm:$0xff]
    %v3710 = vld [vmem:[%s13 + $0x18] sm:$0xff]
    %v3711 = vld [vmem:[%s13 + $0x20] sm:$0xff]
    %v3712 = vld [vmem:[%s13 + $0x28] sm:$0xff]
    %v3713 = vld [vmem:[%s13 + $0x30] sm:$0xff]
    %v3714 = vld [vmem:[%s13 + $0x38] sm:$0xff]
    %v3715 = vld [vmem:[%s13 + $0x40] sm:$0xff]
    %v3716 = vld [vmem:[%s13 + $0x48] sm:$0xff]
    %v3717 = vld [vmem:[%s13 + $0x50] sm:$0xff]
    %v3718 = vld [vmem:[%s13 + $0x58] sm:$0xff]
    %v3719 = vld [vmem:[%s13 + $0x60] sm:$0xff]
    %v3720 = vld [vmem:[%s13 + $0x68] sm:$0xff]
    %v3721 = vld [vmem:[%s13 + $0x70] sm:$0xff]
    %v3722 = vld [vmem:[%s13 + $0x78] sm:$0xff]
    %v3723 = vld [vmem:[%s13 + $0x80] sm:$0xff]
    %v3724 = vld [vmem:[%s13 + $0x88] sm:$0xff]
    %v3725 = vld [vmem:[%s13 + $0x90] sm:$0xff]
    %v3726 = vld [vmem:[%s13 + $0x98] sm:$0xff]
    %v3727 = vld [vmem:[%s13 + $0xa0] sm:$0xff]
    %v3728 = vld [vmem:[%s13 + $0xa8] sm:$0xff]
    %v3729 = vld [vmem:[%s13 + $0xb0] sm:$0xff]
    %v3730 = vld [vmem:[%s13 + $0xb8] sm:$0xff]
    %v3731 = vld [vmem:[%s13 + $0xc0] sm:$0xff]
    %v3732 = vld [vmem:[%s14] sm:$0x1]
    %v3734 = vperm.slane %v3732, 0
    %v3737 = vsel %vm406, %v3706, 0
    %3739 = vmatpush.msra.mxu0 %v3722
    %3740 = vmatpush.msra.mxu0 %v3721
    %3741 = vmatpush.msra.mxu0 %v3720
    %3742 = vmatpush.msra.mxu0 %v3719
    %3743 = vmatpush.msra.mxu0 %v3718
    %3744 = vmatpush.msra.mxu0 %v3717
    %3745 = vmatpush.msra.mxu0 %v3716
    %3746 = vmatpush.msra.mxu0 %v3715
    %3747 = vmatpush.msra.mxu0 %v3714
    %3748 = vmatpush.msra.mxu0 %v3713
    %3749 = vmatpush.msra.mxu0 %v3712
    %3750 = vmatpush.msra.mxu0 %v3711
    %3751 = vmatpush.msra.mxu0 %v3710
    %3752 = vmatpush.msra.mxu0 %v3709
    %3753 = vmatpush.msra.mxu0 %v3708
    %3754 = vmatpush.msra.mxu0 %v3707
    %3755 = vmatmul.f32.gmra.mxu0 %v3705
    %v3756 = vpop.f32.mrf.mxu0
    %v3757 = vadd.f32 %v3734, %v3756
    %3758 = vdwg.mxu0
    %3759 = vmatpush.msra.mxu0 0.0
    %3760 = vmatpush.msra.mxu0 0.0
    %3761 = vmatpush.msra.mxu0 0.0
    %3762 = vmatpush.msra.mxu0 0.0
    %3763 = vmatpush.msra.mxu0 0.0
    %3764 = vmatpush.msra.mxu0 0.0
    %3765 = vmatpush.msra.mxu0 0.0
    %3766 = vmatpush.msra.mxu0 %v3731
    %3767 = vmatpush.msra.mxu0 %v3730
    %3768 = vmatpush.msra.mxu0 %v3729
    %3769 = vmatpush.msra.mxu0 %v3728
    %3770 = vmatpush.msra.mxu0 %v3727
    %3771 = vmatpush.msra.mxu0 %v3726
    %3772 = vmatpush.msra.mxu0 %v3725
    %3773 = vmatpush.msra.mxu0 %v3724
    %3774 = vmatpush.msra.mxu0 %v3723
    %3775 = vmatmul.f32.gmra.mxu0 %v3737
    %v3776 = vpop.f32.mrf.mxu0
    %v3777 = vadd.f32 %v3757, %v3776
    %3778 = vdwg.mxu0
    %3779 = vst [vmem:[#allocation2] sm:$0xff] %v3777
    // Predicated region
    $region62: #{tpu_custom_call.1} parent=1 // pred_check
      _
    $region63: #{tpu_custom_call.1} parent=1 // pred_check_branch
      %3781 = sbr.rel (0) target = $region65
    $region64: #{tpu_custom_call.1} parent=1 // pred_region
      %3783 = vsyncadd [#allocation3], 0
      %s3785 = sshll.u32 [#allocation2], 4
      %s3786 = int_to_ptr.vmem [resolvable:$true] %s3785
      %s3787 = sshll.u32 %s15, 4
      %s3788 = int_to_ptr.hbm [resolvable:$true] %s3787
      %3790 = dma.vmem_to_hbm [thread:$0]  %s3786, 128, %s3788, [#allocation3]
    $region65: #{tpu_custom_call.1} parent=1 // pred_fallthru
      _
    // Predicated region
    $region66: #{tpu_custom_call.1} parent=1 // pred_check
      _
    $region67: #{tpu_custom_call.1} parent=1 // pred_check_branch
      %3792 = sbr.rel (0) target = $region69
    $region68: #{tpu_custom_call.1} parent=1 // pred_region
      %3794 = dma.done [#allocation3], 128
    $region69: #{tpu_custom_call.1} parent=1 // pred_fallthru
      _
    %3795 = vsyncpa [#allocation3], 1

</llo_original>
